<compile_context>
chip_gen: v7x
topology: tpu7x:2x2x1
jax: 0.10.0
libtpu: 0.0.40
codegen_flags: <defaults>
</compile_context>

<pallas_src>
import functools

import jax
import jax.numpy as jnp
from jax import lax
from jax.experimental import pallas as pl
from jax.experimental.pallas import tpu as pltpu

VMEM_LIMIT = 48 * 1024 * 1024   # headroom below v7x's 64 MiB/TC VMEM ceiling


# ----------------------- fused multi-head attention -------------------------
def _mha_kernel(q_ref, kv_ref,
                wq_ref, bq_ref, wk_ref, wv_ref, bv_ref, wo_ref, bo_ref,
                o_ref, ctx_ref, *, num_heads):
    """One (batch, q-tile) grid step.

    q_ref:   (1, TQ, D)  query-side activations (bf16)
    kv_ref:  (1, Sk, D)  key/value-side activations (bf16)
    w*_ref:  (D, D)      bf16 projection weights, (in, out) orientation
    b*_ref:  (1, D)      fp32 biases (no K bias: softmax shift-invariant)
    o_ref:   (1, TQ, D)  fp32 output
    ctx_ref: (TQ, D)     bf16 VMEM scratch holding all heads' contexts
    """
    D = q_ref.shape[-1]
    dh = D // num_heads
    scale = 1.0 / float(dh) ** 0.5

    xq = q_ref[0]                                  # (TQ, D) bf16
    xkv = kv_ref[0]                                # (Sk, D) bf16

    # In-projections: bf16 MXU operands, fp32 accumulation + fp32 bias adds.
    q = jnp.dot(xq, wq_ref[...], preferred_element_type=jnp.float32) + bq_ref[...]
    k = jnp.dot(xkv, wk_ref[...], preferred_element_type=jnp.float32)
    v = jnp.dot(xkv, wv_ref[...], preferred_element_type=jnp.float32) + bv_ref[...]

    q_bf = (q * scale).astype(jnp.bfloat16)        # torch scales Q by 1/sqrt(dh)
    k_bf = k.astype(jnp.bfloat16)
    v_bf = v.astype(jnp.bfloat16)

    for h in range(num_heads):
        lo, hi = h * dh, (h + 1) * dh
        qh = q_bf[:, lo:hi]                        # (TQ, dh)
        kh = k_bf[:, lo:hi]                        # (Sk, dh)
        vh = v_bf[:, lo:hi]                        # (Sk, dh)

        # scores: (TQ, Sk) = qh . kh^T  (contraction over dh, no explicit .T)
        s = lax.dot_general(qh, kh, (((1,), (1,)), ((), ())),
                            preferred_element_type=jnp.float32)
        # numerically stable softmax, normalization deferred past the PV matmul
        s = s - jnp.max(s, axis=-1, keepdims=True)
        e = jnp.exp(s)
        denom = jnp.sum(e, axis=-1, keepdims=True)            # (TQ, 1) fp32

        ctx_h = jnp.dot(e.astype(jnp.bfloat16), vh,
                        preferred_element_type=jnp.float32)   # (TQ, dh)
        ctx_h = ctx_h * pl.reciprocal(denom, approx=True)     # EUP, not VPU divide
        ctx_ref[:, lo:hi] = ctx_h.astype(jnp.bfloat16)

    # Single full-depth output projection over all heads at once.
    out = jnp.dot(ctx_ref[...], wo_ref[...],
                  preferred_element_type=jnp.float32) + bo_ref[...]
    o_ref[0] = out


def multihead_attention(query, kv, params, *, num_heads):
    """Batch-first MHA matching torch.nn.MultiheadAttention (dropout=0).

    query: (B, Sq, D), kv: (B, Sk, D).  Returns (B, Sq, D) fp32.
    Activations are fed to the MXU in bf16 (fp32 accumulation).
    """
    wq, bq, wk, bk, wv, bv, wo, bo = params
    del bk  # K bias is a no-op for softmax attention (shift invariance)
    B, Sq, D = query.shape
    _, Sk, _ = kv.shape
    assert D % num_heads == 0
    assert Sq % 8 == 0 and Sk % 8 == 0, "seq lengths must be sublane-aligned"

    # Cap the query tile at 64 rows once the key side is large, to avoid
    # vreg spills from the (TQ, Sk) fp32 score temporaries.
    cap = 128 if Sk < 128 else 64
    TQ = Sq if Sq <= cap else cap
    assert Sq % TQ == 0, "Sq must be a multiple of the query tile"
    nq = Sq // TQ

    # Activations + weights -> bf16 once here (halves DMA traffic); biases fp32.
    q_b = query.astype(jnp.bfloat16)
    kv_b = kv.astype(jnp.bfloat16)
    wq_b, wk_b, wv_b, wo_b = (w.astype(jnp.bfloat16) for w in (wq, wk, wv, wo))
    bq_r, bv_r, bo_r = (b.reshape(1, D).astype(jnp.float32)
                        for b in (bq, bv, bo))

    w_spec = pl.BlockSpec((D, D), lambda b, qi: (0, 0))   # constant -> resident
    b_spec = pl.BlockSpec((1, D), lambda b, qi: (0, 0))

    return pl.pallas_call(
        functools.partial(_mha_kernel, num_heads=num_heads),
        out_shape=jax.ShapeDtypeStruct((B, Sq, D), jnp.float32),
        grid_spec=pltpu.PrefetchScalarGridSpec(
            num_scalar_prefetch=0,
            grid=(B, nq),
            in_specs=[
                pl.BlockSpec((1, TQ, D), lambda b, qi: (b, qi, 0)),
                pl.BlockSpec((1, Sk, D), lambda b, qi: (b, 0, 0)),
                w_spec, b_spec,   # W_q, b_q
                w_spec,           # W_k          (no b_k)
                w_spec, b_spec,   # W_v, b_v
                w_spec, b_spec,   # W_o, b_o
            ],
            out_specs=pl.BlockSpec((1, TQ, D), lambda b, qi: (b, qi, 0)),
            scratch_shapes=[pltpu.VMEM((TQ, D), jnp.bfloat16)],
        ),
        compiler_params=pltpu.CompilerParams(
            dimension_semantics=("parallel", "parallel"),
            vmem_limit_bytes=VMEM_LIMIT),
    )(q_b, kv_b, wq_b, bq_r, wk_b, wv_b, bv_r, wo_b, bo_r)


# ------------------------------ DUMA layer -----------------------------------
def duma_layer_forward(qa_seq, p_seq, params, *, num_heads,
                       qa_mask=None, p_mask=None):
    """Forward pass of DUMA_Layer, batch-first in and out.

    qa_seq: (B, S_qa, D), p_seq: (B, S_p, D).
    Returns (enc_output_qa: (B, S_p, D), enc_output_p: (B, S_qa, D)).
    """
    # The original forward never uses the masks; reject non-trivial ones.
    assert qa_mask is None and p_mask is None, "masks are not supported"
    # attn_qa: query = p, key = value = qa
    enc_qa = multihead_attention(p_seq, qa_seq, params["attn_qa"],
                                 num_heads=num_heads)
    # attn_p: query = qa, key = value = p
    enc_p = multihead_attention(qa_seq, p_seq, params["attn_p"],
                                num_heads=num_heads)
    return enc_qa, enc_p


# ------------------------------ parameters -----------------------------------
def init_mha_params(key, d_model):
    ks = jax.random.split(key, 8)
    wscale = (1.0 / d_model) ** 0.5
    w = lambda k: jax.random.normal(k, (d_model, d_model), jnp.float32) * wscale
    b = lambda k: jax.random.normal(k, (d_model,), jnp.float32) * 0.01
    # (W_q, b_q, W_k, b_k, W_v, b_v, W_o, b_o); weights are (in, out).
    return (w(ks[0]), b(ks[1]), w(ks[2]), b(ks[3]),
            w(ks[4]), b(ks[5]), w(ks[6]), b(ks[7]))


def init_params(key, d_model):
    k1, k2 = jax.random.split(key)
    return {"attn_qa": init_mha_params(k1, d_model),
            "attn_p": init_mha_params(k2, d_model)}


# --------------------------- pure-JAX reference ------------------------------
def _mha_reference(query, kv, params, num_heads):
    wq, bq, wk, bk, wv, bv, wo, bo = params
    B, Sq, D = query.shape
    dh = D // num_heads
    q = query @ wq + bq
    k = kv @ wk + bk
    v = kv @ wv + bv
    q = q.reshape(B, Sq, num_heads, dh).transpose(0, 2, 1, 3)
    k = k.reshape(B, -1, num_heads, dh).transpose(0, 2, 1, 3)
    v = v.reshape(B, -1, num_heads, dh).transpose(0, 2, 1, 3)
    s = jnp.einsum("bhqd,bhkd->bhqk", q, k) / (dh ** 0.5)
    p = jax.nn.softmax(s, axis=-1)
    ctx = jnp.einsum("bhqk,bhkd->bhqd", p, v)
    ctx = ctx.transpose(0, 2, 1, 3).reshape(B, Sq, D)
    return ctx @ wo + bo


if __name__ == "__main__":
    key = jax.random.PRNGKey(0)
    B, S_QA, S_P, D, H = 2, 64, 32, 128, 4
    k_qa, k_p, k_params = jax.random.split(key, 3)

    qa = jax.random.normal(k_qa, (B, S_QA, D), jnp.float32)
    p = jax.random.normal(k_p, (B, S_P, D), jnp.float32)
    params = init_params(k_params, D)

    fwd = jax.jit(functools.partial(duma_layer_forward, num_heads=H))
    enc_qa, enc_p = fwd(qa, p, params)
    (enc_qa, enc_p) = jax.block_until_ready((enc_qa, enc_p))

    assert enc_qa.shape == (B, S_P, D), enc_qa.shape
    assert enc_p.shape == (B, S_QA, D), enc_p.shape
    assert bool(jnp.all(jnp.isfinite(enc_qa)))
    assert bool(jnp.all(jnp.isfinite(enc_p)))

    # fp32 reference (kernel uses bf16 MXU operands -> loose tolerance).
    ref_qa = _mha_reference(p, qa, params["attn_qa"], H)
    ref_p = _mha_reference(qa, p, params["attn_p"], H)
    assert float(jnp.max(jnp.abs(enc_qa - ref_qa))) < 0.2
    assert float(jnp.max(jnp.abs(enc_p - ref_p))) < 0.2

    print("KERNEL_OK")
</pallas_src>

<mosaic_0001>
module attributes {stable_mosaic.version = 11 : i64} {
  func.func @_mha_kernel(%arg0: i32, %arg1: i32, %arg2: memref<1x64x128xbf16, #tpu.memory_space<vmem>>, %arg3: memref<1x32x128xbf16, #tpu.memory_space<vmem>>, %arg4: memref<128x128xbf16, #tpu.memory_space<vmem>>, %arg5: memref<1x128xf32, #tpu.memory_space<vmem>>, %arg6: memref<128x128xbf16, #tpu.memory_space<vmem>>, %arg7: memref<128x128xbf16, #tpu.memory_space<vmem>>, %arg8: memref<1x128xf32, #tpu.memory_space<vmem>>, %arg9: memref<128x128xbf16, #tpu.memory_space<vmem>>, %arg10: memref<1x128xf32, #tpu.memory_space<vmem>>, %arg11: memref<1x64x128xf32, #tpu.memory_space<vmem>>, %arg12: memref<64x128xbf16, #tpu.memory_space<vmem>>) attributes {dimension_semantics = [#tpu.dimension_semantics<parallel>, #tpu.dimension_semantics<parallel>], iteration_bounds = array<i64: 2, 1>, scalar_prefetch = 0 : i64, scratch_operands = 1 : i64, tpu.core_type = #tpu.core_type<tc>, window_params = [{transform_indices = @transform_0, window_bounds = array<i64: 1, 64, 128>}, {transform_indices = @transform_1, window_bounds = array<i64: 1, 32, 128>}, {pipeline_mode = #tpu.pipeline_mode<synchronous>, transform_indices = @transform_2, window_bounds = array<i64: 128, 128>}, {pipeline_mode = #tpu.pipeline_mode<synchronous>, transform_indices = @transform_3, window_bounds = array<i64: 1, 128>}, {pipeline_mode = #tpu.pipeline_mode<synchronous>, transform_indices = @transform_4, window_bounds = array<i64: 128, 128>}, {pipeline_mode = #tpu.pipeline_mode<synchronous>, transform_indices = @transform_5, window_bounds = array<i64: 128, 128>}, {pipeline_mode = #tpu.pipeline_mode<synchronous>, transform_indices = @transform_6, window_bounds = array<i64: 1, 128>}, {pipeline_mode = #tpu.pipeline_mode<synchronous>, transform_indices = @transform_7, window_bounds = array<i64: 128, 128>}, {pipeline_mode = #tpu.pipeline_mode<synchronous>, transform_indices = @transform_8, window_bounds = array<i64: 1, 128>}, {transform_indices = @transform_9, window_bounds = array<i64: 1, 64, 128>}]} {
    %c0 = arith.constant 0 : index
    %c0_0 = arith.constant 0 : index
    %c0_1 = arith.constant 0 : index
    %0 = vector.load %arg2[%c0, %c0_0, %c0_1] : memref<1x64x128xbf16, #tpu.memory_space<vmem>>, vector<1x64x128xbf16>
    %1 = vector.shape_cast %0 : vector<1x64x128xbf16> to vector<64x128xbf16>
    %c0_2 = arith.constant 0 : index
    %c0_3 = arith.constant 0 : index
    %c0_4 = arith.constant 0 : index
    %2 = vector.load %arg3[%c0_2, %c0_3, %c0_4] : memref<1x32x128xbf16, #tpu.memory_space<vmem>>, vector<1x32x128xbf16>
    %3 = vector.shape_cast %2 : vector<1x32x128xbf16> to vector<32x128xbf16>
    %c0_5 = arith.constant 0 : index
    %c0_6 = arith.constant 0 : index
    %4 = vector.load %arg4[%c0_5, %c0_6] : memref<128x128xbf16, #tpu.memory_space<vmem>>, vector<128x128xbf16>
    %cst = arith.constant dense<0.000000e+00> : vector<64x128xf32>
    %5 = tpu.matmul %1, %4, %cst {dimension_numbers = #tpu.dot_dimension_numbers<[1], [0], [0], [1], [0, 0, 1, 1], [], []>} : vector<64x128xbf16>, vector<128x128xbf16>, vector<64x128xf32> -> vector<64x128xf32>
    %c0_7 = arith.constant 0 : index
    %c0_8 = arith.constant 0 : index
    %6 = vector.load %arg5[%c0_7, %c0_8] : memref<1x128xf32, #tpu.memory_space<vmem>>, vector<1x128xf32>
    %7 = vector.broadcast %6 : vector<1x128xf32> to vector<64x128xf32>
    %8 = arith.addf %5, %7 : vector<64x128xf32>
    %c0_9 = arith.constant 0 : index
    %c0_10 = arith.constant 0 : index
    %9 = vector.load %arg6[%c0_9, %c0_10] : memref<128x128xbf16, #tpu.memory_space<vmem>>, vector<128x128xbf16>
    %cst_11 = arith.constant dense<0.000000e+00> : vector<32x128xf32>
    %10 = tpu.matmul %3, %9, %cst_11 {dimension_numbers = #tpu.dot_dimension_numbers<[1], [0], [0], [1], [0, 0, 1, 1], [], []>} : vector<32x128xbf16>, vector<128x128xbf16>, vector<32x128xf32> -> vector<32x128xf32>
    %c0_12 = arith.constant 0 : index
    %c0_13 = arith.constant 0 : index
    %11 = vector.load %arg7[%c0_12, %c0_13] : memref<128x128xbf16, #tpu.memory_space<vmem>>, vector<128x128xbf16>
    %cst_14 = arith.constant dense<0.000000e+00> : vector<32x128xf32>
    %12 = tpu.matmul %3, %11, %cst_14 {dimension_numbers = #tpu.dot_dimension_numbers<[1], [0], [0], [1], [0, 0, 1, 1], [], []>} : vector<32x128xbf16>, vector<128x128xbf16>, vector<32x128xf32> -> vector<32x128xf32>
    %c0_15 = arith.constant 0 : index
    %c0_16 = arith.constant 0 : index
    %13 = vector.load %arg8[%c0_15, %c0_16] : memref<1x128xf32, #tpu.memory_space<vmem>>, vector<1x128xf32>
    %14 = vector.broadcast %13 : vector<1x128xf32> to vector<32x128xf32>
    %15 = arith.addf %12, %14 : vector<32x128xf32>
    %cst_17 = arith.constant 0.176776692 : f32
    %16 = vector.broadcast %cst_17 : f32 to vector<64x128xf32>
    %17 = arith.mulf %8, %16 : vector<64x128xf32>
    %18 = arith.truncf %17 : vector<64x128xf32> to vector<64x128xbf16>
    %19 = arith.truncf %10 : vector<32x128xf32> to vector<32x128xbf16>
    %20 = arith.truncf %15 : vector<32x128xf32> to vector<32x128xbf16>
    %21 = vector.extract_strided_slice %18 {offsets = [0, 0], sizes = [64, 32], strides = [1, 1]} : vector<64x128xbf16> to vector<64x32xbf16>
    %22 = vector.extract_strided_slice %19 {offsets = [0, 0], sizes = [32, 32], strides = [1, 1]} : vector<32x128xbf16> to vector<32x32xbf16>
    %23 = vector.extract_strided_slice %20 {offsets = [0, 0], sizes = [32, 32], strides = [1, 1]} : vector<32x128xbf16> to vector<32x32xbf16>
    %cst_18 = arith.constant dense<0.000000e+00> : vector<64x32xf32>
    %24 = tpu.matmul %21, %22, %cst_18 {dimension_numbers = #tpu.dot_dimension_numbers<[1], [1], [0], [0], [0, 0, 1, 0], [], []>} : vector<64x32xbf16>, vector<32x32xbf16>, vector<64x32xf32> -> vector<64x32xf32>
    %cst_19 = arith.constant dense<0xFF800000> : vector<64xf32>
    %25 = vector.multi_reduction <maximumf>, %24, %cst_19 [1] : vector<64x32xf32> to vector<64xf32>
    %26 = vector.shape_cast %25 : vector<64xf32> to vector<64x1xf32>
    %27 = vector.broadcast %26 : vector<64x1xf32> to vector<64x32xf32>
    %28 = arith.subf %24, %27 : vector<64x32xf32>
    %29 = math.exp %28 : vector<64x32xf32>
    %cst_20 = arith.constant dense<0.000000e+00> : vector<64xf32>
    %30 = vector.multi_reduction <add>, %29, %cst_20 [1] : vector<64x32xf32> to vector<64xf32>
    %31 = vector.shape_cast %30 : vector<64xf32> to vector<64x1xf32>
    %32 = arith.truncf %29 : vector<64x32xf32> to vector<64x32xbf16>
    %cst_21 = arith.constant dense<0.000000e+00> : vector<64x32xf32>
    %33 = tpu.matmul %32, %23, %cst_21 {dimension_numbers = #tpu.dot_dimension_numbers<[1], [0], [0], [1], [0, 0, 1, 1], [], []>} : vector<64x32xbf16>, vector<32x32xbf16>, vector<64x32xf32> -> vector<64x32xf32>
    %34 = tpu.reciprocal %31 {approx = true} : vector<64x1xf32> -> vector<64x1xf32>
    %35 = vector.broadcast %34 : vector<64x1xf32> to vector<64x32xf32>
    %36 = arith.mulf %33, %35 : vector<64x32xf32>
    %37 = arith.truncf %36 : vector<64x32xf32> to vector<64x32xbf16>
    %c0_22 = arith.constant 0 : index
    %c0_23 = arith.constant 0 : index
    %38 = vector.load %arg12[%c0_22, %c0_23] : memref<64x128xbf16, #tpu.memory_space<vmem>>, vector<64x32xbf16>
    tpu.vector_store %arg12[%c0_22, %c0_23], %37 {strides = array<i32>} : memref<64x128xbf16, #tpu.memory_space<vmem>>, vector<64x32xbf16>,
    %39 = vector.extract_strided_slice %18 {offsets = [0, 32], sizes = [64, 32], strides = [1, 1]} : vector<64x128xbf16> to vector<64x32xbf16>
    %40 = vector.extract_strided_slice %19 {offsets = [0, 32], sizes = [32, 32], strides = [1, 1]} : vector<32x128xbf16> to vector<32x32xbf16>
    %41 = vector.extract_strided_slice %20 {offsets = [0, 32], sizes = [32, 32], strides = [1, 1]} : vector<32x128xbf16> to vector<32x32xbf16>
    %cst_24 = arith.constant dense<0.000000e+00> : vector<64x32xf32>
    %42 = tpu.matmul %39, %40, %cst_24 {dimension_numbers = #tpu.dot_dimension_numbers<[1], [1], [0], [0], [0, 0, 1, 0], [], []>} : vector<64x32xbf16>, vector<32x32xbf16>, vector<64x32xf32> -> vector<64x32xf32>
    %cst_25 = arith.constant dense<0xFF800000> : vector<64xf32>
    %43 = vector.multi_reduction <maximumf>, %42, %cst_25 [1] : vector<64x32xf32> to vector<64xf32>
    %44 = vector.shape_cast %43 : vector<64xf32> to vector<64x1xf32>
    %45 = vector.broadcast %44 : vector<64x1xf32> to vector<64x32xf32>
    %46 = arith.subf %42, %45 : vector<64x32xf32>
    %47 = math.exp %46 : vector<64x32xf32>
    %cst_26 = arith.constant dense<0.000000e+00> : vector<64xf32>
    %48 = vector.multi_reduction <add>, %47, %cst_26 [1] : vector<64x32xf32> to vector<64xf32>
    %49 = vector.shape_cast %48 : vector<64xf32> to vector<64x1xf32>
    %50 = arith.truncf %47 : vector<64x32xf32> to vector<64x32xbf16>
    %cst_27 = arith.constant dense<0.000000e+00> : vector<64x32xf32>
    %51 = tpu.matmul %50, %41, %cst_27 {dimension_numbers = #tpu.dot_dimension_numbers<[1], [0], [0], [1], [0, 0, 1, 1], [], []>} : vector<64x32xbf16>, vector<32x32xbf16>, vector<64x32xf32> -> vector<64x32xf32>
    %52 = tpu.reciprocal %49 {approx = true} : vector<64x1xf32> -> vector<64x1xf32>
    %53 = vector.broadcast %52 : vector<64x1xf32> to vector<64x32xf32>
    %54 = arith.mulf %51, %53 : vector<64x32xf32>
    %55 = arith.truncf %54 : vector<64x32xf32> to vector<64x32xbf16>
    %c0_28 = arith.constant 0 : index
    %c32 = arith.constant 32 : index
    %56 = vector.load %arg12[%c0_28, %c32] : memref<64x128xbf16, #tpu.memory_space<vmem>>, vector<64x32xbf16>
    tpu.vector_store %arg12[%c0_28, %c32], %55 {strides = array<i32>} : memref<64x128xbf16, #tpu.memory_space<vmem>>, vector<64x32xbf16>,
    %57 = vector.extract_strided_slice %18 {offsets = [0, 64], sizes = [64, 32], strides = [1, 1]} : vector<64x128xbf16> to vector<64x32xbf16>
    %58 = vector.extract_strided_slice %19 {offsets = [0, 64], sizes = [32, 32], strides = [1, 1]} : vector<32x128xbf16> to vector<32x32xbf16>
    %59 = vector.extract_strided_slice %20 {offsets = [0, 64], sizes = [32, 32], strides = [1, 1]} : vector<32x128xbf16> to vector<32x32xbf16>
    %cst_29 = arith.constant dense<0.000000e+00> : vector<64x32xf32>
    %60 = tpu.matmul %57, %58, %cst_29 {dimension_numbers = #tpu.dot_dimension_numbers<[1], [1], [0], [0], [0, 0, 1, 0], [], []>} : vector<64x32xbf16>, vector<32x32xbf16>, vector<64x32xf32> -> vector<64x32xf32>
    %cst_30 = arith.constant dense<0xFF800000> : vector<64xf32>
    %61 = vector.multi_reduction <maximumf>, %60, %cst_30 [1] : vector<64x32xf32> to vector<64xf32>
    %62 = vector.shape_cast %61 : vector<64xf32> to vector<64x1xf32>
    %63 = vector.broadcast %62 : vector<64x1xf32> to vector<64x32xf32>
    %64 = arith.subf %60, %63 : vector<64x32xf32>
    %65 = math.exp %64 : vector<64x32xf32>
    %cst_31 = arith.constant dense<0.000000e+00> : vector<64xf32>
    %66 = vector.multi_reduction <add>, %65, %cst_31 [1] : vector<64x32xf32> to vector<64xf32>
    %67 = vector.shape_cast %66 : vector<64xf32> to vector<64x1xf32>
    %68 = arith.truncf %65 : vector<64x32xf32> to vector<64x32xbf16>
    %cst_32 = arith.constant dense<0.000000e+00> : vector<64x32xf32>
    %69 = tpu.matmul %68, %59, %cst_32 {dimension_numbers = #tpu.dot_dimension_numbers<[1], [0], [0], [1], [0, 0, 1, 1], [], []>} : vector<64x32xbf16>, vector<32x32xbf16>, vector<64x32xf32> -> vector<64x32xf32>
    %70 = tpu.reciprocal %67 {approx = true} : vector<64x1xf32> -> vector<64x1xf32>
    %71 = vector.broadcast %70 : vector<64x1xf32> to vector<64x32xf32>
    %72 = arith.mulf %69, %71 : vector<64x32xf32>
    %73 = arith.truncf %72 : vector<64x32xf32> to vector<64x32xbf16>
    %c0_33 = arith.constant 0 : index
    %c64 = arith.constant 64 : index
    %74 = vector.load %arg12[%c0_33, %c64] : memref<64x128xbf16, #tpu.memory_space<vmem>>, vector<64x32xbf16>
    tpu.vector_store %arg12[%c0_33, %c64], %73 {strides = array<i32>} : memref<64x128xbf16, #tpu.memory_space<vmem>>, vector<64x32xbf16>,
    %75 = vector.extract_strided_slice %18 {offsets = [0, 96], sizes = [64, 32], strides = [1, 1]} : vector<64x128xbf16> to vector<64x32xbf16>
    %76 = vector.extract_strided_slice %19 {offsets = [0, 96], sizes = [32, 32], strides = [1, 1]} : vector<32x128xbf16> to vector<32x32xbf16>
    %77 = vector.extract_strided_slice %20 {offsets = [0, 96], sizes = [32, 32], strides = [1, 1]} : vector<32x128xbf16> to vector<32x32xbf16>
    %cst_34 = arith.constant dense<0.000000e+00> : vector<64x32xf32>
    %78 = tpu.matmul %75, %76, %cst_34 {dimension_numbers = #tpu.dot_dimension_numbers<[1], [1], [0], [0], [0, 0, 1, 0], [], []>} : vector<64x32xbf16>, vector<32x32xbf16>, vector<64x32xf32> -> vector<64x32xf32>
    %cst_35 = arith.constant dense<0xFF800000> : vector<64xf32>
    %79 = vector.multi_reduction <maximumf>, %78, %cst_35 [1] : vector<64x32xf32> to vector<64xf32>
    %80 = vector.shape_cast %79 : vector<64xf32> to vector<64x1xf32>
    %81 = vector.broadcast %80 : vector<64x1xf32> to vector<64x32xf32>
    %82 = arith.subf %78, %81 : vector<64x32xf32>
    %83 = math.exp %82 : vector<64x32xf32>
    %cst_36 = arith.constant dense<0.000000e+00> : vector<64xf32>
    %84 = vector.multi_reduction <add>, %83, %cst_36 [1] : vector<64x32xf32> to vector<64xf32>
    %85 = vector.shape_cast %84 : vector<64xf32> to vector<64x1xf32>
    %86 = arith.truncf %83 : vector<64x32xf32> to vector<64x32xbf16>
    %cst_37 = arith.constant dense<0.000000e+00> : vector<64x32xf32>
    %87 = tpu.matmul %86, %77, %cst_37 {dimension_numbers = #tpu.dot_dimension_numbers<[1], [0], [0], [1], [0, 0, 1, 1], [], []>} : vector<64x32xbf16>, vector<32x32xbf16>, vector<64x32xf32> -> vector<64x32xf32>
    %88 = tpu.reciprocal %85 {approx = true} : vector<64x1xf32> -> vector<64x1xf32>
    %89 = vector.broadcast %88 : vector<64x1xf32> to vector<64x32xf32>
    %90 = arith.mulf %87, %89 : vector<64x32xf32>
    %91 = arith.truncf %90 : vector<64x32xf32> to vector<64x32xbf16>
    %c0_38 = arith.constant 0 : index
    %c96 = arith.constant 96 : index
    %92 = vector.load %arg12[%c0_38, %c96] : memref<64x128xbf16, #tpu.memory_space<vmem>>, vector<64x32xbf16>
    tpu.vector_store %arg12[%c0_38, %c96], %91 {strides = array<i32>} : memref<64x128xbf16, #tpu.memory_space<vmem>>, vector<64x32xbf16>,
    %c0_39 = arith.constant 0 : index
    %c0_40 = arith.constant 0 : index
    %93 = vector.load %arg12[%c0_39, %c0_40] : memref<64x128xbf16, #tpu.memory_space<vmem>>, vector<64x128xbf16>
    %c0_41 = arith.constant 0 : index
    %c0_42 = arith.constant 0 : index
    %94 = vector.load %arg9[%c0_41, %c0_42] : memref<128x128xbf16, #tpu.memory_space<vmem>>, vector<128x128xbf16>
    %cst_43 = arith.constant dense<0.000000e+00> : vector<64x128xf32>
    %95 = tpu.matmul %93, %94, %cst_43 {dimension_numbers = #tpu.dot_dimension_numbers<[1], [0], [0], [1], [0, 0, 1, 1], [], []>} : vector<64x128xbf16>, vector<128x128xbf16>, vector<64x128xf32> -> vector<64x128xf32>
    %c0_44 = arith.constant 0 : index
    %c0_45 = arith.constant 0 : index
    %96 = vector.load %arg10[%c0_44, %c0_45] : memref<1x128xf32, #tpu.memory_space<vmem>>, vector<1x128xf32>
    %97 = vector.broadcast %96 : vector<1x128xf32> to vector<64x128xf32>
    %98 = arith.addf %95, %97 : vector<64x128xf32>
    %c0_46 = arith.constant 0 : index
    %c0_47 = arith.constant 0 : index
    %c0_48 = arith.constant 0 : index
    %99 = vector.load %arg11[%c0_46, %c0_47, %c0_48] : memref<1x64x128xf32, #tpu.memory_space<vmem>>, vector<1x64x128xf32>
    %100 = vector.shape_cast %99 : vector<1x64x128xf32> to vector<64x128xf32>
    %101 = vector.shape_cast %98 : vector<64x128xf32> to vector<1x64x128xf32>
    tpu.vector_store %arg11[%c0_46, %c0_47, %c0_48], %101 {strides = array<i32>} : memref<1x64x128xf32, #tpu.memory_space<vmem>>, vector<1x64x128xf32>,
    return
  }
  func.func @transform_0(%arg0: i32, %arg1: i32) -> (i32, i32, i32) {
    %c0_i32 = arith.constant 0 : i32
    %c0_i32_0 = arith.constant 0 : i32
    return %arg0, %arg1, %c0_i32 : i32, i32, i32
  }
  func.func @transform_1(%arg0: i32, %arg1: i32) -> (i32, i32, i32) {
    %c0_i32 = arith.constant 0 : i32
    %c0_i32_0 = arith.constant 0 : i32
    %c0_i32_1 = arith.constant 0 : i32
    return %arg0, %c0_i32, %c0_i32_0 : i32, i32, i32
  }
  func.func @transform_2(%arg0: i32, %arg1: i32) -> (i32, i32) {
    %c0_i32 = arith.constant 0 : i32
    %c0_i32_0 = arith.constant 0 : i32
    %c0_i32_1 = arith.constant 0 : i32
    return %c0_i32, %c0_i32_0 : i32, i32
  }
  func.func @transform_3(%arg0: i32, %arg1: i32) -> (i32, i32) {
    %c0_i32 = arith.constant 0 : i32
    %c0_i32_0 = arith.constant 0 : i32
    %c0_i32_1 = arith.constant 0 : i32
    return %c0_i32, %c0_i32_0 : i32, i32
  }
  func.func @transform_4(%arg0: i32, %arg1: i32) -> (i32, i32) {
    %c0_i32 = arith.constant 0 : i32
    %c0_i32_0 = arith.constant 0 : i32
    %c0_i32_1 = arith.constant 0 : i32
    return %c0_i32, %c0_i32_0 : i32, i32
  }
  func.func @transform_5(%arg0: i32, %arg1: i32) -> (i32, i32) {
    %c0_i32 = arith.constant 0 : i32
    %c0_i32_0 = arith.constant 0 : i32
    %c0_i32_1 = arith.constant 0 : i32
    return %c0_i32, %c0_i32_0 : i32, i32
  }
  func.func @transform_6(%arg0: i32, %arg1: i32) -> (i32, i32) {
    %c0_i32 = arith.constant 0 : i32
    %c0_i32_0 = arith.constant 0 : i32
    %c0_i32_1 = arith.constant 0 : i32
    return %c0_i32, %c0_i32_0 : i32, i32
  }
  func.func @transform_7(%arg0: i32, %arg1: i32) -> (i32, i32) {
    %c0_i32 = arith.constant 0 : i32
    %c0_i32_0 = arith.constant 0 : i32
    %c0_i32_1 = arith.constant 0 : i32
    return %c0_i32, %c0_i32_0 : i32, i32
  }
  func.func @transform_8(%arg0: i32, %arg1: i32) -> (i32, i32) {
    %c0_i32 = arith.constant 0 : i32
    %c0_i32_0 = arith.constant 0 : i32
    %c0_i32_1 = arith.constant 0 : i32
    return %c0_i32, %c0_i32_0 : i32, i32
  }
  func.func @transform_9(%arg0: i32, %arg1: i32) -> (i32, i32, i32) {
    %c0_i32 = arith.constant 0 : i32
    %c0_i32_0 = arith.constant 0 : i32
    return %arg0, %arg1, %c0_i32 : i32, i32, i32
  }
}

module attributes {stable_mosaic.version = 11 : i64} {
  func.func @_mha_kernel(%arg0: i32, %arg1: i32, %arg2: memref<1x32x128xbf16, #tpu.memory_space<vmem>>, %arg3: memref<1x64x128xbf16, #tpu.memory_space<vmem>>, %arg4: memref<128x128xbf16, #tpu.memory_space<vmem>>, %arg5: memref<1x128xf32, #tpu.memory_space<vmem>>, %arg6: memref<128x128xbf16, #tpu.memory_space<vmem>>, %arg7: memref<128x128xbf16, #tpu.memory_space<vmem>>, %arg8: memref<1x128xf32, #tpu.memory_space<vmem>>, %arg9: memref<128x128xbf16, #tpu.memory_space<vmem>>, %arg10: memref<1x128xf32, #tpu.memory_space<vmem>>, %arg11: memref<1x32x128xf32, #tpu.memory_space<vmem>>, %arg12: memref<32x128xbf16, #tpu.memory_space<vmem>>) attributes {dimension_semantics = [#tpu.dimension_semantics<parallel>, #tpu.dimension_semantics<parallel>], iteration_bounds = array<i64: 2, 1>, scalar_prefetch = 0 : i64, scratch_operands = 1 : i64, tpu.core_type = #tpu.core_type<tc>, window_params = [{transform_indices = @transform_0, window_bounds = array<i64: 1, 32, 128>}, {transform_indices = @transform_1, window_bounds = array<i64: 1, 64, 128>}, {pipeline_mode = #tpu.pipeline_mode<synchronous>, transform_indices = @transform_2, window_bounds = array<i64: 128, 128>}, {pipeline_mode = #tpu.pipeline_mode<synchronous>, transform_indices = @transform_3, window_bounds = array<i64: 1, 128>}, {pipeline_mode = #tpu.pipeline_mode<synchronous>, transform_indices = @transform_4, window_bounds = array<i64: 128, 128>}, {pipeline_mode = #tpu.pipeline_mode<synchronous>, transform_indices = @transform_5, window_bounds = array<i64: 128, 128>}, {pipeline_mode = #tpu.pipeline_mode<synchronous>, transform_indices = @transform_6, window_bounds = array<i64: 1, 128>}, {pipeline_mode = #tpu.pipeline_mode<synchronous>, transform_indices = @transform_7, window_bounds = array<i64: 128, 128>}, {pipeline_mode = #tpu.pipeline_mode<synchronous>, transform_indices = @transform_8, window_bounds = array<i64: 1, 128>}, {transform_indices = @transform_9, window_bounds = array<i64: 1, 32, 128>}]} {
    %c0 = arith.constant 0 : index
    %c0_0 = arith.constant 0 : index
    %c0_1 = arith.constant 0 : index
    %0 = vector.load %arg2[%c0, %c0_0, %c0_1] : memref<1x32x128xbf16, #tpu.memory_space<vmem>>, vector<1x32x128xbf16>
    %1 = vector.shape_cast %0 : vector<1x32x128xbf16> to vector<32x128xbf16>
    %c0_2 = arith.constant 0 : index
    %c0_3 = arith.constant 0 : index
    %c0_4 = arith.constant 0 : index
    %2 = vector.load %arg3[%c0_2, %c0_3, %c0_4] : memref<1x64x128xbf16, #tpu.memory_space<vmem>>, vector<1x64x128xbf16>
    %3 = vector.shape_cast %2 : vector<1x64x128xbf16> to vector<64x128xbf16>
    %c0_5 = arith.constant 0 : index
    %c0_6 = arith.constant 0 : index
    %4 = vector.load %arg4[%c0_5, %c0_6] : memref<128x128xbf16, #tpu.memory_space<vmem>>, vector<128x128xbf16>
    %cst = arith.constant dense<0.000000e+00> : vector<32x128xf32>
    %5 = tpu.matmul %1, %4, %cst {dimension_numbers = #tpu.dot_dimension_numbers<[1], [0], [0], [1], [0, 0, 1, 1], [], []>} : vector<32x128xbf16>, vector<128x128xbf16>, vector<32x128xf32> -> vector<32x128xf32>
    %c0_7 = arith.constant 0 : index
    %c0_8 = arith.constant 0 : index
    %6 = vector.load %arg5[%c0_7, %c0_8] : memref<1x128xf32, #tpu.memory_space<vmem>>, vector<1x128xf32>
    %7 = vector.broadcast %6 : vector<1x128xf32> to vector<32x128xf32>
    %8 = arith.addf %5, %7 : vector<32x128xf32>
    %c0_9 = arith.constant 0 : index
    %c0_10 = arith.constant 0 : index
    %9 = vector.load %arg6[%c0_9, %c0_10] : memref<128x128xbf16, #tpu.memory_space<vmem>>, vector<128x128xbf16>
    %cst_11 = arith.constant dense<0.000000e+00> : vector<64x128xf32>
    %10 = tpu.matmul %3, %9, %cst_11 {dimension_numbers = #tpu.dot_dimension_numbers<[1], [0], [0], [1], [0, 0, 1, 1], [], []>} : vector<64x128xbf16>, vector<128x128xbf16>, vector<64x128xf32> -> vector<64x128xf32>
    %c0_12 = arith.constant 0 : index
    %c0_13 = arith.constant 0 : index
    %11 = vector.load %arg7[%c0_12, %c0_13] : memref<128x128xbf16, #tpu.memory_space<vmem>>, vector<128x128xbf16>
    %cst_14 = arith.constant dense<0.000000e+00> : vector<64x128xf32>
    %12 = tpu.matmul %3, %11, %cst_14 {dimension_numbers = #tpu.dot_dimension_numbers<[1], [0], [0], [1], [0, 0, 1, 1], [], []>} : vector<64x128xbf16>, vector<128x128xbf16>, vector<64x128xf32> -> vector<64x128xf32>
    %c0_15 = arith.constant 0 : index
    %c0_16 = arith.constant 0 : index
    %13 = vector.load %arg8[%c0_15, %c0_16] : memref<1x128xf32, #tpu.memory_space<vmem>>, vector<1x128xf32>
    %14 = vector.broadcast %13 : vector<1x128xf32> to vector<64x128xf32>
    %15 = arith.addf %12, %14 : vector<64x128xf32>
    %cst_17 = arith.constant 0.176776692 : f32
    %16 = vector.broadcast %cst_17 : f32 to vector<32x128xf32>
    %17 = arith.mulf %8, %16 : vector<32x128xf32>
    %18 = arith.truncf %17 : vector<32x128xf32> to vector<32x128xbf16>
    %19 = arith.truncf %10 : vector<64x128xf32> to vector<64x128xbf16>
    %20 = arith.truncf %15 : vector<64x128xf32> to vector<64x128xbf16>
    %21 = vector.extract_strided_slice %18 {offsets = [0, 0], sizes = [32, 32], strides = [1, 1]} : vector<32x128xbf16> to vector<32x32xbf16>
    %22 = vector.extract_strided_slice %19 {offsets = [0, 0], sizes = [64, 32], strides = [1, 1]} : vector<64x128xbf16> to vector<64x32xbf16>
    %23 = vector.extract_strided_slice %20 {offsets = [0, 0], sizes = [64, 32], strides = [1, 1]} : vector<64x128xbf16> to vector<64x32xbf16>
    %cst_18 = arith.constant dense<0.000000e+00> : vector<32x64xf32>
    %24 = tpu.matmul %21, %22, %cst_18 {dimension_numbers = #tpu.dot_dimension_numbers<[1], [1], [0], [0], [0, 0, 1, 0], [], []>} : vector<32x32xbf16>, vector<64x32xbf16>, vector<32x64xf32> -> vector<32x64xf32>
    %cst_19 = arith.constant dense<0xFF800000> : vector<32xf32>
    %25 = vector.multi_reduction <maximumf>, %24, %cst_19 [1] : vector<32x64xf32> to vector<32xf32>
    %26 = vector.shape_cast %25 : vector<32xf32> to vector<32x1xf32>
    %27 = vector.broadcast %26 : vector<32x1xf32> to vector<32x64xf32>
    %28 = arith.subf %24, %27 : vector<32x64xf32>
    %29 = math.exp %28 : vector<32x64xf32>
    %cst_20 = arith.constant dense<0.000000e+00> : vector<32xf32>
    %30 = vector.multi_reduction <add>, %29, %cst_20 [1] : vector<32x64xf32> to vector<32xf32>
    %31 = vector.shape_cast %30 : vector<32xf32> to vector<32x1xf32>
    %32 = arith.truncf %29 : vector<32x64xf32> to vector<32x64xbf16>
    %cst_21 = arith.constant dense<0.000000e+00> : vector<32x32xf32>
    %33 = tpu.matmul %32, %23, %cst_21 {dimension_numbers = #tpu.dot_dimension_numbers<[1], [0], [0], [1], [0, 0, 1, 1], [], []>} : vector<32x64xbf16>, vector<64x32xbf16>, vector<32x32xf32> -> vector<32x32xf32>
    %34 = tpu.reciprocal %31 {approx = true} : vector<32x1xf32> -> vector<32x1xf32>
    %35 = vector.broadcast %34 : vector<32x1xf32> to vector<32x32xf32>
    %36 = arith.mulf %33, %35 : vector<32x32xf32>
    %37 = arith.truncf %36 : vector<32x32xf32> to vector<32x32xbf16>
    %c0_22 = arith.constant 0 : index
    %c0_23 = arith.constant 0 : index
    %38 = vector.load %arg12[%c0_22, %c0_23] : memref<32x128xbf16, #tpu.memory_space<vmem>>, vector<32x32xbf16>
    tpu.vector_store %arg12[%c0_22, %c0_23], %37 {strides = array<i32>} : memref<32x128xbf16, #tpu.memory_space<vmem>>, vector<32x32xbf16>,
    %39 = vector.extract_strided_slice %18 {offsets = [0, 32], sizes = [32, 32], strides = [1, 1]} : vector<32x128xbf16> to vector<32x32xbf16>
    %40 = vector.extract_strided_slice %19 {offsets = [0, 32], sizes = [64, 32], strides = [1, 1]} : vector<64x128xbf16> to vector<64x32xbf16>
    %41 = vector.extract_strided_slice %20 {offsets = [0, 32], sizes = [64, 32], strides = [1, 1]} : vector<64x128xbf16> to vector<64x32xbf16>
    %cst_24 = arith.constant dense<0.000000e+00> : vector<32x64xf32>
    %42 = tpu.matmul %39, %40, %cst_24 {dimension_numbers = #tpu.dot_dimension_numbers<[1], [1], [0], [0], [0, 0, 1, 0], [], []>} : vector<32x32xbf16>, vector<64x32xbf16>, vector<32x64xf32> -> vector<32x64xf32>
    %cst_25 = arith.constant dense<0xFF800000> : vector<32xf32>
    %43 = vector.multi_reduction <maximumf>, %42, %cst_25 [1] : vector<32x64xf32> to vector<32xf32>
    %44 = vector.shape_cast %43 : vector<32xf32> to vector<32x1xf32>
    %45 = vector.broadcast %44 : vector<32x1xf32> to vector<32x64xf32>
    %46 = arith.subf %42, %45 : vector<32x64xf32>
    %47 = math.exp %46 : vector<32x64xf32>
    %cst_26 = arith.constant dense<0.000000e+00> : vector<32xf32>
    %48 = vector.multi_reduction <add>, %47, %cst_26 [1] : vector<32x64xf32> to vector<32xf32>
    %49 = vector.shape_cast %48 : vector<32xf32> to vector<32x1xf32>
    %50 = arith.truncf %47 : vector<32x64xf32> to vector<32x64xbf16>
    %cst_27 = arith.constant dense<0.000000e+00> : vector<32x32xf32>
    %51 = tpu.matmul %50, %41, %cst_27 {dimension_numbers = #tpu.dot_dimension_numbers<[1], [0], [0], [1], [0, 0, 1, 1], [], []>} : vector<32x64xbf16>, vector<64x32xbf16>, vector<32x32xf32> -> vector<32x32xf32>
    %52 = tpu.reciprocal %49 {approx = true} : vector<32x1xf32> -> vector<32x1xf32>
    %53 = vector.broadcast %52 : vector<32x1xf32> to vector<32x32xf32>
    %54 = arith.mulf %51, %53 : vector<32x32xf32>
    %55 = arith.truncf %54 : vector<32x32xf32> to vector<32x32xbf16>
    %c0_28 = arith.constant 0 : index
    %c32 = arith.constant 32 : index
    %56 = vector.load %arg12[%c0_28, %c32] : memref<32x128xbf16, #tpu.memory_space<vmem>>, vector<32x32xbf16>
    tpu.vector_store %arg12[%c0_28, %c32], %55 {strides = array<i32>} : memref<32x128xbf16, #tpu.memory_space<vmem>>, vector<32x32xbf16>,
    %57 = vector.extract_strided_slice %18 {offsets = [0, 64], sizes = [32, 32], strides = [1, 1]} : vector<32x128xbf16> to vector<32x32xbf16>
    %58 = vector.extract_strided_slice %19 {offsets = [0, 64], sizes = [64, 32], strides = [1, 1]} : vector<64x128xbf16> to vector<64x32xbf16>
    %59 = vector.extract_strided_slice %20 {offsets = [0, 64], sizes = [64, 32], strides = [1, 1]} : vector<64x128xbf16> to vector<64x32xbf16>
    %cst_29 = arith.constant dense<0.000000e+00> : vector<32x64xf32>
    %60 = tpu.matmul %57, %58, %cst_29 {dimension_numbers = #tpu.dot_dimension_numbers<[1], [1], [0], [0], [0, 0, 1, 0], [], []>} : vector<32x32xbf16>, vector<64x32xbf16>, vector<32x64xf32> -> vector<32x64xf32>
    %cst_30 = arith.constant dense<0xFF800000> : vector<32xf32>
    %61 = vector.multi_reduction <maximumf>, %60, %cst_30 [1] : vector<32x64xf32> to vector<32xf32>
    %62 = vector.shape_cast %61 : vector<32xf32> to vector<32x1xf32>
    %63 = vector.broadcast %62 : vector<32x1xf32> to vector<32x64xf32>
    %64 = arith.subf %60, %63 : vector<32x64xf32>
    %65 = math.exp %64 : vector<32x64xf32>
    %cst_31 = arith.constant dense<0.000000e+00> : vector<32xf32>
    %66 = vector.multi_reduction <add>, %65, %cst_31 [1] : vector<32x64xf32> to vector<32xf32>
    %67 = vector.shape_cast %66 : vector<32xf32> to vector<32x1xf32>
    %68 = arith.truncf %65 : vector<32x64xf32> to vector<32x64xbf16>
    %cst_32 = arith.constant dense<0.000000e+00> : vector<32x32xf32>
    %69 = tpu.matmul %68, %59, %cst_32 {dimension_numbers = #tpu.dot_dimension_numbers<[1], [0], [0], [1], [0, 0, 1, 1], [], []>} : vector<32x64xbf16>, vector<64x32xbf16>, vector<32x32xf32> -> vector<32x32xf32>
    %70 = tpu.reciprocal %67 {approx = true} : vector<32x1xf32> -> vector<32x1xf32>
    %71 = vector.broadcast %70 : vector<32x1xf32> to vector<32x32xf32>
    %72 = arith.mulf %69, %71 : vector<32x32xf32>
    %73 = arith.truncf %72 : vector<32x32xf32> to vector<32x32xbf16>
    %c0_33 = arith.constant 0 : index
    %c64 = arith.constant 64 : index
    %74 = vector.load %arg12[%c0_33, %c64] : memref<32x128xbf16, #tpu.memory_space<vmem>>, vector<32x32xbf16>
    tpu.vector_store %arg12[%c0_33, %c64], %73 {strides = array<i32>} : memref<32x128xbf16, #tpu.memory_space<vmem>>, vector<32x32xbf16>,
    %75 = vector.extract_strided_slice %18 {offsets = [0, 96], sizes = [32, 32], strides = [1, 1]} : vector<32x128xbf16> to vector<32x32xbf16>
    %76 = vector.extract_strided_slice %19 {offsets = [0, 96], sizes = [64, 32], strides = [1, 1]} : vector<64x128xbf16> to vector<64x32xbf16>
    %77 = vector.extract_strided_slice %20 {offsets = [0, 96], sizes = [64, 32], strides = [1, 1]} : vector<64x128xbf16> to vector<64x32xbf16>
    %cst_34 = arith.constant dense<0.000000e+00> : vector<32x64xf32>
    %78 = tpu.matmul %75, %76, %cst_34 {dimension_numbers = #tpu.dot_dimension_numbers<[1], [1], [0], [0], [0, 0, 1, 0], [], []>} : vector<32x32xbf16>, vector<64x32xbf16>, vector<32x64xf32> -> vector<32x64xf32>
    %cst_35 = arith.constant dense<0xFF800000> : vector<32xf32>
    %79 = vector.multi_reduction <maximumf>, %78, %cst_35 [1] : vector<32x64xf32> to vector<32xf32>
    %80 = vector.shape_cast %79 : vector<32xf32> to vector<32x1xf32>
    %81 = vector.broadcast %80 : vector<32x1xf32> to vector<32x64xf32>
    %82 = arith.subf %78, %81 : vector<32x64xf32>
    %83 = math.exp %82 : vector<32x64xf32>
    %cst_36 = arith.constant dense<0.000000e+00> : vector<32xf32>
    %84 = vector.multi_reduction <add>, %83, %cst_36 [1] : vector<32x64xf32> to vector<32xf32>
    %85 = vector.shape_cast %84 : vector<32xf32> to vector<32x1xf32>
    %86 = arith.truncf %83 : vector<32x64xf32> to vector<32x64xbf16>
    %cst_37 = arith.constant dense<0.000000e+00> : vector<32x32xf32>
    %87 = tpu.matmul %86, %77, %cst_37 {dimension_numbers = #tpu.dot_dimension_numbers<[1], [0], [0], [1], [0, 0, 1, 1], [], []>} : vector<32x64xbf16>, vector<64x32xbf16>, vector<32x32xf32> -> vector<32x32xf32>
    %88 = tpu.reciprocal %85 {approx = true} : vector<32x1xf32> -> vector<32x1xf32>
    %89 = vector.broadcast %88 : vector<32x1xf32> to vector<32x32xf32>
    %90 = arith.mulf %87, %89 : vector<32x32xf32>
    %91 = arith.truncf %90 : vector<32x32xf32> to vector<32x32xbf16>
    %c0_38 = arith.constant 0 : index
    %c96 = arith.constant 96 : index
    %92 = vector.load %arg12[%c0_38, %c96] : memref<32x128xbf16, #tpu.memory_space<vmem>>, vector<32x32xbf16>
    tpu.vector_store %arg12[%c0_38, %c96], %91 {strides = array<i32>} : memref<32x128xbf16, #tpu.memory_space<vmem>>, vector<32x32xbf16>,
    %c0_39 = arith.constant 0 : index
    %c0_40 = arith.constant 0 : index
    %93 = vector.load %arg12[%c0_39, %c0_40] : memref<32x128xbf16, #tpu.memory_space<vmem>>, vector<32x128xbf16>
    %c0_41 = arith.constant 0 : index
    %c0_42 = arith.constant 0 : index
    %94 = vector.load %arg9[%c0_41, %c0_42] : memref<128x128xbf16, #tpu.memory_space<vmem>>, vector<128x128xbf16>
    %cst_43 = arith.constant dense<0.000000e+00> : vector<32x128xf32>
    %95 = tpu.matmul %93, %94, %cst_43 {dimension_numbers = #tpu.dot_dimension_numbers<[1], [0], [0], [1], [0, 0, 1, 1], [], []>} : vector<32x128xbf16>, vector<128x128xbf16>, vector<32x128xf32> -> vector<32x128xf32>
    %c0_44 = arith.constant 0 : index
    %c0_45 = arith.constant 0 : index
    %96 = vector.load %arg10[%c0_44, %c0_45] : memref<1x128xf32, #tpu.memory_space<vmem>>, vector<1x128xf32>
    %97 = vector.broadcast %96 : vector<1x128xf32> to vector<32x128xf32>
    %98 = arith.addf %95, %97 : vector<32x128xf32>
    %c0_46 = arith.constant 0 : index
    %c0_47 = arith.constant 0 : index
    %c0_48 = arith.constant 0 : index
    %99 = vector.load %arg11[%c0_46, %c0_47, %c0_48] : memref<1x32x128xf32, #tpu.memory_space<vmem>>, vector<1x32x128xf32>
    %100 = vector.shape_cast %99 : vector<1x32x128xf32> to vector<32x128xf32>
    %101 = vector.shape_cast %98 : vector<32x128xf32> to vector<1x32x128xf32>
    tpu.vector_store %arg11[%c0_46, %c0_47, %c0_48], %101 {strides = array<i32>} : memref<1x32x128xf32, #tpu.memory_space<vmem>>, vector<1x32x128xf32>,
    return
  }
  func.func @transform_0(%arg0: i32, %arg1: i32) -> (i32, i32, i32) {
    %c0_i32 = arith.constant 0 : i32
    %c0_i32_0 = arith.constant 0 : i32
    return %arg0, %arg1, %c0_i32 : i32, i32, i32
  }
  func.func @transform_1(%arg0: i32, %arg1: i32) -> (i32, i32, i32) {
    %c0_i32 = arith.constant 0 : i32
    %c0_i32_0 = arith.constant 0 : i32
    %c0_i32_1 = arith.constant 0 : i32
    return %arg0, %c0_i32, %c0_i32_0 : i32, i32, i32
  }
  func.func @transform_2(%arg0: i32, %arg1: i32) -> (i32, i32) {
    %c0_i32 = arith.constant 0 : i32
    %c0_i32_0 = arith.constant 0 : i32
    %c0_i32_1 = arith.constant 0 : i32
    return %c0_i32, %c0_i32_0 : i32, i32
  }
  func.func @transform_3(%arg0: i32, %arg1: i32) -> (i32, i32) {
    %c0_i32 = arith.constant 0 : i32
    %c0_i32_0 = arith.constant 0 : i32
    %c0_i32_1 = arith.constant 0 : i32
    return %c0_i32, %c0_i32_0 : i32, i32
  }
  func.func @transform_4(%arg0: i32, %arg1: i32) -> (i32, i32) {
    %c0_i32 = arith.constant 0 : i32
    %c0_i32_0 = arith.constant 0 : i32
    %c0_i32_1 = arith.constant 0 : i32
    return %c0_i32, %c0_i32_0 : i32, i32
  }
  func.func @transform_5(%arg0: i32, %arg1: i32) -> (i32, i32) {
    %c0_i32 = arith.constant 0 : i32
    %c0_i32_0 = arith.constant 0 : i32
    %c0_i32_1 = arith.constant 0 : i32
    return %c0_i32, %c0_i32_0 : i32, i32
  }
  func.func @transform_6(%arg0: i32, %arg1: i32) -> (i32, i32) {
    %c0_i32 = arith.constant 0 : i32
    %c0_i32_0 = arith.constant 0 : i32
    %c0_i32_1 = arith.constant 0 : i32
    return %c0_i32, %c0_i32_0 : i32, i32
  }
  func.func @transform_7(%arg0: i32, %arg1: i32) -> (i32, i32) {
    %c0_i32 = arith.constant 0 : i32
    %c0_i32_0 = arith.constant 0 : i32
    %c0_i32_1 = arith.constant 0 : i32
    return %c0_i32, %c0_i32_0 : i32, i32
  }
  func.func @transform_8(%arg0: i32, %arg1: i32) -> (i32, i32) {
    %c0_i32 = arith.constant 0 : i32
    %c0_i32_0 = arith.constant 0 : i32
    %c0_i32_1 = arith.constant 0 : i32
    return %c0_i32, %c0_i32_0 : i32, i32
  }
  func.func @transform_9(%arg0: i32, %arg1: i32) -> (i32, i32, i32) {
    %c0_i32 = arith.constant 0 : i32
    %c0_i32_0 = arith.constant 0 : i32
    return %arg0, %arg1, %c0_i32 : i32, i32, i32
  }
}

</mosaic_0001>

<llo_original>
// kernel: duma_layer_forward.2
$region0: #{duma_layer_forward.2}
  #allocation0 [shape = 'u32[]', space=smem, size = 0x4, offset = 0x4, fixed_abs, tag = 'smem constant byte address 0x4 - core index']
  #allocation1 [shape = 'u32[144,128]{1,0:T(1,128)}', space=vmem, size = 0x12000, scoped, tag = 'internal scratch']
  #allocation2 [shape = 'bf16[32,128]{1,0:T(16,128)(2,1)}', space=vmem, size = 0x2000, scoped, tag = 'scratch operand']
  %s0 = inlined_call_operand.vmem [shape: bf16[2,32,128], index: 0, kind: input, shape index: {}]
  %s1 = inlined_call_operand.vmem [shape: bf16[2,64,128], index: 1, kind: input, shape index: {}]
  %s2 = inlined_call_operand.vmem [shape: bf16[128,128], index: 2, kind: input, shape index: {}]
  %s3 = inlined_call_operand.vmem [shape: f32[1,128], index: 3, kind: input, shape index: {}]
  %s4 = inlined_call_operand.vmem [shape: bf16[128,128], index: 4, kind: input, shape index: {}]
  %s5 = inlined_call_operand.vmem [shape: bf16[128,128], index: 5, kind: input, shape index: {}]
  %s6 = inlined_call_operand.vmem [shape: f32[1,128], index: 6, kind: input, shape index: {}]
  %s7 = inlined_call_operand.vmem [shape: bf16[128,128], index: 7, kind: input, shape index: {}]
  %s8 = inlined_call_operand.vmem [shape: f32[1,128], index: 8, kind: input, shape index: {}]
  %s9 = inlined_call_operand.hbm [shape: f32[2,32,128], index: 9, kind: output, shape index: {}]
  %s10 = sld [smem:[#allocation0]]
  $region69: #{duma_layer_forward.2} parent=0
    _
  %s12 = ssub.s32 1, %s10
  %s13 = scalar_select 0, %s12, %s10
  $region1: #{duma_layer_forward.2} parent=0
    #allocation3 [shape = 'u8[32768]{0}', space=vmem, size = 0x8000, scoped, tag = 'output window, operand 0']
    #allocation4 [shape = 's32[2]{0}', space=sflag, size = 0x8, scoped, tag = 'scoped memory for duma_layer_forward.2']
    %14 = vsyncpa [#allocation4], 0
    %s15 = scalar_lea.sflag [#allocation4], 1
    %16 = vsyncpa %s15, 0
    loop: start=0, step=1, limit=4
    $region2: #{duma_layer_forward.2} parent=1 // loop_pre_header
      _
    $region3: #{duma_layer_forward.2} parent=1 // loop_header
      %s18 = sphi 0, %s22
      %p19 = scmp.ge.s32.totalorder %s18, 4
      %s25 = sphi 0, %s37
      %s26 = sphi 0, %s33
      %s27 = sphi 0, %s25
      %s28 = sphi 0, %s26
      %s29 = sphi 0, %s27
      %s30 = sphi 0, %s28
      %s42 = sphi 0, %s44
      %s45 = sphi 0, %s42
      %s46 = sphi 0, %s45
      %s62 = sphi 0, %s46
      %s68 = sphi 0, %s70
      %s71 = sphi 0, %s68
      %s72 = sphi 0, %s71
      %s88 = sphi 0, %s72
      %s92 = sphi 0, %s92
      %s94 = sphi 0, %s92
      %s95 = sphi 0, %s94
      %s109 = sphi 0, %s95
      %s113 = sphi 0, %s113
      %s115 = sphi 0, %s113
      %s116 = sphi 0, %s115
      %s130 = sphi 0, %s116
      %s134 = sphi 0, %s134
      %s136 = sphi 0, %s134
      %s137 = sphi 0, %s136
      %s151 = sphi 0, %s137
      %s155 = sphi 0, %s155
      %s157 = sphi 0, %s155
      %s158 = sphi 0, %s157
      %s172 = sphi 0, %s158
      %s176 = sphi 0, %s176
      %s178 = sphi 0, %s176
      %s179 = sphi 0, %s178
      %s193 = sphi 0, %s179
      %s197 = sphi 0, %s197
      %s199 = sphi 0, %s197
      %s200 = sphi 0, %s199
      %s214 = sphi 0, %s200
      %s218 = sphi 0, %s218
      %s220 = sphi 0, %s218
      %s221 = sphi 0, %s220
      %s235 = sphi 0, %s221
      %s243 = sphi 0, %s245
      %s246 = sphi 0, %s243
      %s247 = sphi 0, %s246
      %s263 = sphi 0, %s247
    $region4: #{duma_layer_forward.2} parent=1 // loop_header_branch
      %21 = sbr.rel (%p19) target = $region8
    $region5: #{duma_layer_forward.2} parent=1 // loop_body
      %s23 = ssub.s32 %s18, 1
      %s24 = ssub.s32 %s18, 2
      %s31 = sadd.s32 1, %s26
      %p32 = scmp.ge.s32.totalorder %s31, 1
      %s33 = scalar_select %p32, 0, %s31
      %s34 = sadd.s32 1, %s25
      %s35 = scalar_select %p32, %s34, %s25
      %p36 = scmp.ge.s32.totalorder %s35, 2
      %s37 = scalar_select %p36, 0, %s35
      %s38 = ssub.s32 %s25, %s37
      %s39 = ssub.s32 %s26, %s33
      %s40 = sor.u32 %s38, %s39
      %p41 = scmp.eq.s32.totalorder %s40, 0
      %s43 = sadd.s32 %s42, 1
      %s44 = scalar_select %p41, %s42, %s43
      %p47 = pneg %p41
      %p48 = scmp.eq.s32.totalorder %s18, 1
      %p49 = por %p47, %p48
      %p50 = scmp.ne.s32.totalorder %s42, %s45
      %p51 = scmp.eq.s32.totalorder %s18, 0
      %p52 = por %p50, %p51
      %p53 = scmp.ne.s32.totalorder %s42, %s45
      %p54 = scmp.eq.s32.totalorder %s23, 1
      %p55 = por %p53, %p54
      %p56 = scmp.ne.s32.totalorder %s45, %s46
      %p57 = scmp.eq.s32.totalorder %s23, 0
      %p58 = por %p56, %p57
      %p59 = scmp.ne.s32.totalorder %s45, %s46
      %p60 = scmp.eq.s32.totalorder %s24, 1
      %p61 = por %p59, %p60
      %p63 = scmp.ne.s32.totalorder %s46, %s62
      %p64 = scmp.eq.s32.totalorder %s24, 0
      %p65 = por %p63, %p64
      %s66 = ssub.s32 %s25, %s37
      %p67 = scmp.eq.s32.totalorder %s66, 0
      %s69 = sadd.s32 %s68, 1
      %s70 = scalar_select %p67, %s68, %s69
      %p73 = pneg %p67
      %p74 = scmp.eq.s32.totalorder %s18, 1
      %p75 = por %p73, %p74
      %p76 = scmp.ne.s32.totalorder %s68, %s71
      %p77 = scmp.eq.s32.totalorder %s18, 0
      %p78 = por %p76, %p77
      %p79 = scmp.ne.s32.totalorder %s68, %s71
      %p80 = scmp.eq.s32.totalorder %s23, 1
      %p81 = por %p79, %p80
      %p82 = scmp.ne.s32.totalorder %s71, %s72
      %p83 = scmp.eq.s32.totalorder %s23, 0
      %p84 = por %p82, %p83
      %p85 = scmp.ne.s32.totalorder %s71, %s72
      %p86 = scmp.eq.s32.totalorder %s24, 1
      %p87 = por %p85, %p86
      %p89 = scmp.ne.s32.totalorder %s72, %s88
      %p90 = scmp.eq.s32.totalorder %s24, 0
      %p91 = por %p89, %p90
      %s93 = sadd.s32 %s92, 1
      %p96 = scmp.eq.s32.totalorder %s18, 1
      %p97 = scmp.ne.s32.totalorder %s92, %s94
      %p98 = scmp.eq.s32.totalorder %s18, 0
      %p99 = por %p97, %p98
      %p100 = scmp.ne.s32.totalorder %s92, %s94
      %p101 = scmp.eq.s32.totalorder %s23, 1
      %p102 = por %p100, %p101
      %p103 = scmp.ne.s32.totalorder %s94, %s95
      %p104 = scmp.eq.s32.totalorder %s23, 0
      %p105 = por %p103, %p104
      %p106 = scmp.ne.s32.totalorder %s94, %s95
      %p107 = scmp.eq.s32.totalorder %s24, 1
      %p108 = por %p106, %p107
      %p110 = scmp.ne.s32.totalorder %s95, %s109
      %p111 = scmp.eq.s32.totalorder %s24, 0
      %p112 = por %p110, %p111
      %s114 = sadd.s32 %s113, 1
      %p117 = scmp.eq.s32.totalorder %s18, 1
      %p118 = scmp.ne.s32.totalorder %s113, %s115
      %p119 = scmp.eq.s32.totalorder %s18, 0
      %p120 = por %p118, %p119
      %p121 = scmp.ne.s32.totalorder %s113, %s115
      %p122 = scmp.eq.s32.totalorder %s23, 1
      %p123 = por %p121, %p122
      %p124 = scmp.ne.s32.totalorder %s115, %s116
      %p125 = scmp.eq.s32.totalorder %s23, 0
      %p126 = por %p124, %p125
      %p127 = scmp.ne.s32.totalorder %s115, %s116
      %p128 = scmp.eq.s32.totalorder %s24, 1
      %p129 = por %p127, %p128
      %p131 = scmp.ne.s32.totalorder %s116, %s130
      %p132 = scmp.eq.s32.totalorder %s24, 0
      %p133 = por %p131, %p132
      %s135 = sadd.s32 %s134, 1
      %p138 = scmp.eq.s32.totalorder %s18, 1
      %p139 = scmp.ne.s32.totalorder %s134, %s136
      %p140 = scmp.eq.s32.totalorder %s18, 0
      %p141 = por %p139, %p140
      %p142 = scmp.ne.s32.totalorder %s134, %s136
      %p143 = scmp.eq.s32.totalorder %s23, 1
      %p144 = por %p142, %p143
      %p145 = scmp.ne.s32.totalorder %s136, %s137
      %p146 = scmp.eq.s32.totalorder %s23, 0
      %p147 = por %p145, %p146
      %p148 = scmp.ne.s32.totalorder %s136, %s137
      %p149 = scmp.eq.s32.totalorder %s24, 1
      %p150 = por %p148, %p149
      %p152 = scmp.ne.s32.totalorder %s137, %s151
      %p153 = scmp.eq.s32.totalorder %s24, 0
      %p154 = por %p152, %p153
      %s156 = sadd.s32 %s155, 1
      %p159 = scmp.eq.s32.totalorder %s18, 1
      %p160 = scmp.ne.s32.totalorder %s155, %s157
      %p161 = scmp.eq.s32.totalorder %s18, 0
      %p162 = por %p160, %p161
      %p163 = scmp.ne.s32.totalorder %s155, %s157
      %p164 = scmp.eq.s32.totalorder %s23, 1
      %p165 = por %p163, %p164
      %p166 = scmp.ne.s32.totalorder %s157, %s158
      %p167 = scmp.eq.s32.totalorder %s23, 0
      %p168 = por %p166, %p167
      %p169 = scmp.ne.s32.totalorder %s157, %s158
      %p170 = scmp.eq.s32.totalorder %s24, 1
      %p171 = por %p169, %p170
      %p173 = scmp.ne.s32.totalorder %s158, %s172
      %p174 = scmp.eq.s32.totalorder %s24, 0
      %p175 = por %p173, %p174
      %s177 = sadd.s32 %s176, 1
      %p180 = scmp.eq.s32.totalorder %s18, 1
      %p181 = scmp.ne.s32.totalorder %s176, %s178
      %p182 = scmp.eq.s32.totalorder %s18, 0
      %p183 = por %p181, %p182
      %p184 = scmp.ne.s32.totalorder %s176, %s178
      %p185 = scmp.eq.s32.totalorder %s23, 1
      %p186 = por %p184, %p185
      %p187 = scmp.ne.s32.totalorder %s178, %s179
      %p188 = scmp.eq.s32.totalorder %s23, 0
      %p189 = por %p187, %p188
      %p190 = scmp.ne.s32.totalorder %s178, %s179
      %p191 = scmp.eq.s32.totalorder %s24, 1
      %p192 = por %p190, %p191
      %p194 = scmp.ne.s32.totalorder %s179, %s193
      %p195 = scmp.eq.s32.totalorder %s24, 0
      %p196 = por %p194, %p195
      %s198 = sadd.s32 %s197, 1
      %p201 = scmp.eq.s32.totalorder %s18, 1
      %p202 = scmp.ne.s32.totalorder %s197, %s199
      %p203 = scmp.eq.s32.totalorder %s18, 0
      %p204 = por %p202, %p203
      %p205 = scmp.ne.s32.totalorder %s197, %s199
      %p206 = scmp.eq.s32.totalorder %s23, 1
      %p207 = por %p205, %p206
      %p208 = scmp.ne.s32.totalorder %s199, %s200
      %p209 = scmp.eq.s32.totalorder %s23, 0
      %p210 = por %p208, %p209
      %p211 = scmp.ne.s32.totalorder %s199, %s200
      %p212 = scmp.eq.s32.totalorder %s24, 1
      %p213 = por %p211, %p212
      %p215 = scmp.ne.s32.totalorder %s200, %s214
      %p216 = scmp.eq.s32.totalorder %s24, 0
      %p217 = por %p215, %p216
      %s219 = sadd.s32 %s218, 1
      %p222 = scmp.eq.s32.totalorder %s18, 1
      %p223 = scmp.ne.s32.totalorder %s218, %s220
      %p224 = scmp.eq.s32.totalorder %s18, 0
      %p225 = por %p223, %p224
      %p226 = scmp.ne.s32.totalorder %s218, %s220
      %p227 = scmp.eq.s32.totalorder %s23, 1
      %p228 = por %p226, %p227
      %p229 = scmp.ne.s32.totalorder %s220, %s221
      %p230 = scmp.eq.s32.totalorder %s23, 0
      %p231 = por %p229, %p230
      %p232 = scmp.ne.s32.totalorder %s220, %s221
      %p233 = scmp.eq.s32.totalorder %s24, 1
      %p234 = por %p232, %p233
      %p236 = scmp.ne.s32.totalorder %s221, %s235
      %p237 = scmp.eq.s32.totalorder %s24, 0
      %p238 = por %p236, %p237
      %s239 = ssub.s32 %s25, %s37
      %s240 = ssub.s32 %s26, %s33
      %s241 = sor.u32 %s239, %s240
      %p242 = scmp.eq.s32.totalorder %s241, 0
      %s244 = sadd.s32 %s243, 1
      %s245 = scalar_select %p242, %s243, %s244
      %p248 = pneg %p242
      %p249 = scmp.eq.s32.totalorder %s18, 1
      %p250 = por %p248, %p249
      %p251 = scmp.ne.s32.totalorder %s243, %s246
      %p252 = scmp.eq.s32.totalorder %s18, 0
      %p253 = por %p251, %p252
      %p254 = scmp.ne.s32.totalorder %s243, %s246
      %p255 = scmp.eq.s32.totalorder %s23, 1
      %p256 = por %p254, %p255
      %p257 = scmp.ne.s32.totalorder %s246, %s247
      %p258 = scmp.eq.s32.totalorder %s23, 0
      %p259 = por %p257, %p258
      %p260 = scmp.ne.s32.totalorder %s246, %s247
      %p261 = scmp.eq.s32.totalorder %s24, 1
      %p262 = por %p260, %p261
      %p264 = scmp.ne.s32.totalorder %s247, %s263
      %p265 = scmp.eq.s32.totalorder %s24, 0
      %p266 = por %p264, %p265
      %p267 = scmp.le.s32.totalorder 1, %s18
      %p268 = scmp.lt.s32.totalorder %s18, 3
      %p269 = pnand %p267, %p268
      %p270 = pneg %p269
      // Predicated region
      $region9: #{duma_layer_forward.2} parent=5 // pred_check
        _
      $region10: #{duma_layer_forward.2} parent=5 // pred_check_branch
        %272 = sbr.rel (%p269) target = $region12
      $region11: #{duma_layer_forward.2} parent=5 // pred_region
        %s273 = ssub.s32 %s18, 1
        // Predicated region
        $region13: #{duma_layer_forward.2} parent=11 // pred_check
          %p274 = pneg %p105
        $region14: #{duma_layer_forward.2} parent=11 // pred_check_branch
          %276 = sbr.rel (%p274) target = $region16
        $region15: #{duma_layer_forward.2} parent=11 // pred_region
          _
        $region16: #{duma_layer_forward.2} parent=11 // pred_fallthru
          _
        // Predicated region
        $region17: #{duma_layer_forward.2} parent=11 // pred_check
          %p277 = pneg %p126
        $region18: #{duma_layer_forward.2} parent=11 // pred_check_branch
          %279 = sbr.rel (%p277) target = $region20
        $region19: #{duma_layer_forward.2} parent=11 // pred_region
          _
        $region20: #{duma_layer_forward.2} parent=11 // pred_fallthru
          _
        // Predicated region
        $region21: #{duma_layer_forward.2} parent=11 // pred_check
          %p280 = pneg %p147
        $region22: #{duma_layer_forward.2} parent=11 // pred_check_branch
          %282 = sbr.rel (%p280) target = $region24
        $region23: #{duma_layer_forward.2} parent=11 // pred_region
          _
        $region24: #{duma_layer_forward.2} parent=11 // pred_fallthru
          _
        // Predicated region
        $region25: #{duma_layer_forward.2} parent=11 // pred_check
          %p283 = pneg %p168
        $region26: #{duma_layer_forward.2} parent=11 // pred_check_branch
          %285 = sbr.rel (%p283) target = $region28
        $region27: #{duma_layer_forward.2} parent=11 // pred_region
          _
        $region28: #{duma_layer_forward.2} parent=11 // pred_fallthru
          _
        // Predicated region
        $region29: #{duma_layer_forward.2} parent=11 // pred_check
          %p286 = pneg %p189
        $region30: #{duma_layer_forward.2} parent=11 // pred_check_branch
          %288 = sbr.rel (%p286) target = $region32
        $region31: #{duma_layer_forward.2} parent=11 // pred_region
          _
        $region32: #{duma_layer_forward.2} parent=11 // pred_fallthru
          _
        // Predicated region
        $region33: #{duma_layer_forward.2} parent=11 // pred_check
          %p289 = pneg %p210
        $region34: #{duma_layer_forward.2} parent=11 // pred_check_branch
          %291 = sbr.rel (%p289) target = $region36
        $region35: #{duma_layer_forward.2} parent=11 // pred_region
          _
        $region36: #{duma_layer_forward.2} parent=11 // pred_fallthru
          _
        // Predicated region
        $region37: #{duma_layer_forward.2} parent=11 // pred_check
          %p292 = pneg %p231
        $region38: #{duma_layer_forward.2} parent=11 // pred_check_branch
          %294 = sbr.rel (%p292) target = $region40
        $region39: #{duma_layer_forward.2} parent=11 // pred_region
          _
        $region40: #{duma_layer_forward.2} parent=11 // pred_fallthru
          _
      $region12: #{duma_layer_forward.2} parent=5 // pred_fallthru
        _
      %p295 = scmp.lt.s32.totalorder %s18, 2
      // Predicated region
      $region41: #{duma_layer_forward.2} parent=5 // pred_check
        %p296 = pneg %p295
      $region42: #{duma_layer_forward.2} parent=5 // pred_check_branch
        %298 = sbr.rel (%p296) target = $region44
      $region43: #{duma_layer_forward.2} parent=5 // pred_region
        // Predicated region
        $region45: #{duma_layer_forward.2} parent=43 // pred_check
          %p299 = pneg %p52
        $region46: #{duma_layer_forward.2} parent=43 // pred_check_branch
          %301 = sbr.rel (%p299) target = $region48
        $region47: #{duma_layer_forward.2} parent=43 // pred_region
          %s302 = smul.u32 4, %s26
          %p303 = scmp.lt.s32.totalorder %s25, 1
          %s304 = scalar_select %p303, %s25, 1
          %p305 = scmp.lt.s32.totalorder %s302, 3
          %s306 = scalar_select %p305, %s302, 3
          %s307 = smul.addr %s304, 4
          %s308 = sadd.s32 %s306, %s307
          %s309 = smul.addr %s308, 4
          %s310 = scalar_lea.vmem %s0, %s309
          %s311 = smul.u32 4, %s26
        $region48: #{duma_layer_forward.2} parent=43 // pred_fallthru
          _
        // Predicated region
        $region49: #{duma_layer_forward.2} parent=43 // pred_check
          %p312 = pneg %p78
        $region50: #{duma_layer_forward.2} parent=43 // pred_check_branch
          %314 = sbr.rel (%p312) target = $region52
        $region51: #{duma_layer_forward.2} parent=43 // pred_region
          %p315 = scmp.lt.s32.totalorder %s25, 1
          %s316 = scalar_select %p315, %s25, 1
          %s317 = smul.addr %s316, 8
          %s318 = smul.addr %s317, 4
          %s319 = scalar_lea.vmem %s1, %s318
        $region52: #{duma_layer_forward.2} parent=43 // pred_fallthru
          _
      $region44: #{duma_layer_forward.2} parent=5 // pred_fallthru
        _
      %p320 = scmp.le.s32.totalorder 1, %s18
      %p321 = scmp.lt.s32.totalorder %s18, 3
      %p322 = pnand %p320, %p321
      %p323 = pneg %p322
      // Predicated region
      $region53: #{duma_layer_forward.2} parent=5 // pred_check
        _
      $region54: #{duma_layer_forward.2} parent=5 // pred_check_branch
        %325 = sbr.rel (%p322) target = $region56
      $region55: #{duma_layer_forward.2} parent=5 // pred_region
        %s326 = ssub.s32 %s18, 1
        %s327 = smul.u32 4, %s28
        %p328 = scmp.lt.s32.totalorder %s27, 1
        %s329 = scalar_select %p328, %s27, 1
        %p330 = scmp.lt.s32.totalorder %s327, 3
        %s331 = scalar_select %p330, %s327, 3
        %s332 = smul.addr %s329, 4
        %s333 = sadd.s32 %s331, %s332
        %s334 = smul.addr %s333, 4
        %s335 = scalar_lea.vmem %s0, %s334
        %p336 = pneg %p58
        %p337 = pneg %p55
        %p338 = scmp.lt.s32.totalorder %s27, 1
        %s339 = scalar_select %p338, %s27, 1
        %s340 = smul.addr %s339, 8
        %s341 = smul.addr %s340, 4
        %s342 = scalar_lea.vmem %s1, %s341
        %p343 = pneg %p84
        %p344 = pneg %p81
        %p345 = pneg %p105
        %p346 = pneg %p102
        %p347 = pneg %p126
        %p348 = pneg %p123
        %p349 = pneg %p147
        %p350 = pneg %p144
        %p351 = pneg %p168
        %p352 = pneg %p165
        %p353 = pneg %p189
        %p354 = pneg %p186
        %p355 = pneg %p210
        %p356 = pneg %p207
        %p357 = pneg %p231
        %p358 = pneg %p228
        %p359 = pneg %p259
        %p360 = pneg %p256
        %s361 = sand.u32 %s246, 1
        %s362 = scalar_lea.sflag [#allocation4], %s361
        %s363 = sand.u32 %s246, 1
        %s364 = smul.addr %s363, 32
        %s365 = scalar_lea.vmem [#allocation3], %s364
        %s366 = smul.u32 4, %s28
        %p367 = scmp.lt.s32.totalorder %s27, 1
        %s368 = scalar_select %p367, %s27, 1
        %p369 = scmp.lt.s32.totalorder %s366, 3
        %s370 = scalar_select %p369, %s366, 3
        %s371 = smul.addr %s368, 4
        %s372 = sadd.s32 %s370, %s371
        %s373 = smul.addr %s372, 4
        %s374 = scalar_lea.vmem %s0, %s373
        %s375 = smul.u32 4, %s28
        %p376 = scmp.lt.s32.totalorder %s27, 1
        %s377 = scalar_select %p376, %s27, 1
        %s378 = smul.addr %s377, 8
        %s379 = smul.addr %s378, 4
        %s380 = scalar_lea.vmem %s1, %s379
        %s381 = smul.u32 4, %s28
        %v383 = vld [vmem:[%s374] sm:$0xf]
        %v384 = vld [vmem:[%s374 + $0x4] sm:$0xf]
        %v385 = vld [vmem:[%s374 + $0x8] sm:$0xf]
        %v386 = vld [vmem:[%s374 + $0xc] sm:$0xf]
        %v387 = vld [vmem:[%s380] sm:$0xf]
        %v388 = vld [vmem:[%s380 + $0x4] sm:$0xf]
        %v389 = vld [vmem:[%s380 + $0x8] sm:$0xf]
        %v390 = vld [vmem:[%s380 + $0xc] sm:$0xf]
        %v391 = vld [vmem:[%s380 + $0x10] sm:$0xf]
        %v392 = vld [vmem:[%s380 + $0x14] sm:$0xf]
        %v393 = vld [vmem:[%s380 + $0x18] sm:$0xf]
        %v394 = vld [vmem:[%s380 + $0x1c] sm:$0xf]
        %v395 = vld [vmem:[%s2] sm:$0xf]
        %v396 = vld [vmem:[%s2 + $0x4] sm:$0xf]
        %v397 = vld [vmem:[%s2 + $0x8] sm:$0xf]
        %v398 = vld [vmem:[%s2 + $0xc] sm:$0xf]
        %v399 = vld [vmem:[%s2 + $0x10] sm:$0xf]
        %v400 = vld [vmem:[%s2 + $0x14] sm:$0xf]
        %v401 = vld [vmem:[%s2 + $0x18] sm:$0xf]
        %v402 = vld [vmem:[%s2 + $0x1c] sm:$0xf]
        %v403 = vld [vmem:[%s2 + $0x20] sm:$0xf]
        %v404 = vld [vmem:[%s2 + $0x24] sm:$0xf]
        %v405 = vld [vmem:[%s2 + $0x28] sm:$0xf]
        %v406 = vld [vmem:[%s2 + $0x2c] sm:$0xf]
        %v407 = vld [vmem:[%s2 + $0x30] sm:$0xf]
        %v408 = vld [vmem:[%s2 + $0x34] sm:$0xf]
        %v409 = vld [vmem:[%s2 + $0x38] sm:$0xf]
        %v410 = vld [vmem:[%s2 + $0x3c] sm:$0xf]
        %v411 = vld [vmem:[%s3] sm:$0x1]
        %v413 = vlaneseq
        %v414 = vshrl.u32 %v413, 7
        %v415 = vsub.s32 0, %v414
        %v416 = vrot.slane %v411, %v415
        %v422 = vunpack.c.l.b16 %v383
        %v423 = vunpack.c.l.b16 %v384
        %v424 = vunpack.c.l.b16 %v385
        %v425 = vunpack.c.l.b16 %v386
        %v426 = vpack.c.b16 %v423, %v422
        %v427 = vpack.c.b16 %v425, %v424
        %v446 = vunpack.c.l.b16 %v395
        %v447 = vunpack.c.l.b16 %v396
        %v448 = vunpack.c.l.b16 %v397
        %v449 = vunpack.c.l.b16 %v398
        %v450 = vunpack.c.l.b16 %v399
        %v451 = vunpack.c.l.b16 %v400
        %v452 = vunpack.c.l.b16 %v401
        %v453 = vunpack.c.l.b16 %v402
        %v454 = vunpack.c.l.b16 %v403
        %v455 = vunpack.c.l.b16 %v404
        %v456 = vunpack.c.l.b16 %v405
        %v457 = vunpack.c.l.b16 %v406
        %v458 = vunpack.c.l.b16 %v407
        %v459 = vunpack.c.l.b16 %v408
        %v460 = vunpack.c.l.b16 %v409
        %v461 = vunpack.c.l.b16 %v410
        %v462 = vpack.c.b16 %v447, %v446
        %v463 = vpack.c.b16 %v449, %v448
        %v464 = vpack.c.b16 %v451, %v450
        %v465 = vpack.c.b16 %v453, %v452
        %v466 = vpack.c.b16 %v455, %v454
        %v467 = vpack.c.b16 %v457, %v456
        %v468 = vpack.c.b16 %v459, %v458
        %v469 = vpack.c.b16 %v461, %v460
        %478 = vmatprep.subr.bf16.mxu0 0
        %479 = vmatpush1.bf16.msra.mxu0 %v462
        %480 = vmatprep.subr.bf16.mxu0 0
        %481 = vmatpush1.bf16.msra.mxu0 %v463
        %482 = vmatprep.subr.bf16.mxu0 0
        %483 = vmatpush1.bf16.msra.mxu0 %v464
        %484 = vmatprep.subr.bf16.mxu0 0
        %485 = vmatpush1.bf16.msra.mxu0 %v465
        %486 = vmatprep.subr.bf16.mxu0 0
        %487 = vmatpush1.bf16.msra.mxu0 %v466
        %488 = vmatprep.subr.bf16.mxu0 0
        %489 = vmatpush1.bf16.msra.mxu0 %v467
        %490 = vmatprep.subr.bf16.mxu0 0
        %491 = vmatpush1.bf16.msra.mxu0 %v468
        %492 = vmatprep.subr.bf16.mxu0 0
        %493 = vmatpush1.bf16.msra.mxu0 %v469
        %494 = vmatprep.subr.bf16.mxu0 0
        %495 = vmatpush1.bf16.msra.mxu0 0
        %496 = vmatprep.subr.bf16.mxu0 0
        %497 = vmatpush1.bf16.msra.mxu0 0
        %498 = vmatprep.subr.bf16.mxu0 0
        %499 = vmatpush1.bf16.msra.mxu0 0
        %500 = vmatprep.subr.bf16.mxu0 0
        %501 = vmatpush1.bf16.msra.mxu0 0
        %502 = vmatprep.subr.bf16.mxu0 0
        %503 = vmatpush1.bf16.msra.mxu0 0
        %504 = vmatprep.subr.bf16.mxu0 0
        %505 = vmatpush1.bf16.msra.mxu0 0
        %506 = vmatprep.subr.bf16.mxu0 0
        %507 = vmatpush1.bf16.msra.mxu0 0
        %508 = vmatprep.subr.bf16.mxu0 0
        %509 = vmatpush1.bf16.msra.mxu0 0
        %510 = vmatprep.mubr.bf16.mxu0 0
        %511 = vmatmul.mubr.bf16.gmra.mrb[0].mxu0 %v426
        %v512 = vpop.f32.mrb[0].mxu0
        %v513 = vadd.f32 %v416, %v512
        %v514 = vpop.f32.mrb[0].mxu0
        %v515 = vpop.f32.mrb[0].mxu0
        %v516 = vadd.f32 %v416, %v515
        %v517 = vpop.f32.mrb[0].mxu0
        %518 = vmatprep.mubr.bf16.mxu0 0
        %519 = vmatmul.mubr.bf16.gmra.mrb[0].mxu0 %v427
        %v520 = vpop.f32.mrb[0].mxu0
        %v521 = vadd.f32 %v416, %v520
        %v522 = vpop.f32.mrb[0].mxu0
        %v523 = vpop.f32.mrb[0].mxu0
        %v524 = vadd.f32 %v416, %v523
        %v525 = vpop.f32.mrb[0].mxu0
        %526 = vdwg.mxu0
        %v527 = vld [vmem:[%s4] sm:$0xf]
        %v528 = vld [vmem:[%s4 + $0x4] sm:$0xf]
        %v529 = vld [vmem:[%s4 + $0x8] sm:$0xf]
        %v530 = vld [vmem:[%s4 + $0xc] sm:$0xf]
        %v531 = vld [vmem:[%s4 + $0x10] sm:$0xf]
        %v532 = vld [vmem:[%s4 + $0x14] sm:$0xf]
        %v533 = vld [vmem:[%s4 + $0x18] sm:$0xf]
        %v534 = vld [vmem:[%s4 + $0x1c] sm:$0xf]
        %v535 = vld [vmem:[%s4 + $0x20] sm:$0xf]
        %v536 = vld [vmem:[%s4 + $0x24] sm:$0xf]
        %v537 = vld [vmem:[%s4 + $0x28] sm:$0xf]
        %v538 = vld [vmem:[%s4 + $0x2c] sm:$0xf]
        %v539 = vld [vmem:[%s4 + $0x30] sm:$0xf]
        %v540 = vld [vmem:[%s4 + $0x34] sm:$0xf]
        %v541 = vld [vmem:[%s4 + $0x38] sm:$0xf]
        %v542 = vld [vmem:[%s4 + $0x3c] sm:$0xf]
        %v551 = vunpack.c.l.b16 %v387
        %v552 = vunpack.c.l.b16 %v388
        %v553 = vunpack.c.l.b16 %v389
        %v554 = vunpack.c.l.b16 %v390
        %v555 = vunpack.c.l.b16 %v391
        %v556 = vunpack.c.l.b16 %v392
        %v557 = vunpack.c.l.b16 %v393
        %v558 = vunpack.c.l.b16 %v394
        %v559 = vpack.c.b16 %v552, %v551
        %v560 = vpack.c.b16 %v554, %v553
        %v561 = vpack.c.b16 %v556, %v555
        %v562 = vpack.c.b16 %v558, %v557
        %v583 = vunpack.c.l.b16 %v527
        %v584 = vunpack.c.l.b16 %v528
        %v585 = vunpack.c.l.b16 %v529
        %v586 = vunpack.c.l.b16 %v530
        %v587 = vunpack.c.l.b16 %v531
        %v588 = vunpack.c.l.b16 %v532
        %v589 = vunpack.c.l.b16 %v533
        %v590 = vunpack.c.l.b16 %v534
        %v591 = vunpack.c.l.b16 %v535
        %v592 = vunpack.c.l.b16 %v536
        %v593 = vunpack.c.l.b16 %v537
        %v594 = vunpack.c.l.b16 %v538
        %v595 = vunpack.c.l.b16 %v539
        %v596 = vunpack.c.l.b16 %v540
        %v597 = vunpack.c.l.b16 %v541
        %v598 = vunpack.c.l.b16 %v542
        %v599 = vpack.c.b16 %v584, %v583
        %v600 = vpack.c.b16 %v586, %v585
        %v601 = vpack.c.b16 %v588, %v587
        %v602 = vpack.c.b16 %v590, %v589
        %v603 = vpack.c.b16 %v592, %v591
        %v604 = vpack.c.b16 %v594, %v593
        %v605 = vpack.c.b16 %v596, %v595
        %v606 = vpack.c.b16 %v598, %v597
        %615 = vmatprep.subr.bf16.mxu0 0
        %616 = vmatpush1.bf16.msra.mxu0 %v599
        %617 = vmatprep.subr.bf16.mxu0 0
        %618 = vmatpush1.bf16.msra.mxu0 %v600
        %619 = vmatprep.subr.bf16.mxu0 0
        %620 = vmatpush1.bf16.msra.mxu0 %v601
        %621 = vmatprep.subr.bf16.mxu0 0
        %622 = vmatpush1.bf16.msra.mxu0 %v602
        %623 = vmatprep.subr.bf16.mxu0 0
        %624 = vmatpush1.bf16.msra.mxu0 %v603
        %625 = vmatprep.subr.bf16.mxu0 0
        %626 = vmatpush1.bf16.msra.mxu0 %v604
        %627 = vmatprep.subr.bf16.mxu0 0
        %628 = vmatpush1.bf16.msra.mxu0 %v605
        %629 = vmatprep.subr.bf16.mxu0 0
        %630 = vmatpush1.bf16.msra.mxu0 %v606
        %631 = vmatprep.subr.bf16.mxu0 0
        %632 = vmatpush1.bf16.msra.mxu0 0
        %633 = vmatprep.subr.bf16.mxu0 0
        %634 = vmatpush1.bf16.msra.mxu0 0
        %635 = vmatprep.subr.bf16.mxu0 0
        %636 = vmatpush1.bf16.msra.mxu0 0
        %637 = vmatprep.subr.bf16.mxu0 0
        %638 = vmatpush1.bf16.msra.mxu0 0
        %639 = vmatprep.subr.bf16.mxu0 0
        %640 = vmatpush1.bf16.msra.mxu0 0
        %641 = vmatprep.subr.bf16.mxu0 0
        %642 = vmatpush1.bf16.msra.mxu0 0
        %643 = vmatprep.subr.bf16.mxu0 0
        %644 = vmatpush1.bf16.msra.mxu0 0
        %645 = vmatprep.subr.bf16.mxu0 0
        %646 = vmatpush1.bf16.msra.mxu0 0
        %647 = vmatprep.mubr.bf16.mxu0 0
        %648 = vmatmul.mubr.bf16.gmra.mrb[0].mxu0 %v559
        %v649 = vpop.f32.mrb[0].mxu0
        %v650 = vadd.f32 0.0, %v649
        %v651 = vpop.f32.mrb[0].mxu0
        %v652 = vpop.f32.mrb[0].mxu0
        %v653 = vadd.f32 0.0, %v652
        %v654 = vpop.f32.mrb[0].mxu0
        %655 = vmatprep.mubr.bf16.mxu0 0
        %656 = vmatmul.mubr.bf16.gmra.mrb[0].mxu0 %v560
        %v657 = vpop.f32.mrb[0].mxu0
        %v658 = vadd.f32 0.0, %v657
        %v659 = vpop.f32.mrb[0].mxu0
        %v660 = vpop.f32.mrb[0].mxu0
        %v661 = vadd.f32 0.0, %v660
        %v662 = vpop.f32.mrb[0].mxu0
        %663 = vmatprep.mubr.bf16.mxu0 0
        %664 = vmatmul.mubr.bf16.gmra.mrb[0].mxu0 %v561
        %v665 = vpop.f32.mrb[0].mxu0
        %v666 = vadd.f32 0.0, %v665
        %v667 = vpop.f32.mrb[0].mxu0
        %v668 = vpop.f32.mrb[0].mxu0
        %v669 = vadd.f32 0.0, %v668
        %v670 = vpop.f32.mrb[0].mxu0
        %671 = vmatprep.mubr.bf16.mxu0 0
        %672 = vmatmul.mubr.bf16.gmra.mrb[0].mxu0 %v562
        %v673 = vpop.f32.mrb[0].mxu0
        %v674 = vadd.f32 0.0, %v673
        %v675 = vpop.f32.mrb[0].mxu0
        %v676 = vpop.f32.mrb[0].mxu0
        %v677 = vadd.f32 0.0, %v676
        %v678 = vpop.f32.mrb[0].mxu0
        %679 = vdwg.mxu0
        %v680 = vld [vmem:[%s5] sm:$0xf]
        %v681 = vld [vmem:[%s5 + $0x4] sm:$0xf]
        %v682 = vld [vmem:[%s5 + $0x8] sm:$0xf]
        %v683 = vld [vmem:[%s5 + $0xc] sm:$0xf]
        %v684 = vld [vmem:[%s5 + $0x10] sm:$0xf]
        %v685 = vld [vmem:[%s5 + $0x14] sm:$0xf]
        %v686 = vld [vmem:[%s5 + $0x18] sm:$0xf]
        %v687 = vld [vmem:[%s5 + $0x1c] sm:$0xf]
        %v688 = vld [vmem:[%s5 + $0x20] sm:$0xf]
        %v689 = vld [vmem:[%s5 + $0x24] sm:$0xf]
        %v690 = vld [vmem:[%s5 + $0x28] sm:$0xf]
        %v691 = vld [vmem:[%s5 + $0x2c] sm:$0xf]
        %v692 = vld [vmem:[%s5 + $0x30] sm:$0xf]
        %v693 = vld [vmem:[%s5 + $0x34] sm:$0xf]
        %v694 = vld [vmem:[%s5 + $0x38] sm:$0xf]
        %v695 = vld [vmem:[%s5 + $0x3c] sm:$0xf]
        %v696 = vld [vmem:[%s6] sm:$0x1]
        %v698 = vlaneseq
        %v699 = vshrl.u32 %v698, 7
        %v700 = vsub.s32 0, %v699
        %v701 = vrot.slane %v696, %v700
        %v719 = vunpack.c.l.b16 %v680
        %v720 = vunpack.c.l.b16 %v681
        %v721 = vunpack.c.l.b16 %v682
        %v722 = vunpack.c.l.b16 %v683
        %v723 = vunpack.c.l.b16 %v684
        %v724 = vunpack.c.l.b16 %v685
        %v725 = vunpack.c.l.b16 %v686
        %v726 = vunpack.c.l.b16 %v687
        %v727 = vunpack.c.l.b16 %v688
        %v728 = vunpack.c.l.b16 %v689
        %v729 = vunpack.c.l.b16 %v690
        %v730 = vunpack.c.l.b16 %v691
        %v731 = vunpack.c.l.b16 %v692
        %v732 = vunpack.c.l.b16 %v693
        %v733 = vunpack.c.l.b16 %v694
        %v734 = vunpack.c.l.b16 %v695
        %v735 = vpack.c.b16 %v720, %v719
        %v736 = vpack.c.b16 %v722, %v721
        %v737 = vpack.c.b16 %v724, %v723
        %v738 = vpack.c.b16 %v726, %v725
        %v739 = vpack.c.b16 %v728, %v727
        %v740 = vpack.c.b16 %v730, %v729
        %v741 = vpack.c.b16 %v732, %v731
        %v742 = vpack.c.b16 %v734, %v733
        %751 = vmatprep.subr.bf16.mxu0 0
        %752 = vmatpush1.bf16.msra.mxu0 %v735
        %753 = vmatprep.subr.bf16.mxu0 0
        %754 = vmatpush1.bf16.msra.mxu0 %v736
        %755 = vmatprep.subr.bf16.mxu0 0
        %756 = vmatpush1.bf16.msra.mxu0 %v737
        %757 = vmatprep.subr.bf16.mxu0 0
        %758 = vmatpush1.bf16.msra.mxu0 %v738
        %759 = vmatprep.subr.bf16.mxu0 0
        %760 = vmatpush1.bf16.msra.mxu0 %v739
        %761 = vmatprep.subr.bf16.mxu0 0
        %762 = vmatpush1.bf16.msra.mxu0 %v740
        %763 = vmatprep.subr.bf16.mxu0 0
        %764 = vmatpush1.bf16.msra.mxu0 %v741
        %765 = vmatprep.subr.bf16.mxu0 0
        %766 = vmatpush1.bf16.msra.mxu0 %v742
        %767 = vmatprep.subr.bf16.mxu0 0
        %768 = vmatpush1.bf16.msra.mxu0 0
        %769 = vmatprep.subr.bf16.mxu0 0
        %770 = vmatpush1.bf16.msra.mxu0 0
        %771 = vmatprep.subr.bf16.mxu0 0
        %772 = vmatpush1.bf16.msra.mxu0 0
        %773 = vmatprep.subr.bf16.mxu0 0
        %774 = vmatpush1.bf16.msra.mxu0 0
        %775 = vmatprep.subr.bf16.mxu0 0
        %776 = vmatpush1.bf16.msra.mxu0 0
        %777 = vmatprep.subr.bf16.mxu0 0
        %778 = vmatpush1.bf16.msra.mxu0 0
        %779 = vmatprep.subr.bf16.mxu0 0
        %780 = vmatpush1.bf16.msra.mxu0 0
        %781 = vmatprep.subr.bf16.mxu0 0
        %782 = vmatpush1.bf16.msra.mxu0 0
        %783 = vmatprep.mubr.bf16.mxu0 0
        %784 = vmatmul.mubr.bf16.gmra.mrb[0].mxu0 %v559
        %v785 = vpop.f32.mrb[0].mxu0
        %v786 = vadd.f32 %v701, %v785
        %v787 = vpop.f32.mrb[0].mxu0
        %v788 = vpop.f32.mrb[0].mxu0
        %v789 = vadd.f32 %v701, %v788
        %v790 = vpop.f32.mrb[0].mxu0
        %791 = vmatprep.mubr.bf16.mxu0 0
        %792 = vmatmul.mubr.bf16.gmra.mrb[0].mxu0 %v560
        %v793 = vpop.f32.mrb[0].mxu0
        %v794 = vadd.f32 %v701, %v793
        %v795 = vpop.f32.mrb[0].mxu0
        %v796 = vpop.f32.mrb[0].mxu0
        %v797 = vadd.f32 %v701, %v796
        %v798 = vpop.f32.mrb[0].mxu0
        %799 = vmatprep.mubr.bf16.mxu0 0
        %800 = vmatmul.mubr.bf16.gmra.mrb[0].mxu0 %v561
        %v801 = vpop.f32.mrb[0].mxu0
        %v802 = vadd.f32 %v701, %v801
        %v803 = vpop.f32.mrb[0].mxu0
        %v804 = vpop.f32.mrb[0].mxu0
        %v805 = vadd.f32 %v701, %v804
        %v806 = vpop.f32.mrb[0].mxu0
        %807 = vmatprep.mubr.bf16.mxu0 0
        %808 = vmatmul.mubr.bf16.gmra.mrb[0].mxu0 %v562
        %v809 = vpop.f32.mrb[0].mxu0
        %v810 = vadd.f32 %v701, %v809
        %v811 = vpop.f32.mrb[0].mxu0
        %v812 = vpop.f32.mrb[0].mxu0
        %v813 = vadd.f32 %v701, %v812
        %v814 = vpop.f32.mrb[0].mxu0
        %815 = vdwg.mxu0
        %v816 = vmul.f32 %v513, 0.17677669
        %v817 = vmul.f32 %v516, 0.17677669
        %v818 = vmul.f32 %v521, 0.17677669
        %v819 = vmul.f32 %v524, 0.17677669
        %v820 = vpack.c.bf16 %v817, %v816
        %v821 = vpack.c.bf16 %v819, %v818
        %v822 = vpack.c.bf16 %v653, %v650
        %v823 = vpack.c.bf16 %v661, %v658
        %v824 = vpack.c.bf16 %v669, %v666
        %v825 = vpack.c.bf16 %v677, %v674
        %v826 = vpack.c.bf16 %v789, %v786
        %v827 = vpack.c.bf16 %v797, %v794
        %v828 = vpack.c.bf16 %v805, %v802
        %v829 = vpack.c.bf16 %v813, %v810
        %vm830 = vcmask 261120
        %v832 = vsel %vm830, %v820, 0
        %v835 = vsel %vm830, %v821, 0
        %v838 = vsel %vm830, %v822, 0
        %v841 = vsel %vm830, %v823, 0
        %v844 = vsel %vm830, %v824, 0
        %v847 = vsel %vm830, %v825, 0
        %849 = vmatprep.subr.bf16.mxu0 0
        %850 = vmatpush1.bf16.xpose.msra.mxu0 %v838
        %851 = vmatprep.subr.bf16.mxu0 0
        %852 = vmatpush1.bf16.xpose.msra.mxu0 %v841
        %853 = vmatprep.subr.bf16.mxu0 0
        %854 = vmatpush1.bf16.xpose.msra.mxu0 %v844
        %855 = vmatprep.subr.bf16.mxu0 0
        %856 = vmatpush1.bf16.xpose.msra.mxu0 %v847
        %857 = vmatprep.subr.bf16.mxu0 0
        %858 = vmatpush1.bf16.xpose.msra.mxu0 0
        %859 = vmatprep.subr.bf16.mxu0 0
        %860 = vmatpush1.bf16.xpose.msra.mxu0 0
        %861 = vmatprep.subr.bf16.mxu0 0
        %862 = vmatpush1.bf16.xpose.msra.mxu0 0
        %863 = vmatprep.subr.bf16.mxu0 0
        %864 = vmatpush1.bf16.xpose.msra.mxu0 0
        %865 = vmatprep.subr.bf16.mxu0 0
        %866 = vmatpush1.bf16.xpose.msra.mxu0 0
        %867 = vmatprep.subr.bf16.mxu0 0
        %868 = vmatpush1.bf16.xpose.msra.mxu0 0
        %869 = vmatprep.subr.bf16.mxu0 0
        %870 = vmatpush1.bf16.xpose.msra.mxu0 0
        %871 = vmatprep.subr.bf16.mxu0 0
        %872 = vmatpush1.bf16.xpose.msra.mxu0 0
        %873 = vmatprep.subr.bf16.mxu0 0
        %874 = vmatpush1.bf16.xpose.msra.mxu0 0
        %875 = vmatprep.subr.bf16.mxu0 0
        %876 = vmatpush1.bf16.xpose.msra.mxu0 0
        %877 = vmatprep.subr.bf16.mxu0 0
        %878 = vmatpush1.bf16.xpose.msra.mxu0 0
        %879 = vmatprep.subr.bf16.mxu0 0
        %880 = vmatpush1.bf16.xpose.msra.mxu0 0
        %881 = vmatprep.mubr.bf16.mxu0 0
        %882 = vmatmul.mubr.bf16.gmra.mrb[0].mxu0 %v832
        %v883 = vpop.f32.mrb[0].mxu0
        %v884 = vadd.f32 0.0, %v883
        %v885 = vpop.f32.mrb[0].mxu0
        %v886 = vpop.f32.mrb[0].mxu0
        %v887 = vadd.f32 0.0, %v886
        %v888 = vpop.f32.mrb[0].mxu0
        %889 = vmatprep.mubr.bf16.mxu0 0
        %890 = vmatmul.mubr.bf16.gmra.mrb[0].mxu0 %v835
        %v891 = vpop.f32.mrb[0].mxu0
        %v892 = vadd.f32 0.0, %v891
        %v893 = vpop.f32.mrb[0].mxu0
        %v894 = vpop.f32.mrb[0].mxu0
        %v895 = vadd.f32 0.0, %v894
        %v896 = vpop.f32.mrb[0].mxu0
        %897 = vdwg.mxu0
        %vm898 = vcmask 523264
        %v899 = vsel %vm898, %v884, -inf
        %900 = vmax.xlane.f32.xlu0 %v899
        %v901 = vpop.xlane.xlu0 %900
        %v902 = vsel %vm898, %v887, -inf
        %903 = vmax.xlane.f32.xlu0 %v902
        %v904 = vpop.xlane.xlu0 %903
        %v905 = vsel %vm898, %v892, -inf
        %906 = vmax.xlane.f32.xlu0 %v905
        %v907 = vpop.xlane.xlu0 %906
        %v908 = vsel %vm898, %v895, -inf
        %909 = vmax.xlane.f32.xlu0 %v908
        %v910 = vpop.xlane.xlu0 %909
        %v911 = vsub.f32 %v884, %v901
        %v912 = vsub.f32 %v887, %v904
        %v913 = vsub.f32 %v892, %v907
        %v914 = vsub.f32 %v895, %v910
        %v915 = vmul.f32 %v911, 1.442695
        %v916 = vpow.pop %v915
        %v917 = vmul.f32 %v912, 1.442695
        %v918 = vpow.pop %v917
        %v919 = vmul.f32 %v913, 1.442695
        %v920 = vpow.pop %v919
        %v921 = vmul.f32 %v914, 1.442695
        %v922 = vpow.pop %v921
        %v923 = vsel %vm898, %v916, 0.0
        %924 = vadd.xlane.f32.xlu0 %v923
        %v925 = vpop.xlane.xlu0 %924
        %v926 = vsel %vm898, %v918, 0.0
        %927 = vadd.xlane.f32.xlu0 %v926
        %v928 = vpop.xlane.xlu0 %927
        %v929 = vsel %vm898, %v920, 0.0
        %930 = vadd.xlane.f32.xlu0 %v929
        %v931 = vpop.xlane.xlu0 %930
        %v932 = vsel %vm898, %v922, 0.0
        %933 = vadd.xlane.f32.xlu0 %v932
        %v934 = vpop.xlane.xlu0 %933
        %v935 = vpack.c.bf16 %v918, %v916
        %v936 = vpack.c.bf16 %v922, %v920
        %v938 = vsel %vm898, %v935, 0
        %v941 = vsel %vm898, %v936, 0
        %943 = vmatprep.subr.bf16.mxu0 0
        %944 = vmatpush1.bf16.msra.mxu0 %v826
        %945 = vmatprep.subr.bf16.mxu0 0
        %946 = vmatpush1.bf16.msra.mxu0 %v827
        %947 = vmatprep.subr.bf16.mxu0 0
        %948 = vmatpush1.bf16.msra.mxu0 %v828
        %949 = vmatprep.subr.bf16.mxu0 0
        %950 = vmatpush1.bf16.msra.mxu0 %v829
        %951 = vmatprep.subr.bf16.mxu0 0
        %952 = vmatpush1.bf16.msra.mxu0 0
        %953 = vmatprep.subr.bf16.mxu0 0
        %954 = vmatpush1.bf16.msra.mxu0 0
        %955 = vmatprep.subr.bf16.mxu0 0
        %956 = vmatpush1.bf16.msra.mxu0 0
        %957 = vmatprep.subr.bf16.mxu0 0
        %958 = vmatpush1.bf16.msra.mxu0 0
        %959 = vmatprep.subr.bf16.mxu0 0
        %960 = vmatpush1.bf16.msra.mxu0 0
        %961 = vmatprep.subr.bf16.mxu0 0
        %962 = vmatpush1.bf16.msra.mxu0 0
        %963 = vmatprep.subr.bf16.mxu0 0
        %964 = vmatpush1.bf16.msra.mxu0 0
        %965 = vmatprep.subr.bf16.mxu0 0
        %966 = vmatpush1.bf16.msra.mxu0 0
        %967 = vmatprep.subr.bf16.mxu0 0
        %968 = vmatpush1.bf16.msra.mxu0 0
        %969 = vmatprep.subr.bf16.mxu0 0
        %970 = vmatpush1.bf16.msra.mxu0 0
        %971 = vmatprep.subr.bf16.mxu0 0
        %972 = vmatpush1.bf16.msra.mxu0 0
        %973 = vmatprep.subr.bf16.mxu0 0
        %974 = vmatpush1.bf16.msra.mxu0 0
        %975 = vmatprep.mubr.bf16.mxu0 0
        %976 = vmatmul.mubr.bf16.gmra.mrb[0].mxu0 %v938
        %v977 = vpop.f32.mrb[0].mxu0
        %v978 = vadd.f32 0.0, %v977
        %v979 = vpop.f32.mrb[0].mxu0
        %v980 = vpop.f32.mrb[0].mxu0
        %v981 = vadd.f32 0.0, %v980
        %v982 = vpop.f32.mrb[0].mxu0
        %983 = vmatprep.mubr.bf16.mxu0 0
        %984 = vmatmul.mubr.bf16.gmra.mrb[0].mxu0 %v941
        %v985 = vpop.f32.mrb[0].mxu0
        %v986 = vadd.f32 0.0, %v985
        %v987 = vpop.f32.mrb[0].mxu0
        %v988 = vpop.f32.mrb[0].mxu0
        %v989 = vadd.f32 0.0, %v988
        %v990 = vpop.f32.mrb[0].mxu0
        %991 = vdwg.mxu0
        %v992 = vrcp.pop %v925
        %v993 = vrcp.pop %v928
        %v994 = vrcp.pop %v931
        %v995 = vrcp.pop %v934
        %v996 = vmul.f32 %v978, %v992
        %v997 = vmul.f32 %v981, %v993
        %v998 = vmul.f32 %v986, %v994
        %v999 = vmul.f32 %v989, %v995
        %v1000 = vpack.c.bf16 %v997, %v996
        %v1001 = vpack.c.bf16 %v999, %v998
        %1002 = vst.msk [vmem:[#allocation2] sm:$0xff] %vm830, %v1000
        %1003 = vst.msk [vmem:[#allocation2 + $0x8] sm:$0xff] %vm830, %v1001
        %1006 = vrot.lane.b32.xlu0 %v820, 96
        %v1007 = vpop.permute.xlu0 %1006
        %1008 = vrot.lane.b32.xlu0 %v821, 96
        %v1009 = vpop.permute.xlu0 %1008
        %1014 = vrot.lane.b32.xlu0 %v822, 96
        %v1015 = vpop.permute.xlu0 %1014
        %1016 = vrot.lane.b32.xlu0 %v823, 96
        %v1017 = vpop.permute.xlu0 %1016
        %1018 = vrot.lane.b32.xlu0 %v824, 96
        %v1019 = vpop.permute.xlu0 %1018
        %1020 = vrot.lane.b32.xlu0 %v825, 96
        %v1021 = vpop.permute.xlu0 %1020
        %v1023 = vsel %vm830, %v1007, 0
        %v1026 = vsel %vm830, %v1009, 0
        %v1029 = vsel %vm830, %v1015, 0
        %v1032 = vsel %vm830, %v1017, 0
        %v1035 = vsel %vm830, %v1019, 0
        %v1038 = vsel %vm830, %v1021, 0
        %1040 = vmatprep.subr.bf16.mxu0 0
        %1041 = vmatpush1.bf16.xpose.msra.mxu0 %v1029
        %1042 = vmatprep.subr.bf16.mxu0 0
        %1043 = vmatpush1.bf16.xpose.msra.mxu0 %v1032
        %1044 = vmatprep.subr.bf16.mxu0 0
        %1045 = vmatpush1.bf16.xpose.msra.mxu0 %v1035
        %1046 = vmatprep.subr.bf16.mxu0 0
        %1047 = vmatpush1.bf16.xpose.msra.mxu0 %v1038
        %1048 = vmatprep.subr.bf16.mxu0 0
        %1049 = vmatpush1.bf16.xpose.msra.mxu0 0
        %1050 = vmatprep.subr.bf16.mxu0 0
        %1051 = vmatpush1.bf16.xpose.msra.mxu0 0
        %1052 = vmatprep.subr.bf16.mxu0 0
        %1053 = vmatpush1.bf16.xpose.msra.mxu0 0
        %1054 = vmatprep.subr.bf16.mxu0 0
        %1055 = vmatpush1.bf16.xpose.msra.mxu0 0
        %1056 = vmatprep.subr.bf16.mxu0 0
        %1057 = vmatpush1.bf16.xpose.msra.mxu0 0
        %1058 = vmatprep.subr.bf16.mxu0 0
        %1059 = vmatpush1.bf16.xpose.msra.mxu0 0
        %1060 = vmatprep.subr.bf16.mxu0 0
        %1061 = vmatpush1.bf16.xpose.msra.mxu0 0
        %1062 = vmatprep.subr.bf16.mxu0 0
        %1063 = vmatpush1.bf16.xpose.msra.mxu0 0
        %1064 = vmatprep.subr.bf16.mxu0 0
        %1065 = vmatpush1.bf16.xpose.msra.mxu0 0
        %1066 = vmatprep.subr.bf16.mxu0 0
        %1067 = vmatpush1.bf16.xpose.msra.mxu0 0
        %1068 = vmatprep.subr.bf16.mxu0 0
        %1069 = vmatpush1.bf16.xpose.msra.mxu0 0
        %1070 = vmatprep.subr.bf16.mxu0 0
        %1071 = vmatpush1.bf16.xpose.msra.mxu0 0
        %1072 = vmatprep.mubr.bf16.mxu0 0
        %1073 = vmatmul.mubr.bf16.gmra.mrb[0].mxu0 %v1023
        %v1074 = vpop.f32.mrb[0].mxu0
        %v1075 = vadd.f32 0.0, %v1074
        %v1076 = vpop.f32.mrb[0].mxu0
        %v1077 = vpop.f32.mrb[0].mxu0
        %v1078 = vadd.f32 0.0, %v1077
        %v1079 = vpop.f32.mrb[0].mxu0
        %1080 = vmatprep.mubr.bf16.mxu0 0
        %1081 = vmatmul.mubr.bf16.gmra.mrb[0].mxu0 %v1026
        %v1082 = vpop.f32.mrb[0].mxu0
        %v1083 = vadd.f32 0.0, %v1082
        %v1084 = vpop.f32.mrb[0].mxu0
        %v1085 = vpop.f32.mrb[0].mxu0
        %v1086 = vadd.f32 0.0, %v1085
        %v1087 = vpop.f32.mrb[0].mxu0
        %1088 = vdwg.mxu0
        %v1089 = vsel %vm898, %v1075, -inf
        %1090 = vmax.xlane.f32.xlu0 %v1089
        %v1091 = vpop.xlane.xlu0 %1090
        %v1092 = vsel %vm898, %v1078, -inf
        %1093 = vmax.xlane.f32.xlu0 %v1092
        %v1094 = vpop.xlane.xlu0 %1093
        %v1095 = vsel %vm898, %v1083, -inf
        %1096 = vmax.xlane.f32.xlu0 %v1095
        %v1097 = vpop.xlane.xlu0 %1096
        %v1098 = vsel %vm898, %v1086, -inf
        %1099 = vmax.xlane.f32.xlu0 %v1098
        %v1100 = vpop.xlane.xlu0 %1099
        %v1101 = vsub.f32 %v1075, %v1091
        %v1102 = vsub.f32 %v1078, %v1094
        %v1103 = vsub.f32 %v1083, %v1097
        %v1104 = vsub.f32 %v1086, %v1100
        %v1105 = vmul.f32 %v1101, 1.442695
        %v1106 = vpow.pop %v1105
        %v1107 = vmul.f32 %v1102, 1.442695
        %v1108 = vpow.pop %v1107
        %v1109 = vmul.f32 %v1103, 1.442695
        %v1110 = vpow.pop %v1109
        %v1111 = vmul.f32 %v1104, 1.442695
        %v1112 = vpow.pop %v1111
        %v1113 = vsel %vm898, %v1106, 0.0
        %1114 = vadd.xlane.f32.xlu0 %v1113
        %v1115 = vpop.xlane.xlu0 %1114
        %v1116 = vsel %vm898, %v1108, 0.0
        %1117 = vadd.xlane.f32.xlu0 %v1116
        %v1118 = vpop.xlane.xlu0 %1117
        %v1119 = vsel %vm898, %v1110, 0.0
        %1120 = vadd.xlane.f32.xlu0 %v1119
        %v1121 = vpop.xlane.xlu0 %1120
        %v1122 = vsel %vm898, %v1112, 0.0
        %1123 = vadd.xlane.f32.xlu0 %v1122
        %v1124 = vpop.xlane.xlu0 %1123
        %v1125 = vpack.c.bf16 %v1108, %v1106
        %v1126 = vpack.c.bf16 %v1112, %v1110
        %1131 = vrot.lane.b32.xlu0 %v826, 96
        %v1132 = vpop.permute.xlu0 %1131
        %1133 = vrot.lane.b32.xlu0 %v827, 96
        %v1134 = vpop.permute.xlu0 %1133
        %1135 = vrot.lane.b32.xlu0 %v828, 96
        %v1136 = vpop.permute.xlu0 %1135
        %1137 = vrot.lane.b32.xlu0 %v829, 96
        %v1138 = vpop.permute.xlu0 %1137
        %v1144 = vsel %vm898, %v1125, 0
        %v1147 = vsel %vm898, %v1126, 0
        %1149 = vmatprep.subr.bf16.mxu0 0
        %1150 = vmatpush1.bf16.msra.mxu0 %v1132
        %1151 = vmatprep.subr.bf16.mxu0 0
        %1152 = vmatpush1.bf16.msra.mxu0 %v1134
        %1153 = vmatprep.subr.bf16.mxu0 0
        %1154 = vmatpush1.bf16.msra.mxu0 %v1136
        %1155 = vmatprep.subr.bf16.mxu0 0
        %1156 = vmatpush1.bf16.msra.mxu0 %v1138
        %1157 = vmatprep.subr.bf16.mxu0 0
        %1158 = vmatpush1.bf16.msra.mxu0 0
        %1159 = vmatprep.subr.bf16.mxu0 0
        %1160 = vmatpush1.bf16.msra.mxu0 0
        %1161 = vmatprep.subr.bf16.mxu0 0
        %1162 = vmatpush1.bf16.msra.mxu0 0
        %1163 = vmatprep.subr.bf16.mxu0 0
        %1164 = vmatpush1.bf16.msra.mxu0 0
        %1165 = vmatprep.subr.bf16.mxu0 0
        %1166 = vmatpush1.bf16.msra.mxu0 0
        %1167 = vmatprep.subr.bf16.mxu0 0
        %1168 = vmatpush1.bf16.msra.mxu0 0
        %1169 = vmatprep.subr.bf16.mxu0 0
        %1170 = vmatpush1.bf16.msra.mxu0 0
        %1171 = vmatprep.subr.bf16.mxu0 0
        %1172 = vmatpush1.bf16.msra.mxu0 0
        %1173 = vmatprep.subr.bf16.mxu0 0
        %1174 = vmatpush1.bf16.msra.mxu0 0
        %1175 = vmatprep.subr.bf16.mxu0 0
        %1176 = vmatpush1.bf16.msra.mxu0 0
        %1177 = vmatprep.subr.bf16.mxu0 0
        %1178 = vmatpush1.bf16.msra.mxu0 0
        %1179 = vmatprep.subr.bf16.mxu0 0
        %1180 = vmatpush1.bf16.msra.mxu0 0
        %1181 = vmatprep.mubr.bf16.mxu0 0
        %1182 = vmatmul.mubr.bf16.gmra.mrb[0].mxu0 %v1144
        %v1183 = vpop.f32.mrb[0].mxu0
        %v1184 = vadd.f32 0.0, %v1183
        %v1185 = vpop.f32.mrb[0].mxu0
        %v1186 = vpop.f32.mrb[0].mxu0
        %v1187 = vadd.f32 0.0, %v1186
        %v1188 = vpop.f32.mrb[0].mxu0
        %1189 = vmatprep.mubr.bf16.mxu0 0
        %1190 = vmatmul.mubr.bf16.gmra.mrb[0].mxu0 %v1147
        %v1191 = vpop.f32.mrb[0].mxu0
        %v1192 = vadd.f32 0.0, %v1191
        %v1193 = vpop.f32.mrb[0].mxu0
        %v1194 = vpop.f32.mrb[0].mxu0
        %v1195 = vadd.f32 0.0, %v1194
        %v1196 = vpop.f32.mrb[0].mxu0
        %1197 = vdwg.mxu0
        %v1198 = vrcp.pop %v1115
        %v1199 = vrcp.pop %v1118
        %v1200 = vrcp.pop %v1121
        %v1201 = vrcp.pop %v1124
        %v1202 = vmul.f32 %v1184, %v1198
        %v1203 = vmul.f32 %v1187, %v1199
        %v1204 = vmul.f32 %v1192, %v1200
        %v1205 = vmul.f32 %v1195, %v1201
        %v1206 = vpack.c.bf16 %v1203, %v1202
        %v1207 = vpack.c.bf16 %v1205, %v1204
        %1210 = vrot.lane.b32.xlu0 %v1206, 32
        %v1211 = vpop.permute.xlu0 %1210
        %1212 = vrot.lane.b32.xlu0 %v1207, 32
        %v1213 = vpop.permute.xlu0 %1212
        %vm1216 = vcmask 523520
        %1217 = vst.msk [vmem:[#allocation2] sm:$0xff] %vm1216, %v1211
        %1218 = vst.msk [vmem:[#allocation2 + $0x8] sm:$0xff] %vm1216, %v1213
        %1219 = vrot.lane.b32.xlu0 %v820, 64
        %v1220 = vpop.permute.xlu0 %1219
        %1221 = vrot.lane.b32.xlu0 %v821, 64
        %v1222 = vpop.permute.xlu0 %1221
        %1223 = vrot.lane.b32.xlu0 %v822, 64
        %v1224 = vpop.permute.xlu0 %1223
        %1225 = vrot.lane.b32.xlu0 %v823, 64
        %v1226 = vpop.permute.xlu0 %1225
        %1227 = vrot.lane.b32.xlu0 %v824, 64
        %v1228 = vpop.permute.xlu0 %1227
        %1229 = vrot.lane.b32.xlu0 %v825, 64
        %v1230 = vpop.permute.xlu0 %1229
        %v1232 = vsel %vm830, %v1220, 0
        %v1235 = vsel %vm830, %v1222, 0
        %v1238 = vsel %vm830, %v1224, 0
        %v1241 = vsel %vm830, %v1226, 0
        %v1244 = vsel %vm830, %v1228, 0
        %v1247 = vsel %vm830, %v1230, 0
        %1249 = vmatprep.subr.bf16.mxu0 0
        %1250 = vmatpush1.bf16.xpose.msra.mxu0 %v1238
        %1251 = vmatprep.subr.bf16.mxu0 0
        %1252 = vmatpush1.bf16.xpose.msra.mxu0 %v1241
        %1253 = vmatprep.subr.bf16.mxu0 0
        %1254 = vmatpush1.bf16.xpose.msra.mxu0 %v1244
        %1255 = vmatprep.subr.bf16.mxu0 0
        %1256 = vmatpush1.bf16.xpose.msra.mxu0 %v1247
        %1257 = vmatprep.subr.bf16.mxu0 0
        %1258 = vmatpush1.bf16.xpose.msra.mxu0 0
        %1259 = vmatprep.subr.bf16.mxu0 0
        %1260 = vmatpush1.bf16.xpose.msra.mxu0 0
        %1261 = vmatprep.subr.bf16.mxu0 0
        %1262 = vmatpush1.bf16.xpose.msra.mxu0 0
        %1263 = vmatprep.subr.bf16.mxu0 0
        %1264 = vmatpush1.bf16.xpose.msra.mxu0 0
        %1265 = vmatprep.subr.bf16.mxu0 0
        %1266 = vmatpush1.bf16.xpose.msra.mxu0 0
        %1267 = vmatprep.subr.bf16.mxu0 0
        %1268 = vmatpush1.bf16.xpose.msra.mxu0 0
        %1269 = vmatprep.subr.bf16.mxu0 0
        %1270 = vmatpush1.bf16.xpose.msra.mxu0 0
        %1271 = vmatprep.subr.bf16.mxu0 0
        %1272 = vmatpush1.bf16.xpose.msra.mxu0 0
        %1273 = vmatprep.subr.bf16.mxu0 0
        %1274 = vmatpush1.bf16.xpose.msra.mxu0 0
        %1275 = vmatprep.subr.bf16.mxu0 0
        %1276 = vmatpush1.bf16.xpose.msra.mxu0 0
        %1277 = vmatprep.subr.bf16.mxu0 0
        %1278 = vmatpush1.bf16.xpose.msra.mxu0 0
        %1279 = vmatprep.subr.bf16.mxu0 0
        %1280 = vmatpush1.bf16.xpose.msra.mxu0 0
        %1281 = vmatprep.mubr.bf16.mxu0 0
        %1282 = vmatmul.mubr.bf16.gmra.mrb[0].mxu0 %v1232
        %v1283 = vpop.f32.mrb[0].mxu0
        %v1284 = vadd.f32 0.0, %v1283
        %v1285 = vpop.f32.mrb[0].mxu0
        %v1286 = vpop.f32.mrb[0].mxu0
        %v1287 = vadd.f32 0.0, %v1286
        %v1288 = vpop.f32.mrb[0].mxu0
        %1289 = vmatprep.mubr.bf16.mxu0 0
        %1290 = vmatmul.mubr.bf16.gmra.mrb[0].mxu0 %v1235
        %v1291 = vpop.f32.mrb[0].mxu0
        %v1292 = vadd.f32 0.0, %v1291
        %v1293 = vpop.f32.mrb[0].mxu0
        %v1294 = vpop.f32.mrb[0].mxu0
        %v1295 = vadd.f32 0.0, %v1294
        %v1296 = vpop.f32.mrb[0].mxu0
        %1297 = vdwg.mxu0
        %v1298 = vsel %vm898, %v1284, -inf
        %1299 = vmax.xlane.f32.xlu0 %v1298
        %v1300 = vpop.xlane.xlu0 %1299
        %v1301 = vsel %vm898, %v1287, -inf
        %1302 = vmax.xlane.f32.xlu0 %v1301
        %v1303 = vpop.xlane.xlu0 %1302
        %v1304 = vsel %vm898, %v1292, -inf
        %1305 = vmax.xlane.f32.xlu0 %v1304
        %v1306 = vpop.xlane.xlu0 %1305
        %v1307 = vsel %vm898, %v1295, -inf
        %1308 = vmax.xlane.f32.xlu0 %v1307
        %v1309 = vpop.xlane.xlu0 %1308
        %v1310 = vsub.f32 %v1284, %v1300
        %v1311 = vsub.f32 %v1287, %v1303
        %v1312 = vsub.f32 %v1292, %v1306
        %v1313 = vsub.f32 %v1295, %v1309
        %v1314 = vmul.f32 %v1310, 1.442695
        %v1315 = vpow.pop %v1314
        %v1316 = vmul.f32 %v1311, 1.442695
        %v1317 = vpow.pop %v1316
        %v1318 = vmul.f32 %v1312, 1.442695
        %v1319 = vpow.pop %v1318
        %v1320 = vmul.f32 %v1313, 1.442695
        %v1321 = vpow.pop %v1320
        %v1322 = vsel %vm898, %v1315, 0.0
        %1323 = vadd.xlane.f32.xlu0 %v1322
        %v1324 = vpop.xlane.xlu0 %1323
        %v1325 = vsel %vm898, %v1317, 0.0
        %1326 = vadd.xlane.f32.xlu0 %v1325
        %v1327 = vpop.xlane.xlu0 %1326
        %v1328 = vsel %vm898, %v1319, 0.0
        %1329 = vadd.xlane.f32.xlu0 %v1328
        %v1330 = vpop.xlane.xlu0 %1329
        %v1331 = vsel %vm898, %v1321, 0.0
        %1332 = vadd.xlane.f32.xlu0 %v1331
        %v1333 = vpop.xlane.xlu0 %1332
        %v1334 = vpack.c.bf16 %v1317, %v1315
        %v1335 = vpack.c.bf16 %v1321, %v1319
        %1336 = vrot.lane.b32.xlu0 %v826, 64
        %v1337 = vpop.permute.xlu0 %1336
        %1338 = vrot.lane.b32.xlu0 %v827, 64
        %v1339 = vpop.permute.xlu0 %1338
        %1340 = vrot.lane.b32.xlu0 %v828, 64
        %v1341 = vpop.permute.xlu0 %1340
        %1342 = vrot.lane.b32.xlu0 %v829, 64
        %v1343 = vpop.permute.xlu0 %1342
        %v1349 = vsel %vm898, %v1334, 0
        %v1352 = vsel %vm898, %v1335, 0
        %1354 = vmatprep.subr.bf16.mxu0 0
        %1355 = vmatpush1.bf16.msra.mxu0 %v1337
        %1356 = vmatprep.subr.bf16.mxu0 0
        %1357 = vmatpush1.bf16.msra.mxu0 %v1339
        %1358 = vmatprep.subr.bf16.mxu0 0
        %1359 = vmatpush1.bf16.msra.mxu0 %v1341
        %1360 = vmatprep.subr.bf16.mxu0 0
        %1361 = vmatpush1.bf16.msra.mxu0 %v1343
        %1362 = vmatprep.subr.bf16.mxu0 0
        %1363 = vmatpush1.bf16.msra.mxu0 0
        %1364 = vmatprep.subr.bf16.mxu0 0
        %1365 = vmatpush1.bf16.msra.mxu0 0
        %1366 = vmatprep.subr.bf16.mxu0 0
        %1367 = vmatpush1.bf16.msra.mxu0 0
        %1368 = vmatprep.subr.bf16.mxu0 0
        %1369 = vmatpush1.bf16.msra.mxu0 0
        %1370 = vmatprep.subr.bf16.mxu0 0
        %1371 = vmatpush1.bf16.msra.mxu0 0
        %1372 = vmatprep.subr.bf16.mxu0 0
        %1373 = vmatpush1.bf16.msra.mxu0 0
        %1374 = vmatprep.subr.bf16.mxu0 0
        %1375 = vmatpush1.bf16.msra.mxu0 0
        %1376 = vmatprep.subr.bf16.mxu0 0
        %1377 = vmatpush1.bf16.msra.mxu0 0
        %1378 = vmatprep.subr.bf16.mxu0 0
        %1379 = vmatpush1.bf16.msra.mxu0 0
        %1380 = vmatprep.subr.bf16.mxu0 0
        %1381 = vmatpush1.bf16.msra.mxu0 0
        %1382 = vmatprep.subr.bf16.mxu0 0
        %1383 = vmatpush1.bf16.msra.mxu0 0
        %1384 = vmatprep.subr.bf16.mxu0 0
        %1385 = vmatpush1.bf16.msra.mxu0 0
        %1386 = vmatprep.mubr.bf16.mxu0 0
        %1387 = vmatmul.mubr.bf16.gmra.mrb[0].mxu0 %v1349
        %v1388 = vpop.f32.mrb[0].mxu0
        %v1389 = vadd.f32 0.0, %v1388
        %v1390 = vpop.f32.mrb[0].mxu0
        %v1391 = vpop.f32.mrb[0].mxu0
        %v1392 = vadd.f32 0.0, %v1391
        %v1393 = vpop.f32.mrb[0].mxu0
        %1394 = vmatprep.mubr.bf16.mxu0 0
        %1395 = vmatmul.mubr.bf16.gmra.mrb[0].mxu0 %v1352
        %v1396 = vpop.f32.mrb[0].mxu0
        %v1397 = vadd.f32 0.0, %v1396
        %v1398 = vpop.f32.mrb[0].mxu0
        %v1399 = vpop.f32.mrb[0].mxu0
        %v1400 = vadd.f32 0.0, %v1399
        %v1401 = vpop.f32.mrb[0].mxu0
        %1402 = vdwg.mxu0
        %v1403 = vrcp.pop %v1324
        %v1404 = vrcp.pop %v1327
        %v1405 = vrcp.pop %v1330
        %v1406 = vrcp.pop %v1333
        %v1407 = vmul.f32 %v1389, %v1403
        %v1408 = vmul.f32 %v1392, %v1404
        %v1409 = vmul.f32 %v1397, %v1405
        %v1410 = vmul.f32 %v1400, %v1406
        %v1411 = vpack.c.bf16 %v1408, %v1407
        %v1412 = vpack.c.bf16 %v1410, %v1409
        %1415 = vrot.lane.b32.xlu0 %v1411, 64
        %v1416 = vpop.permute.xlu0 %1415
        %1417 = vrot.lane.b32.xlu0 %v1412, 64
        %v1418 = vpop.permute.xlu0 %1417
        %vm1421 = vcmask 785920
        %1422 = vst.msk [vmem:[#allocation2] sm:$0xff] %vm1421, %v1416
        %1423 = vst.msk [vmem:[#allocation2 + $0x8] sm:$0xff] %vm1421, %v1418
        %1424 = vrot.lane.b32.xlu0 %v820, 32
        %v1425 = vpop.permute.xlu0 %1424
        %1426 = vrot.lane.b32.xlu0 %v821, 32
        %v1427 = vpop.permute.xlu0 %1426
        %1428 = vrot.lane.b32.xlu0 %v822, 32
        %v1429 = vpop.permute.xlu0 %1428
        %1430 = vrot.lane.b32.xlu0 %v823, 32
        %v1431 = vpop.permute.xlu0 %1430
        %1432 = vrot.lane.b32.xlu0 %v824, 32
        %v1433 = vpop.permute.xlu0 %1432
        %1434 = vrot.lane.b32.xlu0 %v825, 32
        %v1435 = vpop.permute.xlu0 %1434
        %v1437 = vsel %vm830, %v1425, 0
        %v1440 = vsel %vm830, %v1427, 0
        %v1443 = vsel %vm830, %v1429, 0
        %v1446 = vsel %vm830, %v1431, 0
        %v1449 = vsel %vm830, %v1433, 0
        %v1452 = vsel %vm830, %v1435, 0
        %1454 = vmatprep.subr.bf16.mxu0 0
        %1455 = vmatpush1.bf16.xpose.msra.mxu0 %v1443
        %1456 = vmatprep.subr.bf16.mxu0 0
        %1457 = vmatpush1.bf16.xpose.msra.mxu0 %v1446
        %1458 = vmatprep.subr.bf16.mxu0 0
        %1459 = vmatpush1.bf16.xpose.msra.mxu0 %v1449
        %1460 = vmatprep.subr.bf16.mxu0 0
        %1461 = vmatpush1.bf16.xpose.msra.mxu0 %v1452
        %1462 = vmatprep.subr.bf16.mxu0 0
        %1463 = vmatpush1.bf16.xpose.msra.mxu0 0
        %1464 = vmatprep.subr.bf16.mxu0 0
        %1465 = vmatpush1.bf16.xpose.msra.mxu0 0
        %1466 = vmatprep.subr.bf16.mxu0 0
        %1467 = vmatpush1.bf16.xpose.msra.mxu0 0
        %1468 = vmatprep.subr.bf16.mxu0 0
        %1469 = vmatpush1.bf16.xpose.msra.mxu0 0
        %1470 = vmatprep.subr.bf16.mxu0 0
        %1471 = vmatpush1.bf16.xpose.msra.mxu0 0
        %1472 = vmatprep.subr.bf16.mxu0 0
        %1473 = vmatpush1.bf16.xpose.msra.mxu0 0
        %1474 = vmatprep.subr.bf16.mxu0 0
        %1475 = vmatpush1.bf16.xpose.msra.mxu0 0
        %1476 = vmatprep.subr.bf16.mxu0 0
        %1477 = vmatpush1.bf16.xpose.msra.mxu0 0
        %1478 = vmatprep.subr.bf16.mxu0 0
        %1479 = vmatpush1.bf16.xpose.msra.mxu0 0
        %1480 = vmatprep.subr.bf16.mxu0 0
        %1481 = vmatpush1.bf16.xpose.msra.mxu0 0
        %1482 = vmatprep.subr.bf16.mxu0 0
        %1483 = vmatpush1.bf16.xpose.msra.mxu0 0
        %1484 = vmatprep.subr.bf16.mxu0 0
        %1485 = vmatpush1.bf16.xpose.msra.mxu0 0
        %1486 = vmatprep.mubr.bf16.mxu0 0
        %1487 = vmatmul.mubr.bf16.gmra.mrb[0].mxu0 %v1437
        %v1488 = vpop.f32.mrb[0].mxu0
        %v1489 = vadd.f32 0.0, %v1488
        %v1490 = vpop.f32.mrb[0].mxu0
        %v1491 = vpop.f32.mrb[0].mxu0
        %v1492 = vadd.f32 0.0, %v1491
        %v1493 = vpop.f32.mrb[0].mxu0
        %1494 = vmatprep.mubr.bf16.mxu0 0
        %1495 = vmatmul.mubr.bf16.gmra.mrb[0].mxu0 %v1440
        %v1496 = vpop.f32.mrb[0].mxu0
        %v1497 = vadd.f32 0.0, %v1496
        %v1498 = vpop.f32.mrb[0].mxu0
        %v1499 = vpop.f32.mrb[0].mxu0
        %v1500 = vadd.f32 0.0, %v1499
        %v1501 = vpop.f32.mrb[0].mxu0
        %1502 = vdwg.mxu0
        %v1503 = vsel %vm898, %v1489, -inf
        %1504 = vmax.xlane.f32.xlu0 %v1503
        %v1505 = vpop.xlane.xlu0 %1504
        %v1506 = vsel %vm898, %v1492, -inf
        %1507 = vmax.xlane.f32.xlu0 %v1506
        %v1508 = vpop.xlane.xlu0 %1507
        %v1509 = vsel %vm898, %v1497, -inf
        %1510 = vmax.xlane.f32.xlu0 %v1509
        %v1511 = vpop.xlane.xlu0 %1510
        %v1512 = vsel %vm898, %v1500, -inf
        %1513 = vmax.xlane.f32.xlu0 %v1512
        %v1514 = vpop.xlane.xlu0 %1513
        %v1515 = vsub.f32 %v1489, %v1505
        %v1516 = vsub.f32 %v1492, %v1508
        %v1517 = vsub.f32 %v1497, %v1511
        %v1518 = vsub.f32 %v1500, %v1514
        %v1519 = vmul.f32 %v1515, 1.442695
        %v1520 = vpow.pop %v1519
        %v1521 = vmul.f32 %v1516, 1.442695
        %v1522 = vpow.pop %v1521
        %v1523 = vmul.f32 %v1517, 1.442695
        %v1524 = vpow.pop %v1523
        %v1525 = vmul.f32 %v1518, 1.442695
        %v1526 = vpow.pop %v1525
        %v1527 = vsel %vm898, %v1520, 0.0
        %1528 = vadd.xlane.f32.xlu0 %v1527
        %v1529 = vpop.xlane.xlu0 %1528
        %v1530 = vsel %vm898, %v1522, 0.0
        %1531 = vadd.xlane.f32.xlu0 %v1530
        %v1532 = vpop.xlane.xlu0 %1531
        %v1533 = vsel %vm898, %v1524, 0.0
        %1534 = vadd.xlane.f32.xlu0 %v1533
        %v1535 = vpop.xlane.xlu0 %1534
        %v1536 = vsel %vm898, %v1526, 0.0
        %1537 = vadd.xlane.f32.xlu0 %v1536
        %v1538 = vpop.xlane.xlu0 %1537
        %v1539 = vpack.c.bf16 %v1522, %v1520
        %v1540 = vpack.c.bf16 %v1526, %v1524
        %1541 = vrot.lane.b32.xlu0 %v826, 32
        %v1542 = vpop.permute.xlu0 %1541
        %1543 = vrot.lane.b32.xlu0 %v827, 32
        %v1544 = vpop.permute.xlu0 %1543
        %1545 = vrot.lane.b32.xlu0 %v828, 32
        %v1546 = vpop.permute.xlu0 %1545
        %1547 = vrot.lane.b32.xlu0 %v829, 32
        %v1548 = vpop.permute.xlu0 %1547
        %v1554 = vsel %vm898, %v1539, 0
        %v1557 = vsel %vm898, %v1540, 0
        %1559 = vmatprep.subr.bf16.mxu0 0
        %1560 = vmatpush1.bf16.msra.mxu0 %v1542
        %1561 = vmatprep.subr.bf16.mxu0 0
        %1562 = vmatpush1.bf16.msra.mxu0 %v1544
        %1563 = vmatprep.subr.bf16.mxu0 0
        %1564 = vmatpush1.bf16.msra.mxu0 %v1546
        %1565 = vmatprep.subr.bf16.mxu0 0
        %1566 = vmatpush1.bf16.msra.mxu0 %v1548
        %1567 = vmatprep.subr.bf16.mxu0 0
        %1568 = vmatpush1.bf16.msra.mxu0 0
        %1569 = vmatprep.subr.bf16.mxu0 0
        %1570 = vmatpush1.bf16.msra.mxu0 0
        %1571 = vmatprep.subr.bf16.mxu0 0
        %1572 = vmatpush1.bf16.msra.mxu0 0
        %1573 = vmatprep.subr.bf16.mxu0 0
        %1574 = vmatpush1.bf16.msra.mxu0 0
        %1575 = vmatprep.subr.bf16.mxu0 0
        %1576 = vmatpush1.bf16.msra.mxu0 0
        %1577 = vmatprep.subr.bf16.mxu0 0
        %1578 = vmatpush1.bf16.msra.mxu0 0
        %1579 = vmatprep.subr.bf16.mxu0 0
        %1580 = vmatpush1.bf16.msra.mxu0 0
        %1581 = vmatprep.subr.bf16.mxu0 0
        %1582 = vmatpush1.bf16.msra.mxu0 0
        %1583 = vmatprep.subr.bf16.mxu0 0
        %1584 = vmatpush1.bf16.msra.mxu0 0
        %1585 = vmatprep.subr.bf16.mxu0 0
        %1586 = vmatpush1.bf16.msra.mxu0 0
        %1587 = vmatprep.subr.bf16.mxu0 0
        %1588 = vmatpush1.bf16.msra.mxu0 0
        %1589 = vmatprep.subr.bf16.mxu0 0
        %1590 = vmatpush1.bf16.msra.mxu0 0
        %1591 = vmatprep.mubr.bf16.mxu0 0
        %1592 = vmatmul.mubr.bf16.gmra.mrb[0].mxu0 %v1554
        %v1593 = vpop.f32.mrb[0].mxu0
        %v1594 = vadd.f32 0.0, %v1593
        %v1595 = vpop.f32.mrb[0].mxu0
        %v1596 = vpop.f32.mrb[0].mxu0
        %v1597 = vadd.f32 0.0, %v1596
        %v1598 = vpop.f32.mrb[0].mxu0
        %1599 = vmatprep.mubr.bf16.mxu0 0
        %1600 = vmatmul.mubr.bf16.gmra.mrb[0].mxu0 %v1557
        %v1601 = vpop.f32.mrb[0].mxu0
        %v1602 = vadd.f32 0.0, %v1601
        %v1603 = vpop.f32.mrb[0].mxu0
        %v1604 = vpop.f32.mrb[0].mxu0
        %v1605 = vadd.f32 0.0, %v1604
        %v1606 = vpop.f32.mrb[0].mxu0
        %1607 = vdwg.mxu0
        %v1608 = vrcp.pop %v1529
        %v1609 = vrcp.pop %v1532
        %v1610 = vrcp.pop %v1535
        %v1611 = vrcp.pop %v1538
        %v1612 = vmul.f32 %v1594, %v1608
        %v1613 = vmul.f32 %v1597, %v1609
        %v1614 = vmul.f32 %v1602, %v1610
        %v1615 = vmul.f32 %v1605, %v1611
        %v1616 = vpack.c.bf16 %v1613, %v1612
        %v1617 = vpack.c.bf16 %v1615, %v1614
        %1620 = vrot.lane.b32.xlu0 %v1616, 96
        %v1621 = vpop.permute.xlu0 %1620
        %1622 = vrot.lane.b32.xlu0 %v1617, 96
        %v1623 = vpop.permute.xlu0 %1622
        %vm1626 = vcmask 1048320
        %1627 = vst.msk [vmem:[#allocation2] sm:$0xff] %vm1626, %v1621
        %1628 = vst.msk [vmem:[#allocation2 + $0x8] sm:$0xff] %vm1626, %v1623
        %v1629 = vld [vmem:[#allocation2] sm:$0xff]
        %v1630 = vld [vmem:[#allocation2 + $0x8] sm:$0xff]
        %v1631 = vld [vmem:[%s7] sm:$0xf]
        %v1632 = vld [vmem:[%s7 + $0x4] sm:$0xf]
        %v1633 = vld [vmem:[%s7 + $0x8] sm:$0xf]
        %v1634 = vld [vmem:[%s7 + $0xc] sm:$0xf]
        %v1635 = vld [vmem:[%s7 + $0x10] sm:$0xf]
        %v1636 = vld [vmem:[%s7 + $0x14] sm:$0xf]
        %v1637 = vld [vmem:[%s7 + $0x18] sm:$0xf]
        %v1638 = vld [vmem:[%s7 + $0x1c] sm:$0xf]
        %v1639 = vld [vmem:[%s7 + $0x20] sm:$0xf]
        %v1640 = vld [vmem:[%s7 + $0x24] sm:$0xf]
        %v1641 = vld [vmem:[%s7 + $0x28] sm:$0xf]
        %v1642 = vld [vmem:[%s7 + $0x2c] sm:$0xf]
        %v1643 = vld [vmem:[%s7 + $0x30] sm:$0xf]
        %v1644 = vld [vmem:[%s7 + $0x34] sm:$0xf]
        %v1645 = vld [vmem:[%s7 + $0x38] sm:$0xf]
        %v1646 = vld [vmem:[%s7 + $0x3c] sm:$0xf]
        %v1647 = vld [vmem:[%s8] sm:$0x1]
        %v1649 = vlaneseq
        %v1650 = vshrl.u32 %v1649, 7
        %v1651 = vsub.s32 0, %v1650
        %v1652 = vrot.slane %v1647, %v1651
        %v1670 = vunpack.c.l.b16 %v1631
        %v1671 = vunpack.c.l.b16 %v1632
        %v1672 = vunpack.c.l.b16 %v1633
        %v1673 = vunpack.c.l.b16 %v1634
        %v1674 = vunpack.c.l.b16 %v1635
        %v1675 = vunpack.c.l.b16 %v1636
        %v1676 = vunpack.c.l.b16 %v1637
        %v1677 = vunpack.c.l.b16 %v1638
        %v1678 = vunpack.c.l.b16 %v1639
        %v1679 = vunpack.c.l.b16 %v1640
        %v1680 = vunpack.c.l.b16 %v1641
        %v1681 = vunpack.c.l.b16 %v1642
        %v1682 = vunpack.c.l.b16 %v1643
        %v1683 = vunpack.c.l.b16 %v1644
        %v1684 = vunpack.c.l.b16 %v1645
        %v1685 = vunpack.c.l.b16 %v1646
        %v1686 = vpack.c.b16 %v1671, %v1670
        %v1687 = vpack.c.b16 %v1673, %v1672
        %v1688 = vpack.c.b16 %v1675, %v1674
        %v1689 = vpack.c.b16 %v1677, %v1676
        %v1690 = vpack.c.b16 %v1679, %v1678
        %v1691 = vpack.c.b16 %v1681, %v1680
        %v1692 = vpack.c.b16 %v1683, %v1682
        %v1693 = vpack.c.b16 %v1685, %v1684
        %1702 = vmatprep.subr.bf16.mxu0 0
        %1703 = vmatpush1.bf16.msra.mxu0 %v1686
        %1704 = vmatprep.subr.bf16.mxu0 0
        %1705 = vmatpush1.bf16.msra.mxu0 %v1687
        %1706 = vmatprep.subr.bf16.mxu0 0
        %1707 = vmatpush1.bf16.msra.mxu0 %v1688
        %1708 = vmatprep.subr.bf16.mxu0 0
        %1709 = vmatpush1.bf16.msra.mxu0 %v1689
        %1710 = vmatprep.subr.bf16.mxu0 0
        %1711 = vmatpush1.bf16.msra.mxu0 %v1690
        %1712 = vmatprep.subr.bf16.mxu0 0
        %1713 = vmatpush1.bf16.msra.mxu0 %v1691
        %1714 = vmatprep.subr.bf16.mxu0 0
        %1715 = vmatpush1.bf16.msra.mxu0 %v1692
        %1716 = vmatprep.subr.bf16.mxu0 0
        %1717 = vmatpush1.bf16.msra.mxu0 %v1693
        %1718 = vmatprep.subr.bf16.mxu0 0
        %1719 = vmatpush1.bf16.msra.mxu0 0
        %1720 = vmatprep.subr.bf16.mxu0 0
        %1721 = vmatpush1.bf16.msra.mxu0 0
        %1722 = vmatprep.subr.bf16.mxu0 0
        %1723 = vmatpush1.bf16.msra.mxu0 0
        %1724 = vmatprep.subr.bf16.mxu0 0
        %1725 = vmatpush1.bf16.msra.mxu0 0
        %1726 = vmatprep.subr.bf16.mxu0 0
        %1727 = vmatpush1.bf16.msra.mxu0 0
        %1728 = vmatprep.subr.bf16.mxu0 0
        %1729 = vmatpush1.bf16.msra.mxu0 0
        %1730 = vmatprep.subr.bf16.mxu0 0
        %1731 = vmatpush1.bf16.msra.mxu0 0
        %1732 = vmatprep.subr.bf16.mxu0 0
        %1733 = vmatpush1.bf16.msra.mxu0 0
        %1734 = vmatprep.mubr.bf16.mxu0 0
        %1735 = vmatmul.mubr.bf16.gmra.mrb[0].mxu0 %v1629
        %v1736 = vpop.f32.mrb[0].mxu0
        %v1737 = vadd.f32 %v1652, %v1736
        %v1738 = vpop.f32.mrb[0].mxu0
        %v1739 = vpop.f32.mrb[0].mxu0
        %v1740 = vadd.f32 %v1652, %v1739
        %v1741 = vpop.f32.mrb[0].mxu0
        %1742 = vmatprep.mubr.bf16.mxu0 0
        %1743 = vmatmul.mubr.bf16.gmra.mrb[0].mxu0 %v1630
        %v1744 = vpop.f32.mrb[0].mxu0
        %v1745 = vadd.f32 %v1652, %v1744
        %v1746 = vpop.f32.mrb[0].mxu0
        %v1747 = vpop.f32.mrb[0].mxu0
        %v1748 = vadd.f32 %v1652, %v1747
        %v1749 = vpop.f32.mrb[0].mxu0
        %1750 = vdwg.mxu0
        %1751 = vst [vmem:[%s365] sm:$0xff] %v1737
        %1752 = vst [vmem:[%s365 + $0x8] sm:$0xff] %v1740
        %1753 = vst [vmem:[%s365 + $0x10] sm:$0xff] %v1745
        %1754 = vst [vmem:[%s365 + $0x18] sm:$0xff] %v1748
        %s1755 = sand.u32 %s246, 1
        %s1756 = scalar_lea.sflag [#allocation4], %s1755
        %s1757 = sand.u32 %s246, 1
        %s1758 = smul.addr %s1757, 32
        %s1759 = scalar_lea.vmem [#allocation3], %s1758
        // Predicated region
        $region57: #{duma_layer_forward.2} parent=55 // pred_check
          %p1760 = pneg %p256
        $region58: #{duma_layer_forward.2} parent=55 // pred_check_branch
          %1762 = sbr.rel (%p1760) target = $region60
        $region59: #{duma_layer_forward.2} parent=55 // pred_region
          %s1763 = smul.u32 4, %s28
          %s1765 = ssub.s32 512, 512
          %1766 = vsyncadd %s1756, %s1765
          %s1767 = smul.addr %s27, 4
          %s1768 = sadd.s32 %s1763, %s1767
          %s1769 = smul.addr %s1768, 128
          %s1770 = scalar_lea.hbm %s9, %s1769
          %s1771 = sshll.u32 %s1759, 4
          %s1772 = int_to_ptr.vmem [resolvable:$true] %s1771
          %1777 = dma.vmem_to_hbm [thread:$0]  %s1772, 512, %s1770, %s1756, 128, 128, 8
        $region60: #{duma_layer_forward.2} parent=55 // pred_fallthru
          _
      $region56: #{duma_layer_forward.2} parent=5 // pred_fallthru
        _
      %p1778 = scmp.le.s32.totalorder 2, %s18
      // Predicated region
      $region61: #{duma_layer_forward.2} parent=5 // pred_check
        %p1779 = pneg %p1778
      $region62: #{duma_layer_forward.2} parent=5 // pred_check_branch
        %1781 = sbr.rel (%p1779) target = $region64
      $region63: #{duma_layer_forward.2} parent=5 // pred_region
        %s1782 = ssub.s32 %s18, 2
        // Predicated region
        $region65: #{duma_layer_forward.2} parent=63 // pred_check
          %p1783 = pneg %p262
        $region66: #{duma_layer_forward.2} parent=63 // pred_check_branch
          %1785 = sbr.rel (%p1783) target = $region68
        $region67: #{duma_layer_forward.2} parent=63 // pred_region
          %s1786 = sand.u32 %s247, 1
          %s1787 = scalar_lea.sflag [#allocation4], %s1786
          %s1788 = sand.u32 %s247, 1
          %s1789 = smul.addr %s1788, 32
          %s1790 = scalar_lea.vmem [#allocation3], %s1789
          %1791 = dma.done %s1787, 512
        $region68: #{duma_layer_forward.2} parent=63 // pred_fallthru
          _
      $region64: #{duma_layer_forward.2} parent=5 // pred_fallthru
        _
    $region6: #{duma_layer_forward.2} parent=1 // loop_footer
      %s22 = sadd.s32 1, %s18
    $region7: #{duma_layer_forward.2} parent=1 // loop_footer_branch
      %17 = sbr.rel target = $region3
    $region8: #{duma_layer_forward.2} parent=1 // loop_exit
      _
    %1792 = vsyncpa [#allocation4], 1
    %s1793 = scalar_lea.sflag [#allocation4], 1
    %1794 = vsyncpa %s1793, 1

// kernel: duma_layer_forward.3
$region0: #{duma_layer_forward.3}
  #allocation0 [shape = 'u32[]', space=smem, size = 0x4, offset = 0x4, fixed_abs, tag = 'smem constant byte address 0x4 - core index']
  #allocation1 [shape = 'u32[144,128]{1,0:T(1,128)}', space=vmem, size = 0x12000, scoped, tag = 'internal scratch']
  #allocation2 [shape = 'bf16[64,128]{1,0:T(16,128)(2,1)}', space=vmem, size = 0x4000, scoped, tag = 'scratch operand']
  %s0 = inlined_call_operand.vmem [shape: bf16[2,64,128], index: 0, kind: input, shape index: {}]
  %s1 = inlined_call_operand.vmem [shape: bf16[2,32,128], index: 1, kind: input, shape index: {}]
  %s2 = inlined_call_operand.vmem [shape: bf16[128,128], index: 2, kind: input, shape index: {}]
  %s3 = inlined_call_operand.vmem [shape: f32[1,128], index: 3, kind: input, shape index: {}]
  %s4 = inlined_call_operand.vmem [shape: bf16[128,128], index: 4, kind: input, shape index: {}]
  %s5 = inlined_call_operand.vmem [shape: bf16[128,128], index: 5, kind: input, shape index: {}]
  %s6 = inlined_call_operand.vmem [shape: f32[1,128], index: 6, kind: input, shape index: {}]
  %s7 = inlined_call_operand.vmem [shape: bf16[128,128], index: 7, kind: input, shape index: {}]
  %s8 = inlined_call_operand.vmem [shape: f32[1,128], index: 8, kind: input, shape index: {}]
  %s9 = inlined_call_operand.hbm [shape: f32[2,64,128], index: 9, kind: output, shape index: {}]
  %s10 = sld [smem:[#allocation0]]
  $region69: #{duma_layer_forward.3} parent=0
    _
  %s12 = ssub.s32 1, %s10
  %s13 = scalar_select 0, %s12, %s10
  $region1: #{duma_layer_forward.3} parent=0
    #allocation3 [shape = 'u8[65536]{0}', space=vmem, size = 0x10000, scoped, tag = 'output window, operand 0']
    #allocation4 [shape = 's32[2]{0}', space=sflag, size = 0x8, scoped, tag = 'scoped memory for duma_layer_forward.3']
    %14 = vsyncpa [#allocation4], 0
    %s15 = scalar_lea.sflag [#allocation4], 1
    %16 = vsyncpa %s15, 0
    loop: start=0, step=1, limit=4
    $region2: #{duma_layer_forward.3} parent=1 // loop_pre_header
      _
    $region3: #{duma_layer_forward.3} parent=1 // loop_header
      %s18 = sphi 0, %s22
      %p19 = scmp.ge.s32.totalorder %s18, 4
      %s25 = sphi 0, %s37
      %s26 = sphi 0, %s33
      %s27 = sphi 0, %s25
      %s28 = sphi 0, %s26
      %s29 = sphi 0, %s27
      %s30 = sphi 0, %s28
      %s42 = sphi 0, %s44
      %s45 = sphi 0, %s42
      %s46 = sphi 0, %s45
      %s62 = sphi 0, %s46
      %s68 = sphi 0, %s70
      %s71 = sphi 0, %s68
      %s72 = sphi 0, %s71
      %s88 = sphi 0, %s72
      %s92 = sphi 0, %s92
      %s94 = sphi 0, %s92
      %s95 = sphi 0, %s94
      %s109 = sphi 0, %s95
      %s113 = sphi 0, %s113
      %s115 = sphi 0, %s113
      %s116 = sphi 0, %s115
      %s130 = sphi 0, %s116
      %s134 = sphi 0, %s134
      %s136 = sphi 0, %s134
      %s137 = sphi 0, %s136
      %s151 = sphi 0, %s137
      %s155 = sphi 0, %s155
      %s157 = sphi 0, %s155
      %s158 = sphi 0, %s157
      %s172 = sphi 0, %s158
      %s176 = sphi 0, %s176
      %s178 = sphi 0, %s176
      %s179 = sphi 0, %s178
      %s193 = sphi 0, %s179
      %s197 = sphi 0, %s197
      %s199 = sphi 0, %s197
      %s200 = sphi 0, %s199
      %s214 = sphi 0, %s200
      %s218 = sphi 0, %s218
      %s220 = sphi 0, %s218
      %s221 = sphi 0, %s220
      %s235 = sphi 0, %s221
      %s243 = sphi 0, %s245
      %s246 = sphi 0, %s243
      %s247 = sphi 0, %s246
      %s263 = sphi 0, %s247
    $region4: #{duma_layer_forward.3} parent=1 // loop_header_branch
      %21 = sbr.rel (%p19) target = $region8
    $region5: #{duma_layer_forward.3} parent=1 // loop_body
      %s23 = ssub.s32 %s18, 1
      %s24 = ssub.s32 %s18, 2
      %s31 = sadd.s32 1, %s26
      %p32 = scmp.ge.s32.totalorder %s31, 1
      %s33 = scalar_select %p32, 0, %s31
      %s34 = sadd.s32 1, %s25
      %s35 = scalar_select %p32, %s34, %s25
      %p36 = scmp.ge.s32.totalorder %s35, 2
      %s37 = scalar_select %p36, 0, %s35
      %s38 = ssub.s32 %s25, %s37
      %s39 = ssub.s32 %s26, %s33
      %s40 = sor.u32 %s38, %s39
      %p41 = scmp.eq.s32.totalorder %s40, 0
      %s43 = sadd.s32 %s42, 1
      %s44 = scalar_select %p41, %s42, %s43
      %p47 = pneg %p41
      %p48 = scmp.eq.s32.totalorder %s18, 1
      %p49 = por %p47, %p48
      %p50 = scmp.ne.s32.totalorder %s42, %s45
      %p51 = scmp.eq.s32.totalorder %s18, 0
      %p52 = por %p50, %p51
      %p53 = scmp.ne.s32.totalorder %s42, %s45
      %p54 = scmp.eq.s32.totalorder %s23, 1
      %p55 = por %p53, %p54
      %p56 = scmp.ne.s32.totalorder %s45, %s46
      %p57 = scmp.eq.s32.totalorder %s23, 0
      %p58 = por %p56, %p57
      %p59 = scmp.ne.s32.totalorder %s45, %s46
      %p60 = scmp.eq.s32.totalorder %s24, 1
      %p61 = por %p59, %p60
      %p63 = scmp.ne.s32.totalorder %s46, %s62
      %p64 = scmp.eq.s32.totalorder %s24, 0
      %p65 = por %p63, %p64
      %s66 = ssub.s32 %s25, %s37
      %p67 = scmp.eq.s32.totalorder %s66, 0
      %s69 = sadd.s32 %s68, 1
      %s70 = scalar_select %p67, %s68, %s69
      %p73 = pneg %p67
      %p74 = scmp.eq.s32.totalorder %s18, 1
      %p75 = por %p73, %p74
      %p76 = scmp.ne.s32.totalorder %s68, %s71
      %p77 = scmp.eq.s32.totalorder %s18, 0
      %p78 = por %p76, %p77
      %p79 = scmp.ne.s32.totalorder %s68, %s71
      %p80 = scmp.eq.s32.totalorder %s23, 1
      %p81 = por %p79, %p80
      %p82 = scmp.ne.s32.totalorder %s71, %s72
      %p83 = scmp.eq.s32.totalorder %s23, 0
      %p84 = por %p82, %p83
      %p85 = scmp.ne.s32.totalorder %s71, %s72
      %p86 = scmp.eq.s32.totalorder %s24, 1
      %p87 = por %p85, %p86
      %p89 = scmp.ne.s32.totalorder %s72, %s88
      %p90 = scmp.eq.s32.totalorder %s24, 0
      %p91 = por %p89, %p90
      %s93 = sadd.s32 %s92, 1
      %p96 = scmp.eq.s32.totalorder %s18, 1
      %p97 = scmp.ne.s32.totalorder %s92, %s94
      %p98 = scmp.eq.s32.totalorder %s18, 0
      %p99 = por %p97, %p98
      %p100 = scmp.ne.s32.totalorder %s92, %s94
      %p101 = scmp.eq.s32.totalorder %s23, 1
      %p102 = por %p100, %p101
      %p103 = scmp.ne.s32.totalorder %s94, %s95
      %p104 = scmp.eq.s32.totalorder %s23, 0
      %p105 = por %p103, %p104
      %p106 = scmp.ne.s32.totalorder %s94, %s95
      %p107 = scmp.eq.s32.totalorder %s24, 1
      %p108 = por %p106, %p107
      %p110 = scmp.ne.s32.totalorder %s95, %s109
      %p111 = scmp.eq.s32.totalorder %s24, 0
      %p112 = por %p110, %p111
      %s114 = sadd.s32 %s113, 1
      %p117 = scmp.eq.s32.totalorder %s18, 1
      %p118 = scmp.ne.s32.totalorder %s113, %s115
      %p119 = scmp.eq.s32.totalorder %s18, 0
      %p120 = por %p118, %p119
      %p121 = scmp.ne.s32.totalorder %s113, %s115
      %p122 = scmp.eq.s32.totalorder %s23, 1
      %p123 = por %p121, %p122
      %p124 = scmp.ne.s32.totalorder %s115, %s116
      %p125 = scmp.eq.s32.totalorder %s23, 0
      %p126 = por %p124, %p125
      %p127 = scmp.ne.s32.totalorder %s115, %s116
      %p128 = scmp.eq.s32.totalorder %s24, 1
      %p129 = por %p127, %p128
      %p131 = scmp.ne.s32.totalorder %s116, %s130
      %p132 = scmp.eq.s32.totalorder %s24, 0
      %p133 = por %p131, %p132
      %s135 = sadd.s32 %s134, 1
      %p138 = scmp.eq.s32.totalorder %s18, 1
      %p139 = scmp.ne.s32.totalorder %s134, %s136
      %p140 = scmp.eq.s32.totalorder %s18, 0
      %p141 = por %p139, %p140
      %p142 = scmp.ne.s32.totalorder %s134, %s136
      %p143 = scmp.eq.s32.totalorder %s23, 1
      %p144 = por %p142, %p143
      %p145 = scmp.ne.s32.totalorder %s136, %s137
      %p146 = scmp.eq.s32.totalorder %s23, 0
      %p147 = por %p145, %p146
      %p148 = scmp.ne.s32.totalorder %s136, %s137
      %p149 = scmp.eq.s32.totalorder %s24, 1
      %p150 = por %p148, %p149
      %p152 = scmp.ne.s32.totalorder %s137, %s151
      %p153 = scmp.eq.s32.totalorder %s24, 0
      %p154 = por %p152, %p153
      %s156 = sadd.s32 %s155, 1
      %p159 = scmp.eq.s32.totalorder %s18, 1
      %p160 = scmp.ne.s32.totalorder %s155, %s157
      %p161 = scmp.eq.s32.totalorder %s18, 0
      %p162 = por %p160, %p161
      %p163 = scmp.ne.s32.totalorder %s155, %s157
      %p164 = scmp.eq.s32.totalorder %s23, 1
      %p165 = por %p163, %p164
      %p166 = scmp.ne.s32.totalorder %s157, %s158
      %p167 = scmp.eq.s32.totalorder %s23, 0
      %p168 = por %p166, %p167
      %p169 = scmp.ne.s32.totalorder %s157, %s158
      %p170 = scmp.eq.s32.totalorder %s24, 1
      %p171 = por %p169, %p170
      %p173 = scmp.ne.s32.totalorder %s158, %s172
      %p174 = scmp.eq.s32.totalorder %s24, 0
      %p175 = por %p173, %p174
      %s177 = sadd.s32 %s176, 1
      %p180 = scmp.eq.s32.totalorder %s18, 1
      %p181 = scmp.ne.s32.totalorder %s176, %s178
      %p182 = scmp.eq.s32.totalorder %s18, 0
      %p183 = por %p181, %p182
      %p184 = scmp.ne.s32.totalorder %s176, %s178
      %p185 = scmp.eq.s32.totalorder %s23, 1
      %p186 = por %p184, %p185
      %p187 = scmp.ne.s32.totalorder %s178, %s179
      %p188 = scmp.eq.s32.totalorder %s23, 0
      %p189 = por %p187, %p188
      %p190 = scmp.ne.s32.totalorder %s178, %s179
      %p191 = scmp.eq.s32.totalorder %s24, 1
      %p192 = por %p190, %p191
      %p194 = scmp.ne.s32.totalorder %s179, %s193
      %p195 = scmp.eq.s32.totalorder %s24, 0
      %p196 = por %p194, %p195
      %s198 = sadd.s32 %s197, 1
      %p201 = scmp.eq.s32.totalorder %s18, 1
      %p202 = scmp.ne.s32.totalorder %s197, %s199
      %p203 = scmp.eq.s32.totalorder %s18, 0
      %p204 = por %p202, %p203
      %p205 = scmp.ne.s32.totalorder %s197, %s199
      %p206 = scmp.eq.s32.totalorder %s23, 1
      %p207 = por %p205, %p206
      %p208 = scmp.ne.s32.totalorder %s199, %s200
      %p209 = scmp.eq.s32.totalorder %s23, 0
      %p210 = por %p208, %p209
      %p211 = scmp.ne.s32.totalorder %s199, %s200
      %p212 = scmp.eq.s32.totalorder %s24, 1
      %p213 = por %p211, %p212
      %p215 = scmp.ne.s32.totalorder %s200, %s214
      %p216 = scmp.eq.s32.totalorder %s24, 0
      %p217 = por %p215, %p216
      %s219 = sadd.s32 %s218, 1
      %p222 = scmp.eq.s32.totalorder %s18, 1
      %p223 = scmp.ne.s32.totalorder %s218, %s220
      %p224 = scmp.eq.s32.totalorder %s18, 0
      %p225 = por %p223, %p224
      %p226 = scmp.ne.s32.totalorder %s218, %s220
      %p227 = scmp.eq.s32.totalorder %s23, 1
      %p228 = por %p226, %p227
      %p229 = scmp.ne.s32.totalorder %s220, %s221
      %p230 = scmp.eq.s32.totalorder %s23, 0
      %p231 = por %p229, %p230
      %p232 = scmp.ne.s32.totalorder %s220, %s221
      %p233 = scmp.eq.s32.totalorder %s24, 1
      %p234 = por %p232, %p233
      %p236 = scmp.ne.s32.totalorder %s221, %s235
      %p237 = scmp.eq.s32.totalorder %s24, 0
      %p238 = por %p236, %p237
      %s239 = ssub.s32 %s25, %s37
      %s240 = ssub.s32 %s26, %s33
      %s241 = sor.u32 %s239, %s240
      %p242 = scmp.eq.s32.totalorder %s241, 0
      %s244 = sadd.s32 %s243, 1
      %s245 = scalar_select %p242, %s243, %s244
      %p248 = pneg %p242
      %p249 = scmp.eq.s32.totalorder %s18, 1
      %p250 = por %p248, %p249
      %p251 = scmp.ne.s32.totalorder %s243, %s246
      %p252 = scmp.eq.s32.totalorder %s18, 0
      %p253 = por %p251, %p252
      %p254 = scmp.ne.s32.totalorder %s243, %s246
      %p255 = scmp.eq.s32.totalorder %s23, 1
      %p256 = por %p254, %p255
      %p257 = scmp.ne.s32.totalorder %s246, %s247
      %p258 = scmp.eq.s32.totalorder %s23, 0
      %p259 = por %p257, %p258
      %p260 = scmp.ne.s32.totalorder %s246, %s247
      %p261 = scmp.eq.s32.totalorder %s24, 1
      %p262 = por %p260, %p261
      %p264 = scmp.ne.s32.totalorder %s247, %s263
      %p265 = scmp.eq.s32.totalorder %s24, 0
      %p266 = por %p264, %p265
      %p267 = scmp.le.s32.totalorder 1, %s18
      %p268 = scmp.lt.s32.totalorder %s18, 3
      %p269 = pnand %p267, %p268
      %p270 = pneg %p269
      // Predicated region
      $region9: #{duma_layer_forward.3} parent=5 // pred_check
        _
      $region10: #{duma_layer_forward.3} parent=5 // pred_check_branch
        %272 = sbr.rel (%p269) target = $region12
      $region11: #{duma_layer_forward.3} parent=5 // pred_region
        %s273 = ssub.s32 %s18, 1
        // Predicated region
        $region13: #{duma_layer_forward.3} parent=11 // pred_check
          %p274 = pneg %p105
        $region14: #{duma_layer_forward.3} parent=11 // pred_check_branch
          %276 = sbr.rel (%p274) target = $region16
        $region15: #{duma_layer_forward.3} parent=11 // pred_region
          _
        $region16: #{duma_layer_forward.3} parent=11 // pred_fallthru
          _
        // Predicated region
        $region17: #{duma_layer_forward.3} parent=11 // pred_check
          %p277 = pneg %p126
        $region18: #{duma_layer_forward.3} parent=11 // pred_check_branch
          %279 = sbr.rel (%p277) target = $region20
        $region19: #{duma_layer_forward.3} parent=11 // pred_region
          _
        $region20: #{duma_layer_forward.3} parent=11 // pred_fallthru
          _
        // Predicated region
        $region21: #{duma_layer_forward.3} parent=11 // pred_check
          %p280 = pneg %p147
        $region22: #{duma_layer_forward.3} parent=11 // pred_check_branch
          %282 = sbr.rel (%p280) target = $region24
        $region23: #{duma_layer_forward.3} parent=11 // pred_region
          _
        $region24: #{duma_layer_forward.3} parent=11 // pred_fallthru
          _
        // Predicated region
        $region25: #{duma_layer_forward.3} parent=11 // pred_check
          %p283 = pneg %p168
        $region26: #{duma_layer_forward.3} parent=11 // pred_check_branch
          %285 = sbr.rel (%p283) target = $region28
        $region27: #{duma_layer_forward.3} parent=11 // pred_region
          _
        $region28: #{duma_layer_forward.3} parent=11 // pred_fallthru
          _
        // Predicated region
        $region29: #{duma_layer_forward.3} parent=11 // pred_check
          %p286 = pneg %p189
        $region30: #{duma_layer_forward.3} parent=11 // pred_check_branch
          %288 = sbr.rel (%p286) target = $region32
        $region31: #{duma_layer_forward.3} parent=11 // pred_region
          _
        $region32: #{duma_layer_forward.3} parent=11 // pred_fallthru
          _
        // Predicated region
        $region33: #{duma_layer_forward.3} parent=11 // pred_check
          %p289 = pneg %p210
        $region34: #{duma_layer_forward.3} parent=11 // pred_check_branch
          %291 = sbr.rel (%p289) target = $region36
        $region35: #{duma_layer_forward.3} parent=11 // pred_region
          _
        $region36: #{duma_layer_forward.3} parent=11 // pred_fallthru
          _
        // Predicated region
        $region37: #{duma_layer_forward.3} parent=11 // pred_check
          %p292 = pneg %p231
        $region38: #{duma_layer_forward.3} parent=11 // pred_check_branch
          %294 = sbr.rel (%p292) target = $region40
        $region39: #{duma_layer_forward.3} parent=11 // pred_region
          _
        $region40: #{duma_layer_forward.3} parent=11 // pred_fallthru
          _
      $region12: #{duma_layer_forward.3} parent=5 // pred_fallthru
        _
      %p295 = scmp.lt.s32.totalorder %s18, 2
      // Predicated region
      $region41: #{duma_layer_forward.3} parent=5 // pred_check
        %p296 = pneg %p295
      $region42: #{duma_layer_forward.3} parent=5 // pred_check_branch
        %298 = sbr.rel (%p296) target = $region44
      $region43: #{duma_layer_forward.3} parent=5 // pred_region
        // Predicated region
        $region45: #{duma_layer_forward.3} parent=43 // pred_check
          %p299 = pneg %p52
        $region46: #{duma_layer_forward.3} parent=43 // pred_check_branch
          %301 = sbr.rel (%p299) target = $region48
        $region47: #{duma_layer_forward.3} parent=43 // pred_region
          %s302 = smul.u32 8, %s26
          %p303 = scmp.lt.s32.totalorder %s25, 1
          %s304 = scalar_select %p303, %s25, 1
          %p305 = scmp.lt.s32.totalorder %s302, 7
          %s306 = scalar_select %p305, %s302, 7
          %s307 = smul.addr %s304, 8
          %s308 = sadd.s32 %s306, %s307
          %s309 = smul.addr %s308, 4
          %s310 = scalar_lea.vmem %s0, %s309
          %s311 = smul.u32 8, %s26
        $region48: #{duma_layer_forward.3} parent=43 // pred_fallthru
          _
        // Predicated region
        $region49: #{duma_layer_forward.3} parent=43 // pred_check
          %p312 = pneg %p78
        $region50: #{duma_layer_forward.3} parent=43 // pred_check_branch
          %314 = sbr.rel (%p312) target = $region52
        $region51: #{duma_layer_forward.3} parent=43 // pred_region
          %p315 = scmp.lt.s32.totalorder %s25, 1
          %s316 = scalar_select %p315, %s25, 1
          %s317 = smul.addr %s316, 4
          %s318 = smul.addr %s317, 4
          %s319 = scalar_lea.vmem %s1, %s318
        $region52: #{duma_layer_forward.3} parent=43 // pred_fallthru
          _
      $region44: #{duma_layer_forward.3} parent=5 // pred_fallthru
        _
      %p320 = scmp.le.s32.totalorder 1, %s18
      %p321 = scmp.lt.s32.totalorder %s18, 3
      %p322 = pnand %p320, %p321
      %p323 = pneg %p322
      // Predicated region
      $region53: #{duma_layer_forward.3} parent=5 // pred_check
        _
      $region54: #{duma_layer_forward.3} parent=5 // pred_check_branch
        %325 = sbr.rel (%p322) target = $region56
      $region55: #{duma_layer_forward.3} parent=5 // pred_region
        %s326 = ssub.s32 %s18, 1
        %s327 = smul.u32 8, %s28
        %p328 = scmp.lt.s32.totalorder %s27, 1
        %s329 = scalar_select %p328, %s27, 1
        %p330 = scmp.lt.s32.totalorder %s327, 7
        %s331 = scalar_select %p330, %s327, 7
        %s332 = smul.addr %s329, 8
        %s333 = sadd.s32 %s331, %s332
        %s334 = smul.addr %s333, 4
        %s335 = scalar_lea.vmem %s0, %s334
        %p336 = pneg %p58
        %p337 = pneg %p55
        %p338 = scmp.lt.s32.totalorder %s27, 1
        %s339 = scalar_select %p338, %s27, 1
        %s340 = smul.addr %s339, 4
        %s341 = smul.addr %s340, 4
        %s342 = scalar_lea.vmem %s1, %s341
        %p343 = pneg %p84
        %p344 = pneg %p81
        %p345 = pneg %p105
        %p346 = pneg %p102
        %p347 = pneg %p126
        %p348 = pneg %p123
        %p349 = pneg %p147
        %p350 = pneg %p144
        %p351 = pneg %p168
        %p352 = pneg %p165
        %p353 = pneg %p189
        %p354 = pneg %p186
        %p355 = pneg %p210
        %p356 = pneg %p207
        %p357 = pneg %p231
        %p358 = pneg %p228
        %p359 = pneg %p259
        %p360 = pneg %p256
        %s361 = sand.u32 %s246, 1
        %s362 = scalar_lea.sflag [#allocation4], %s361
        %s363 = sand.u32 %s246, 1
        %s364 = smul.addr %s363, 64
        %s365 = scalar_lea.vmem [#allocation3], %s364
        %s366 = smul.u32 8, %s28
        %p367 = scmp.lt.s32.totalorder %s27, 1
        %s368 = scalar_select %p367, %s27, 1
        %p369 = scmp.lt.s32.totalorder %s366, 7
        %s370 = scalar_select %p369, %s366, 7
        %s371 = smul.addr %s368, 8
        %s372 = sadd.s32 %s370, %s371
        %s373 = smul.addr %s372, 4
        %s374 = scalar_lea.vmem %s0, %s373
        %s375 = smul.u32 8, %s28
        %p376 = scmp.lt.s32.totalorder %s27, 1
        %s377 = scalar_select %p376, %s27, 1
        %s378 = smul.addr %s377, 4
        %s379 = smul.addr %s378, 4
        %s380 = scalar_lea.vmem %s1, %s379
        %s381 = smul.u32 8, %s28
        %v383 = vld [vmem:[%s374] sm:$0xf]
        %v384 = vld [vmem:[%s374 + $0x4] sm:$0xf]
        %v385 = vld [vmem:[%s374 + $0x8] sm:$0xf]
        %v386 = vld [vmem:[%s374 + $0xc] sm:$0xf]
        %v387 = vld [vmem:[%s374 + $0x10] sm:$0xf]
        %v388 = vld [vmem:[%s374 + $0x14] sm:$0xf]
        %v389 = vld [vmem:[%s374 + $0x18] sm:$0xf]
        %v390 = vld [vmem:[%s374 + $0x1c] sm:$0xf]
        %v391 = vld [vmem:[%s380] sm:$0xf]
        %v392 = vld [vmem:[%s380 + $0x4] sm:$0xf]
        %v393 = vld [vmem:[%s380 + $0x8] sm:$0xf]
        %v394 = vld [vmem:[%s380 + $0xc] sm:$0xf]
        %v395 = vld [vmem:[%s2] sm:$0xf]
        %v396 = vld [vmem:[%s2 + $0x4] sm:$0xf]
        %v397 = vld [vmem:[%s2 + $0x8] sm:$0xf]
        %v398 = vld [vmem:[%s2 + $0xc] sm:$0xf]
        %v399 = vld [vmem:[%s2 + $0x10] sm:$0xf]
        %v400 = vld [vmem:[%s2 + $0x14] sm:$0xf]
        %v401 = vld [vmem:[%s2 + $0x18] sm:$0xf]
        %v402 = vld [vmem:[%s2 + $0x1c] sm:$0xf]
        %v403 = vld [vmem:[%s2 + $0x20] sm:$0xf]
        %v404 = vld [vmem:[%s2 + $0x24] sm:$0xf]
        %v405 = vld [vmem:[%s2 + $0x28] sm:$0xf]
        %v406 = vld [vmem:[%s2 + $0x2c] sm:$0xf]
        %v407 = vld [vmem:[%s2 + $0x30] sm:$0xf]
        %v408 = vld [vmem:[%s2 + $0x34] sm:$0xf]
        %v409 = vld [vmem:[%s2 + $0x38] sm:$0xf]
        %v410 = vld [vmem:[%s2 + $0x3c] sm:$0xf]
        %v411 = vld [vmem:[%s3] sm:$0x1]
        %v413 = vlaneseq
        %v414 = vshrl.u32 %v413, 7
        %v415 = vsub.s32 0, %v414
        %v416 = vrot.slane %v411, %v415
        %v426 = vunpack.c.l.b16 %v383
        %v427 = vunpack.c.l.b16 %v384
        %v428 = vunpack.c.l.b16 %v385
        %v429 = vunpack.c.l.b16 %v386
        %v430 = vunpack.c.l.b16 %v387
        %v431 = vunpack.c.l.b16 %v388
        %v432 = vunpack.c.l.b16 %v389
        %v433 = vunpack.c.l.b16 %v390
        %v434 = vpack.c.b16 %v427, %v426
        %v435 = vpack.c.b16 %v429, %v428
        %v436 = vpack.c.b16 %v431, %v430
        %v437 = vpack.c.b16 %v433, %v432
        %v458 = vunpack.c.l.b16 %v395
        %v459 = vunpack.c.l.b16 %v396
        %v460 = vunpack.c.l.b16 %v397
        %v461 = vunpack.c.l.b16 %v398
        %v462 = vunpack.c.l.b16 %v399
        %v463 = vunpack.c.l.b16 %v400
        %v464 = vunpack.c.l.b16 %v401
        %v465 = vunpack.c.l.b16 %v402
        %v466 = vunpack.c.l.b16 %v403
        %v467 = vunpack.c.l.b16 %v404
        %v468 = vunpack.c.l.b16 %v405
        %v469 = vunpack.c.l.b16 %v406
        %v470 = vunpack.c.l.b16 %v407
        %v471 = vunpack.c.l.b16 %v408
        %v472 = vunpack.c.l.b16 %v409
        %v473 = vunpack.c.l.b16 %v410
        %v474 = vpack.c.b16 %v459, %v458
        %v475 = vpack.c.b16 %v461, %v460
        %v476 = vpack.c.b16 %v463, %v462
        %v477 = vpack.c.b16 %v465, %v464
        %v478 = vpack.c.b16 %v467, %v466
        %v479 = vpack.c.b16 %v469, %v468
        %v480 = vpack.c.b16 %v471, %v470
        %v481 = vpack.c.b16 %v473, %v472
        %490 = vmatprep.subr.bf16.mxu0 0
        %491 = vmatpush1.bf16.msra.mxu0 %v474
        %492 = vmatprep.subr.bf16.mxu0 0
        %493 = vmatpush1.bf16.msra.mxu0 %v475
        %494 = vmatprep.subr.bf16.mxu0 0
        %495 = vmatpush1.bf16.msra.mxu0 %v476
        %496 = vmatprep.subr.bf16.mxu0 0
        %497 = vmatpush1.bf16.msra.mxu0 %v477
        %498 = vmatprep.subr.bf16.mxu0 0
        %499 = vmatpush1.bf16.msra.mxu0 %v478
        %500 = vmatprep.subr.bf16.mxu0 0
        %501 = vmatpush1.bf16.msra.mxu0 %v479
        %502 = vmatprep.subr.bf16.mxu0 0
        %503 = vmatpush1.bf16.msra.mxu0 %v480
        %504 = vmatprep.subr.bf16.mxu0 0
        %505 = vmatpush1.bf16.msra.mxu0 %v481
        %506 = vmatprep.subr.bf16.mxu0 0
        %507 = vmatpush1.bf16.msra.mxu0 0
        %508 = vmatprep.subr.bf16.mxu0 0
        %509 = vmatpush1.bf16.msra.mxu0 0
        %510 = vmatprep.subr.bf16.mxu0 0
        %511 = vmatpush1.bf16.msra.mxu0 0
        %512 = vmatprep.subr.bf16.mxu0 0
        %513 = vmatpush1.bf16.msra.mxu0 0
        %514 = vmatprep.subr.bf16.mxu0 0
        %515 = vmatpush1.bf16.msra.mxu0 0
        %516 = vmatprep.subr.bf16.mxu0 0
        %517 = vmatpush1.bf16.msra.mxu0 0
        %518 = vmatprep.subr.bf16.mxu0 0
        %519 = vmatpush1.bf16.msra.mxu0 0
        %520 = vmatprep.subr.bf16.mxu0 0
        %521 = vmatpush1.bf16.msra.mxu0 0
        %522 = vmatprep.mubr.bf16.mxu0 0
        %523 = vmatmul.mubr.bf16.gmra.mrb[0].mxu0 %v434
        %v524 = vpop.f32.mrb[0].mxu0
        %v525 = vadd.f32 %v416, %v524
        %v526 = vpop.f32.mrb[0].mxu0
        %v527 = vpop.f32.mrb[0].mxu0
        %v528 = vadd.f32 %v416, %v527
        %v529 = vpop.f32.mrb[0].mxu0
        %530 = vmatprep.mubr.bf16.mxu0 0
        %531 = vmatmul.mubr.bf16.gmra.mrb[0].mxu0 %v435
        %v532 = vpop.f32.mrb[0].mxu0
        %v533 = vadd.f32 %v416, %v532
        %v534 = vpop.f32.mrb[0].mxu0
        %v535 = vpop.f32.mrb[0].mxu0
        %v536 = vadd.f32 %v416, %v535
        %v537 = vpop.f32.mrb[0].mxu0
        %538 = vmatprep.mubr.bf16.mxu0 0
        %539 = vmatmul.mubr.bf16.gmra.mrb[0].mxu0 %v436
        %v540 = vpop.f32.mrb[0].mxu0
        %v541 = vadd.f32 %v416, %v540
        %v542 = vpop.f32.mrb[0].mxu0
        %v543 = vpop.f32.mrb[0].mxu0
        %v544 = vadd.f32 %v416, %v543
        %v545 = vpop.f32.mrb[0].mxu0
        %546 = vmatprep.mubr.bf16.mxu0 0
        %547 = vmatmul.mubr.bf16.gmra.mrb[0].mxu0 %v437
        %v548 = vpop.f32.mrb[0].mxu0
        %v549 = vadd.f32 %v416, %v548
        %v550 = vpop.f32.mrb[0].mxu0
        %v551 = vpop.f32.mrb[0].mxu0
        %v552 = vadd.f32 %v416, %v551
        %v553 = vpop.f32.mrb[0].mxu0
        %554 = vdwg.mxu0
        %v555 = vld [vmem:[%s4] sm:$0xf]
        %v556 = vld [vmem:[%s4 + $0x4] sm:$0xf]
        %v557 = vld [vmem:[%s4 + $0x8] sm:$0xf]
        %v558 = vld [vmem:[%s4 + $0xc] sm:$0xf]
        %v559 = vld [vmem:[%s4 + $0x10] sm:$0xf]
        %v560 = vld [vmem:[%s4 + $0x14] sm:$0xf]
        %v561 = vld [vmem:[%s4 + $0x18] sm:$0xf]
        %v562 = vld [vmem:[%s4 + $0x1c] sm:$0xf]
        %v563 = vld [vmem:[%s4 + $0x20] sm:$0xf]
        %v564 = vld [vmem:[%s4 + $0x24] sm:$0xf]
        %v565 = vld [vmem:[%s4 + $0x28] sm:$0xf]
        %v566 = vld [vmem:[%s4 + $0x2c] sm:$0xf]
        %v567 = vld [vmem:[%s4 + $0x30] sm:$0xf]
        %v568 = vld [vmem:[%s4 + $0x34] sm:$0xf]
        %v569 = vld [vmem:[%s4 + $0x38] sm:$0xf]
        %v570 = vld [vmem:[%s4 + $0x3c] sm:$0xf]
        %v575 = vunpack.c.l.b16 %v391
        %v576 = vunpack.c.l.b16 %v392
        %v577 = vunpack.c.l.b16 %v393
        %v578 = vunpack.c.l.b16 %v394
        %v579 = vpack.c.b16 %v576, %v575
        %v580 = vpack.c.b16 %v578, %v577
        %v599 = vunpack.c.l.b16 %v555
        %v600 = vunpack.c.l.b16 %v556
        %v601 = vunpack.c.l.b16 %v557
        %v602 = vunpack.c.l.b16 %v558
        %v603 = vunpack.c.l.b16 %v559
        %v604 = vunpack.c.l.b16 %v560
        %v605 = vunpack.c.l.b16 %v561
        %v606 = vunpack.c.l.b16 %v562
        %v607 = vunpack.c.l.b16 %v563
        %v608 = vunpack.c.l.b16 %v564
        %v609 = vunpack.c.l.b16 %v565
        %v610 = vunpack.c.l.b16 %v566
        %v611 = vunpack.c.l.b16 %v567
        %v612 = vunpack.c.l.b16 %v568
        %v613 = vunpack.c.l.b16 %v569
        %v614 = vunpack.c.l.b16 %v570
        %v615 = vpack.c.b16 %v600, %v599
        %v616 = vpack.c.b16 %v602, %v601
        %v617 = vpack.c.b16 %v604, %v603
        %v618 = vpack.c.b16 %v606, %v605
        %v619 = vpack.c.b16 %v608, %v607
        %v620 = vpack.c.b16 %v610, %v609
        %v621 = vpack.c.b16 %v612, %v611
        %v622 = vpack.c.b16 %v614, %v613
        %631 = vmatprep.subr.bf16.mxu0 0
        %632 = vmatpush1.bf16.msra.mxu0 %v615
        %633 = vmatprep.subr.bf16.mxu0 0
        %634 = vmatpush1.bf16.msra.mxu0 %v616
        %635 = vmatprep.subr.bf16.mxu0 0
        %636 = vmatpush1.bf16.msra.mxu0 %v617
        %637 = vmatprep.subr.bf16.mxu0 0
        %638 = vmatpush1.bf16.msra.mxu0 %v618
        %639 = vmatprep.subr.bf16.mxu0 0
        %640 = vmatpush1.bf16.msra.mxu0 %v619
        %641 = vmatprep.subr.bf16.mxu0 0
        %642 = vmatpush1.bf16.msra.mxu0 %v620
        %643 = vmatprep.subr.bf16.mxu0 0
        %644 = vmatpush1.bf16.msra.mxu0 %v621
        %645 = vmatprep.subr.bf16.mxu0 0
        %646 = vmatpush1.bf16.msra.mxu0 %v622
        %647 = vmatprep.subr.bf16.mxu0 0
        %648 = vmatpush1.bf16.msra.mxu0 0
        %649 = vmatprep.subr.bf16.mxu0 0
        %650 = vmatpush1.bf16.msra.mxu0 0
        %651 = vmatprep.subr.bf16.mxu0 0
        %652 = vmatpush1.bf16.msra.mxu0 0
        %653 = vmatprep.subr.bf16.mxu0 0
        %654 = vmatpush1.bf16.msra.mxu0 0
        %655 = vmatprep.subr.bf16.mxu0 0
        %656 = vmatpush1.bf16.msra.mxu0 0
        %657 = vmatprep.subr.bf16.mxu0 0
        %658 = vmatpush1.bf16.msra.mxu0 0
        %659 = vmatprep.subr.bf16.mxu0 0
        %660 = vmatpush1.bf16.msra.mxu0 0
        %661 = vmatprep.subr.bf16.mxu0 0
        %662 = vmatpush1.bf16.msra.mxu0 0
        %663 = vmatprep.mubr.bf16.mxu0 0
        %664 = vmatmul.mubr.bf16.gmra.mrb[0].mxu0 %v579
        %v665 = vpop.f32.mrb[0].mxu0
        %v666 = vadd.f32 0.0, %v665
        %v667 = vpop.f32.mrb[0].mxu0
        %v668 = vpop.f32.mrb[0].mxu0
        %v669 = vadd.f32 0.0, %v668
        %v670 = vpop.f32.mrb[0].mxu0
        %671 = vmatprep.mubr.bf16.mxu0 0
        %672 = vmatmul.mubr.bf16.gmra.mrb[0].mxu0 %v580
        %v673 = vpop.f32.mrb[0].mxu0
        %v674 = vadd.f32 0.0, %v673
        %v675 = vpop.f32.mrb[0].mxu0
        %v676 = vpop.f32.mrb[0].mxu0
        %v677 = vadd.f32 0.0, %v676
        %v678 = vpop.f32.mrb[0].mxu0
        %679 = vdwg.mxu0
        %v680 = vld [vmem:[%s5] sm:$0xf]
        %v681 = vld [vmem:[%s5 + $0x4] sm:$0xf]
        %v682 = vld [vmem:[%s5 + $0x8] sm:$0xf]
        %v683 = vld [vmem:[%s5 + $0xc] sm:$0xf]
        %v684 = vld [vmem:[%s5 + $0x10] sm:$0xf]
        %v685 = vld [vmem:[%s5 + $0x14] sm:$0xf]
        %v686 = vld [vmem:[%s5 + $0x18] sm:$0xf]
        %v687 = vld [vmem:[%s5 + $0x1c] sm:$0xf]
        %v688 = vld [vmem:[%s5 + $0x20] sm:$0xf]
        %v689 = vld [vmem:[%s5 + $0x24] sm:$0xf]
        %v690 = vld [vmem:[%s5 + $0x28] sm:$0xf]
        %v691 = vld [vmem:[%s5 + $0x2c] sm:$0xf]
        %v692 = vld [vmem:[%s5 + $0x30] sm:$0xf]
        %v693 = vld [vmem:[%s5 + $0x34] sm:$0xf]
        %v694 = vld [vmem:[%s5 + $0x38] sm:$0xf]
        %v695 = vld [vmem:[%s5 + $0x3c] sm:$0xf]
        %v696 = vld [vmem:[%s6] sm:$0x1]
        %v698 = vlaneseq
        %v699 = vshrl.u32 %v698, 7
        %v700 = vsub.s32 0, %v699
        %v701 = vrot.slane %v696, %v700
        %v719 = vunpack.c.l.b16 %v680
        %v720 = vunpack.c.l.b16 %v681
        %v721 = vunpack.c.l.b16 %v682
        %v722 = vunpack.c.l.b16 %v683
        %v723 = vunpack.c.l.b16 %v684
        %v724 = vunpack.c.l.b16 %v685
        %v725 = vunpack.c.l.b16 %v686
        %v726 = vunpack.c.l.b16 %v687
        %v727 = vunpack.c.l.b16 %v688
        %v728 = vunpack.c.l.b16 %v689
        %v729 = vunpack.c.l.b16 %v690
        %v730 = vunpack.c.l.b16 %v691
        %v731 = vunpack.c.l.b16 %v692
        %v732 = vunpack.c.l.b16 %v693
        %v733 = vunpack.c.l.b16 %v694
        %v734 = vunpack.c.l.b16 %v695
        %v735 = vpack.c.b16 %v720, %v719
        %v736 = vpack.c.b16 %v722, %v721
        %v737 = vpack.c.b16 %v724, %v723
        %v738 = vpack.c.b16 %v726, %v725
        %v739 = vpack.c.b16 %v728, %v727
        %v740 = vpack.c.b16 %v730, %v729
        %v741 = vpack.c.b16 %v732, %v731
        %v742 = vpack.c.b16 %v734, %v733
        %751 = vmatprep.subr.bf16.mxu0 0
        %752 = vmatpush1.bf16.msra.mxu0 %v735
        %753 = vmatprep.subr.bf16.mxu0 0
        %754 = vmatpush1.bf16.msra.mxu0 %v736
        %755 = vmatprep.subr.bf16.mxu0 0
        %756 = vmatpush1.bf16.msra.mxu0 %v737
        %757 = vmatprep.subr.bf16.mxu0 0
        %758 = vmatpush1.bf16.msra.mxu0 %v738
        %759 = vmatprep.subr.bf16.mxu0 0
        %760 = vmatpush1.bf16.msra.mxu0 %v739
        %761 = vmatprep.subr.bf16.mxu0 0
        %762 = vmatpush1.bf16.msra.mxu0 %v740
        %763 = vmatprep.subr.bf16.mxu0 0
        %764 = vmatpush1.bf16.msra.mxu0 %v741
        %765 = vmatprep.subr.bf16.mxu0 0
        %766 = vmatpush1.bf16.msra.mxu0 %v742
        %767 = vmatprep.subr.bf16.mxu0 0
        %768 = vmatpush1.bf16.msra.mxu0 0
        %769 = vmatprep.subr.bf16.mxu0 0
        %770 = vmatpush1.bf16.msra.mxu0 0
        %771 = vmatprep.subr.bf16.mxu0 0
        %772 = vmatpush1.bf16.msra.mxu0 0
        %773 = vmatprep.subr.bf16.mxu0 0
        %774 = vmatpush1.bf16.msra.mxu0 0
        %775 = vmatprep.subr.bf16.mxu0 0
        %776 = vmatpush1.bf16.msra.mxu0 0
        %777 = vmatprep.subr.bf16.mxu0 0
        %778 = vmatpush1.bf16.msra.mxu0 0
        %779 = vmatprep.subr.bf16.mxu0 0
        %780 = vmatpush1.bf16.msra.mxu0 0
        %781 = vmatprep.subr.bf16.mxu0 0
        %782 = vmatpush1.bf16.msra.mxu0 0
        %783 = vmatprep.mubr.bf16.mxu0 0
        %784 = vmatmul.mubr.bf16.gmra.mrb[0].mxu0 %v579
        %v785 = vpop.f32.mrb[0].mxu0
        %v786 = vadd.f32 %v701, %v785
        %v787 = vpop.f32.mrb[0].mxu0
        %v788 = vpop.f32.mrb[0].mxu0
        %v789 = vadd.f32 %v701, %v788
        %v790 = vpop.f32.mrb[0].mxu0
        %791 = vmatprep.mubr.bf16.mxu0 0
        %792 = vmatmul.mubr.bf16.gmra.mrb[0].mxu0 %v580
        %v793 = vpop.f32.mrb[0].mxu0
        %v794 = vadd.f32 %v701, %v793
        %v795 = vpop.f32.mrb[0].mxu0
        %v796 = vpop.f32.mrb[0].mxu0
        %v797 = vadd.f32 %v701, %v796
        %v798 = vpop.f32.mrb[0].mxu0
        %799 = vdwg.mxu0
        %v800 = vmul.f32 %v525, 0.17677669
        %v801 = vmul.f32 %v528, 0.17677669
        %v802 = vmul.f32 %v533, 0.17677669
        %v803 = vmul.f32 %v536, 0.17677669
        %v804 = vmul.f32 %v541, 0.17677669
        %v805 = vmul.f32 %v544, 0.17677669
        %v806 = vmul.f32 %v549, 0.17677669
        %v807 = vmul.f32 %v552, 0.17677669
        %v808 = vpack.c.bf16 %v801, %v800
        %v809 = vpack.c.bf16 %v803, %v802
        %v810 = vpack.c.bf16 %v805, %v804
        %v811 = vpack.c.bf16 %v807, %v806
        %v812 = vpack.c.bf16 %v669, %v666
        %v813 = vpack.c.bf16 %v677, %v674
        %v814 = vpack.c.bf16 %v789, %v786
        %v815 = vpack.c.bf16 %v797, %v794
        %vm816 = vcmask 261120
        %v818 = vsel %vm816, %v808, 0
        %v821 = vsel %vm816, %v809, 0
        %v824 = vsel %vm816, %v810, 0
        %v827 = vsel %vm816, %v811, 0
        %v830 = vsel %vm816, %v812, 0
        %v833 = vsel %vm816, %v813, 0
        %835 = vmatprep.subr.bf16.mxu0 0
        %836 = vmatpush1.bf16.xpose.msra.mxu0 %v830
        %837 = vmatprep.subr.bf16.mxu0 0
        %838 = vmatpush1.bf16.xpose.msra.mxu0 %v833
        %839 = vmatprep.subr.bf16.mxu0 0
        %840 = vmatpush1.bf16.xpose.msra.mxu0 0
        %841 = vmatprep.subr.bf16.mxu0 0
        %842 = vmatpush1.bf16.xpose.msra.mxu0 0
        %843 = vmatprep.subr.bf16.mxu0 0
        %844 = vmatpush1.bf16.xpose.msra.mxu0 0
        %845 = vmatprep.subr.bf16.mxu0 0
        %846 = vmatpush1.bf16.xpose.msra.mxu0 0
        %847 = vmatprep.subr.bf16.mxu0 0
        %848 = vmatpush1.bf16.xpose.msra.mxu0 0
        %849 = vmatprep.subr.bf16.mxu0 0
        %850 = vmatpush1.bf16.xpose.msra.mxu0 0
        %851 = vmatprep.subr.bf16.mxu0 0
        %852 = vmatpush1.bf16.xpose.msra.mxu0 0
        %853 = vmatprep.subr.bf16.mxu0 0
        %854 = vmatpush1.bf16.xpose.msra.mxu0 0
        %855 = vmatprep.subr.bf16.mxu0 0
        %856 = vmatpush1.bf16.xpose.msra.mxu0 0
        %857 = vmatprep.subr.bf16.mxu0 0
        %858 = vmatpush1.bf16.xpose.msra.mxu0 0
        %859 = vmatprep.subr.bf16.mxu0 0
        %860 = vmatpush1.bf16.xpose.msra.mxu0 0
        %861 = vmatprep.subr.bf16.mxu0 0
        %862 = vmatpush1.bf16.xpose.msra.mxu0 0
        %863 = vmatprep.subr.bf16.mxu0 0
        %864 = vmatpush1.bf16.xpose.msra.mxu0 0
        %865 = vmatprep.subr.bf16.mxu0 0
        %866 = vmatpush1.bf16.xpose.msra.mxu0 0
        %867 = vmatprep.mubr.bf16.mxu0 0
        %868 = vmatmul.mubr.bf16.gmra.mrb[0].mxu0 %v818
        %v869 = vpop.f32.mrb[0].mxu0
        %v870 = vadd.f32 0.0, %v869
        %v871 = vpop.f32.mrb[0].mxu0
        %v872 = vpop.f32.mrb[0].mxu0
        %v873 = vadd.f32 0.0, %v872
        %v874 = vpop.f32.mrb[0].mxu0
        %875 = vmatprep.mubr.bf16.mxu0 0
        %876 = vmatmul.mubr.bf16.gmra.mrb[0].mxu0 %v821
        %v877 = vpop.f32.mrb[0].mxu0
        %v878 = vadd.f32 0.0, %v877
        %v879 = vpop.f32.mrb[0].mxu0
        %v880 = vpop.f32.mrb[0].mxu0
        %v881 = vadd.f32 0.0, %v880
        %v882 = vpop.f32.mrb[0].mxu0
        %883 = vmatprep.mubr.bf16.mxu0 0
        %884 = vmatmul.mubr.bf16.gmra.mrb[0].mxu0 %v824
        %v885 = vpop.f32.mrb[0].mxu0
        %v886 = vadd.f32 0.0, %v885
        %v887 = vpop.f32.mrb[0].mxu0
        %v888 = vpop.f32.mrb[0].mxu0
        %v889 = vadd.f32 0.0, %v888
        %v890 = vpop.f32.mrb[0].mxu0
        %891 = vmatprep.mubr.bf16.mxu0 0
        %892 = vmatmul.mubr.bf16.gmra.mrb[0].mxu0 %v827
        %v893 = vpop.f32.mrb[0].mxu0
        %v894 = vadd.f32 0.0, %v893
        %v895 = vpop.f32.mrb[0].mxu0
        %v896 = vpop.f32.mrb[0].mxu0
        %v897 = vadd.f32 0.0, %v896
        %v898 = vpop.f32.mrb[0].mxu0
        %899 = vdwg.mxu0
        %v900 = vsel %vm816, %v870, -inf
        %901 = vmax.xlane.f32.xlu0 %v900
        %v902 = vpop.xlane.xlu0 %901
        %v903 = vsel %vm816, %v873, -inf
        %904 = vmax.xlane.f32.xlu0 %v903
        %v905 = vpop.xlane.xlu0 %904
        %v906 = vsel %vm816, %v878, -inf
        %907 = vmax.xlane.f32.xlu0 %v906
        %v908 = vpop.xlane.xlu0 %907
        %v909 = vsel %vm816, %v881, -inf
        %910 = vmax.xlane.f32.xlu0 %v909
        %v911 = vpop.xlane.xlu0 %910
        %v912 = vsel %vm816, %v886, -inf
        %913 = vmax.xlane.f32.xlu0 %v912
        %v914 = vpop.xlane.xlu0 %913
        %v915 = vsel %vm816, %v889, -inf
        %916 = vmax.xlane.f32.xlu0 %v915
        %v917 = vpop.xlane.xlu0 %916
        %v918 = vsel %vm816, %v894, -inf
        %919 = vmax.xlane.f32.xlu0 %v918
        %v920 = vpop.xlane.xlu0 %919
        %v921 = vsel %vm816, %v897, -inf
        %922 = vmax.xlane.f32.xlu0 %v921
        %v923 = vpop.xlane.xlu0 %922
        %v924 = vsub.f32 %v870, %v902
        %v925 = vsub.f32 %v873, %v905
        %v926 = vsub.f32 %v878, %v908
        %v927 = vsub.f32 %v881, %v911
        %v928 = vsub.f32 %v886, %v914
        %v929 = vsub.f32 %v889, %v917
        %v930 = vsub.f32 %v894, %v920
        %v931 = vsub.f32 %v897, %v923
        %v932 = vmul.f32 %v924, 1.442695
        %v933 = vpow.pop %v932
        %v934 = vmul.f32 %v925, 1.442695
        %v935 = vpow.pop %v934
        %v936 = vmul.f32 %v926, 1.442695
        %v937 = vpow.pop %v936
        %v938 = vmul.f32 %v927, 1.442695
        %v939 = vpow.pop %v938
        %v940 = vmul.f32 %v928, 1.442695
        %v941 = vpow.pop %v940
        %v942 = vmul.f32 %v929, 1.442695
        %v943 = vpow.pop %v942
        %v944 = vmul.f32 %v930, 1.442695
        %v945 = vpow.pop %v944
        %v946 = vmul.f32 %v931, 1.442695
        %v947 = vpow.pop %v946
        %v948 = vsel %vm816, %v933, 0.0
        %949 = vadd.xlane.f32.xlu0 %v948
        %v950 = vpop.xlane.xlu0 %949
        %v951 = vsel %vm816, %v935, 0.0
        %952 = vadd.xlane.f32.xlu0 %v951
        %v953 = vpop.xlane.xlu0 %952
        %v954 = vsel %vm816, %v937, 0.0
        %955 = vadd.xlane.f32.xlu0 %v954
        %v956 = vpop.xlane.xlu0 %955
        %v957 = vsel %vm816, %v939, 0.0
        %958 = vadd.xlane.f32.xlu0 %v957
        %v959 = vpop.xlane.xlu0 %958
        %v960 = vsel %vm816, %v941, 0.0
        %961 = vadd.xlane.f32.xlu0 %v960
        %v962 = vpop.xlane.xlu0 %961
        %v963 = vsel %vm816, %v943, 0.0
        %964 = vadd.xlane.f32.xlu0 %v963
        %v965 = vpop.xlane.xlu0 %964
        %v966 = vsel %vm816, %v945, 0.0
        %967 = vadd.xlane.f32.xlu0 %v966
        %v968 = vpop.xlane.xlu0 %967
        %v969 = vsel %vm816, %v947, 0.0
        %970 = vadd.xlane.f32.xlu0 %v969
        %v971 = vpop.xlane.xlu0 %970
        %v972 = vpack.c.bf16 %v935, %v933
        %v973 = vpack.c.bf16 %v939, %v937
        %v974 = vpack.c.bf16 %v943, %v941
        %v975 = vpack.c.bf16 %v947, %v945
        %v977 = vsel %vm816, %v972, 0
        %v980 = vsel %vm816, %v973, 0
        %v983 = vsel %vm816, %v974, 0
        %v986 = vsel %vm816, %v975, 0
        %988 = vmatprep.subr.bf16.mxu0 0
        %989 = vmatpush1.bf16.msra.mxu0 %v814
        %990 = vmatprep.subr.bf16.mxu0 0
        %991 = vmatpush1.bf16.msra.mxu0 %v815
        %992 = vmatprep.subr.bf16.mxu0 0
        %993 = vmatpush1.bf16.msra.mxu0 0
        %994 = vmatprep.subr.bf16.mxu0 0
        %995 = vmatpush1.bf16.msra.mxu0 0
        %996 = vmatprep.subr.bf16.mxu0 0
        %997 = vmatpush1.bf16.msra.mxu0 0
        %998 = vmatprep.subr.bf16.mxu0 0
        %999 = vmatpush1.bf16.msra.mxu0 0
        %1000 = vmatprep.subr.bf16.mxu0 0
        %1001 = vmatpush1.bf16.msra.mxu0 0
        %1002 = vmatprep.subr.bf16.mxu0 0
        %1003 = vmatpush1.bf16.msra.mxu0 0
        %1004 = vmatprep.subr.bf16.mxu0 0
        %1005 = vmatpush1.bf16.msra.mxu0 0
        %1006 = vmatprep.subr.bf16.mxu0 0
        %1007 = vmatpush1.bf16.msra.mxu0 0
        %1008 = vmatprep.subr.bf16.mxu0 0
        %1009 = vmatpush1.bf16.msra.mxu0 0
        %1010 = vmatprep.subr.bf16.mxu0 0
        %1011 = vmatpush1.bf16.msra.mxu0 0
        %1012 = vmatprep.subr.bf16.mxu0 0
        %1013 = vmatpush1.bf16.msra.mxu0 0
        %1014 = vmatprep.subr.bf16.mxu0 0
        %1015 = vmatpush1.bf16.msra.mxu0 0
        %1016 = vmatprep.subr.bf16.mxu0 0
        %1017 = vmatpush1.bf16.msra.mxu0 0
        %1018 = vmatprep.subr.bf16.mxu0 0
        %1019 = vmatpush1.bf16.msra.mxu0 0
        %1020 = vmatprep.mubr.bf16.mxu0 0
        %1021 = vmatmul.mubr.bf16.gmra.mrb[0].mxu0 %v977
        %v1022 = vpop.f32.mrb[0].mxu0
        %v1023 = vadd.f32 0.0, %v1022
        %v1024 = vpop.f32.mrb[0].mxu0
        %v1025 = vpop.f32.mrb[0].mxu0
        %v1026 = vadd.f32 0.0, %v1025
        %v1027 = vpop.f32.mrb[0].mxu0
        %1028 = vmatprep.mubr.bf16.mxu0 0
        %1029 = vmatmul.mubr.bf16.gmra.mrb[0].mxu0 %v980
        %v1030 = vpop.f32.mrb[0].mxu0
        %v1031 = vadd.f32 0.0, %v1030
        %v1032 = vpop.f32.mrb[0].mxu0
        %v1033 = vpop.f32.mrb[0].mxu0
        %v1034 = vadd.f32 0.0, %v1033
        %v1035 = vpop.f32.mrb[0].mxu0
        %1036 = vmatprep.mubr.bf16.mxu0 0
        %1037 = vmatmul.mubr.bf16.gmra.mrb[0].mxu0 %v983
        %v1038 = vpop.f32.mrb[0].mxu0
        %v1039 = vadd.f32 0.0, %v1038
        %v1040 = vpop.f32.mrb[0].mxu0
        %v1041 = vpop.f32.mrb[0].mxu0
        %v1042 = vadd.f32 0.0, %v1041
        %v1043 = vpop.f32.mrb[0].mxu0
        %1044 = vmatprep.mubr.bf16.mxu0 0
        %1045 = vmatmul.mubr.bf16.gmra.mrb[0].mxu0 %v986
        %v1046 = vpop.f32.mrb[0].mxu0
        %v1047 = vadd.f32 0.0, %v1046
        %v1048 = vpop.f32.mrb[0].mxu0
        %v1049 = vpop.f32.mrb[0].mxu0
        %v1050 = vadd.f32 0.0, %v1049
        %v1051 = vpop.f32.mrb[0].mxu0
        %1052 = vdwg.mxu0
        %v1053 = vrcp.pop %v950
        %v1054 = vrcp.pop %v953
        %v1055 = vrcp.pop %v956
        %v1056 = vrcp.pop %v959
        %v1057 = vrcp.pop %v962
        %v1058 = vrcp.pop %v965
        %v1059 = vrcp.pop %v968
        %v1060 = vrcp.pop %v971
        %v1061 = vmul.f32 %v1023, %v1053
        %v1062 = vmul.f32 %v1026, %v1054
        %v1063 = vmul.f32 %v1031, %v1055
        %v1064 = vmul.f32 %v1034, %v1056
        %v1065 = vmul.f32 %v1039, %v1057
        %v1066 = vmul.f32 %v1042, %v1058
        %v1067 = vmul.f32 %v1047, %v1059
        %v1068 = vmul.f32 %v1050, %v1060
        %v1069 = vpack.c.bf16 %v1062, %v1061
        %v1070 = vpack.c.bf16 %v1064, %v1063
        %v1071 = vpack.c.bf16 %v1066, %v1065
        %v1072 = vpack.c.bf16 %v1068, %v1067
        %1073 = vst.msk [vmem:[#allocation2] sm:$0xff] %vm816, %v1069
        %1074 = vst.msk [vmem:[#allocation2 + $0x8] sm:$0xff] %vm816, %v1070
        %1075 = vst.msk [vmem:[#allocation2 + $0x10] sm:$0xff] %vm816, %v1071
        %1076 = vst.msk [vmem:[#allocation2 + $0x18] sm:$0xff] %vm816, %v1072
        %1081 = vrot.lane.b32.xlu0 %v808, 96
        %v1082 = vpop.permute.xlu0 %1081
        %1083 = vrot.lane.b32.xlu0 %v809, 96
        %v1084 = vpop.permute.xlu0 %1083
        %1085 = vrot.lane.b32.xlu0 %v810, 96
        %v1086 = vpop.permute.xlu0 %1085
        %1087 = vrot.lane.b32.xlu0 %v811, 96
        %v1088 = vpop.permute.xlu0 %1087
        %1091 = vrot.lane.b32.xlu0 %v812, 96
        %v1092 = vpop.permute.xlu0 %1091
        %1093 = vrot.lane.b32.xlu0 %v813, 96
        %v1094 = vpop.permute.xlu0 %1093
        %v1096 = vsel %vm816, %v1082, 0
        %v1099 = vsel %vm816, %v1084, 0
        %v1102 = vsel %vm816, %v1086, 0
        %v1105 = vsel %vm816, %v1088, 0
        %v1108 = vsel %vm816, %v1092, 0
        %v1111 = vsel %vm816, %v1094, 0
        %1113 = vmatprep.subr.bf16.mxu0 0
        %1114 = vmatpush1.bf16.xpose.msra.mxu0 %v1108
        %1115 = vmatprep.subr.bf16.mxu0 0
        %1116 = vmatpush1.bf16.xpose.msra.mxu0 %v1111
        %1117 = vmatprep.subr.bf16.mxu0 0
        %1118 = vmatpush1.bf16.xpose.msra.mxu0 0
        %1119 = vmatprep.subr.bf16.mxu0 0
        %1120 = vmatpush1.bf16.xpose.msra.mxu0 0
        %1121 = vmatprep.subr.bf16.mxu0 0
        %1122 = vmatpush1.bf16.xpose.msra.mxu0 0
        %1123 = vmatprep.subr.bf16.mxu0 0
        %1124 = vmatpush1.bf16.xpose.msra.mxu0 0
        %1125 = vmatprep.subr.bf16.mxu0 0
        %1126 = vmatpush1.bf16.xpose.msra.mxu0 0
        %1127 = vmatprep.subr.bf16.mxu0 0
        %1128 = vmatpush1.bf16.xpose.msra.mxu0 0
        %1129 = vmatprep.subr.bf16.mxu0 0
        %1130 = vmatpush1.bf16.xpose.msra.mxu0 0
        %1131 = vmatprep.subr.bf16.mxu0 0
        %1132 = vmatpush1.bf16.xpose.msra.mxu0 0
        %1133 = vmatprep.subr.bf16.mxu0 0
        %1134 = vmatpush1.bf16.xpose.msra.mxu0 0
        %1135 = vmatprep.subr.bf16.mxu0 0
        %1136 = vmatpush1.bf16.xpose.msra.mxu0 0
        %1137 = vmatprep.subr.bf16.mxu0 0
        %1138 = vmatpush1.bf16.xpose.msra.mxu0 0
        %1139 = vmatprep.subr.bf16.mxu0 0
        %1140 = vmatpush1.bf16.xpose.msra.mxu0 0
        %1141 = vmatprep.subr.bf16.mxu0 0
        %1142 = vmatpush1.bf16.xpose.msra.mxu0 0
        %1143 = vmatprep.subr.bf16.mxu0 0
        %1144 = vmatpush1.bf16.xpose.msra.mxu0 0
        %1145 = vmatprep.mubr.bf16.mxu0 0
        %1146 = vmatmul.mubr.bf16.gmra.mrb[0].mxu0 %v1096
        %v1147 = vpop.f32.mrb[0].mxu0
        %v1148 = vadd.f32 0.0, %v1147
        %v1149 = vpop.f32.mrb[0].mxu0
        %v1150 = vpop.f32.mrb[0].mxu0
        %v1151 = vadd.f32 0.0, %v1150
        %v1152 = vpop.f32.mrb[0].mxu0
        %1153 = vmatprep.mubr.bf16.mxu0 0
        %1154 = vmatmul.mubr.bf16.gmra.mrb[0].mxu0 %v1099
        %v1155 = vpop.f32.mrb[0].mxu0
        %v1156 = vadd.f32 0.0, %v1155
        %v1157 = vpop.f32.mrb[0].mxu0
        %v1158 = vpop.f32.mrb[0].mxu0
        %v1159 = vadd.f32 0.0, %v1158
        %v1160 = vpop.f32.mrb[0].mxu0
        %1161 = vmatprep.mubr.bf16.mxu0 0
        %1162 = vmatmul.mubr.bf16.gmra.mrb[0].mxu0 %v1102
        %v1163 = vpop.f32.mrb[0].mxu0
        %v1164 = vadd.f32 0.0, %v1163
        %v1165 = vpop.f32.mrb[0].mxu0
        %v1166 = vpop.f32.mrb[0].mxu0
        %v1167 = vadd.f32 0.0, %v1166
        %v1168 = vpop.f32.mrb[0].mxu0
        %1169 = vmatprep.mubr.bf16.mxu0 0
        %1170 = vmatmul.mubr.bf16.gmra.mrb[0].mxu0 %v1105
        %v1171 = vpop.f32.mrb[0].mxu0
        %v1172 = vadd.f32 0.0, %v1171
        %v1173 = vpop.f32.mrb[0].mxu0
        %v1174 = vpop.f32.mrb[0].mxu0
        %v1175 = vadd.f32 0.0, %v1174
        %v1176 = vpop.f32.mrb[0].mxu0
        %1177 = vdwg.mxu0
        %v1178 = vsel %vm816, %v1148, -inf
        %1179 = vmax.xlane.f32.xlu0 %v1178
        %v1180 = vpop.xlane.xlu0 %1179
        %v1181 = vsel %vm816, %v1151, -inf
        %1182 = vmax.xlane.f32.xlu0 %v1181
        %v1183 = vpop.xlane.xlu0 %1182
        %v1184 = vsel %vm816, %v1156, -inf
        %1185 = vmax.xlane.f32.xlu0 %v1184
        %v1186 = vpop.xlane.xlu0 %1185
        %v1187 = vsel %vm816, %v1159, -inf
        %1188 = vmax.xlane.f32.xlu0 %v1187
        %v1189 = vpop.xlane.xlu0 %1188
        %v1190 = vsel %vm816, %v1164, -inf
        %1191 = vmax.xlane.f32.xlu0 %v1190
        %v1192 = vpop.xlane.xlu0 %1191
        %v1193 = vsel %vm816, %v1167, -inf
        %1194 = vmax.xlane.f32.xlu0 %v1193
        %v1195 = vpop.xlane.xlu0 %1194
        %v1196 = vsel %vm816, %v1172, -inf
        %1197 = vmax.xlane.f32.xlu0 %v1196
        %v1198 = vpop.xlane.xlu0 %1197
        %v1199 = vsel %vm816, %v1175, -inf
        %1200 = vmax.xlane.f32.xlu0 %v1199
        %v1201 = vpop.xlane.xlu0 %1200
        %v1202 = vsub.f32 %v1148, %v1180
        %v1203 = vsub.f32 %v1151, %v1183
        %v1204 = vsub.f32 %v1156, %v1186
        %v1205 = vsub.f32 %v1159, %v1189
        %v1206 = vsub.f32 %v1164, %v1192
        %v1207 = vsub.f32 %v1167, %v1195
        %v1208 = vsub.f32 %v1172, %v1198
        %v1209 = vsub.f32 %v1175, %v1201
        %v1210 = vmul.f32 %v1202, 1.442695
        %v1211 = vpow.pop %v1210
        %v1212 = vmul.f32 %v1203, 1.442695
        %v1213 = vpow.pop %v1212
        %v1214 = vmul.f32 %v1204, 1.442695
        %v1215 = vpow.pop %v1214
        %v1216 = vmul.f32 %v1205, 1.442695
        %v1217 = vpow.pop %v1216
        %v1218 = vmul.f32 %v1206, 1.442695
        %v1219 = vpow.pop %v1218
        %v1220 = vmul.f32 %v1207, 1.442695
        %v1221 = vpow.pop %v1220
        %v1222 = vmul.f32 %v1208, 1.442695
        %v1223 = vpow.pop %v1222
        %v1224 = vmul.f32 %v1209, 1.442695
        %v1225 = vpow.pop %v1224
        %v1226 = vsel %vm816, %v1211, 0.0
        %1227 = vadd.xlane.f32.xlu0 %v1226
        %v1228 = vpop.xlane.xlu0 %1227
        %v1229 = vsel %vm816, %v1213, 0.0
        %1230 = vadd.xlane.f32.xlu0 %v1229
        %v1231 = vpop.xlane.xlu0 %1230
        %v1232 = vsel %vm816, %v1215, 0.0
        %1233 = vadd.xlane.f32.xlu0 %v1232
        %v1234 = vpop.xlane.xlu0 %1233
        %v1235 = vsel %vm816, %v1217, 0.0
        %1236 = vadd.xlane.f32.xlu0 %v1235
        %v1237 = vpop.xlane.xlu0 %1236
        %v1238 = vsel %vm816, %v1219, 0.0
        %1239 = vadd.xlane.f32.xlu0 %v1238
        %v1240 = vpop.xlane.xlu0 %1239
        %v1241 = vsel %vm816, %v1221, 0.0
        %1242 = vadd.xlane.f32.xlu0 %v1241
        %v1243 = vpop.xlane.xlu0 %1242
        %v1244 = vsel %vm816, %v1223, 0.0
        %1245 = vadd.xlane.f32.xlu0 %v1244
        %v1246 = vpop.xlane.xlu0 %1245
        %v1247 = vsel %vm816, %v1225, 0.0
        %1248 = vadd.xlane.f32.xlu0 %v1247
        %v1249 = vpop.xlane.xlu0 %1248
        %v1250 = vpack.c.bf16 %v1213, %v1211
        %v1251 = vpack.c.bf16 %v1217, %v1215
        %v1252 = vpack.c.bf16 %v1221, %v1219
        %v1253 = vpack.c.bf16 %v1225, %v1223
        %1256 = vrot.lane.b32.xlu0 %v814, 96
        %v1257 = vpop.permute.xlu0 %1256
        %1258 = vrot.lane.b32.xlu0 %v815, 96
        %v1259 = vpop.permute.xlu0 %1258
        %v1263 = vsel %vm816, %v1250, 0
        %v1266 = vsel %vm816, %v1251, 0
        %v1269 = vsel %vm816, %v1252, 0
        %v1272 = vsel %vm816, %v1253, 0
        %1274 = vmatprep.subr.bf16.mxu0 0
        %1275 = vmatpush1.bf16.msra.mxu0 %v1257
        %1276 = vmatprep.subr.bf16.mxu0 0
        %1277 = vmatpush1.bf16.msra.mxu0 %v1259
        %1278 = vmatprep.subr.bf16.mxu0 0
        %1279 = vmatpush1.bf16.msra.mxu0 0
        %1280 = vmatprep.subr.bf16.mxu0 0
        %1281 = vmatpush1.bf16.msra.mxu0 0
        %1282 = vmatprep.subr.bf16.mxu0 0
        %1283 = vmatpush1.bf16.msra.mxu0 0
        %1284 = vmatprep.subr.bf16.mxu0 0
        %1285 = vmatpush1.bf16.msra.mxu0 0
        %1286 = vmatprep.subr.bf16.mxu0 0
        %1287 = vmatpush1.bf16.msra.mxu0 0
        %1288 = vmatprep.subr.bf16.mxu0 0
        %1289 = vmatpush1.bf16.msra.mxu0 0
        %1290 = vmatprep.subr.bf16.mxu0 0
        %1291 = vmatpush1.bf16.msra.mxu0 0
        %1292 = vmatprep.subr.bf16.mxu0 0
        %1293 = vmatpush1.bf16.msra.mxu0 0
        %1294 = vmatprep.subr.bf16.mxu0 0
        %1295 = vmatpush1.bf16.msra.mxu0 0
        %1296 = vmatprep.subr.bf16.mxu0 0
        %1297 = vmatpush1.bf16.msra.mxu0 0
        %1298 = vmatprep.subr.bf16.mxu0 0
        %1299 = vmatpush1.bf16.msra.mxu0 0
        %1300 = vmatprep.subr.bf16.mxu0 0
        %1301 = vmatpush1.bf16.msra.mxu0 0
        %1302 = vmatprep.subr.bf16.mxu0 0
        %1303 = vmatpush1.bf16.msra.mxu0 0
        %1304 = vmatprep.subr.bf16.mxu0 0
        %1305 = vmatpush1.bf16.msra.mxu0 0
        %1306 = vmatprep.mubr.bf16.mxu0 0
        %1307 = vmatmul.mubr.bf16.gmra.mrb[0].mxu0 %v1263
        %v1308 = vpop.f32.mrb[0].mxu0
        %v1309 = vadd.f32 0.0, %v1308
        %v1310 = vpop.f32.mrb[0].mxu0
        %v1311 = vpop.f32.mrb[0].mxu0
        %v1312 = vadd.f32 0.0, %v1311
        %v1313 = vpop.f32.mrb[0].mxu0
        %1314 = vmatprep.mubr.bf16.mxu0 0
        %1315 = vmatmul.mubr.bf16.gmra.mrb[0].mxu0 %v1266
        %v1316 = vpop.f32.mrb[0].mxu0
        %v1317 = vadd.f32 0.0, %v1316
        %v1318 = vpop.f32.mrb[0].mxu0
        %v1319 = vpop.f32.mrb[0].mxu0
        %v1320 = vadd.f32 0.0, %v1319
        %v1321 = vpop.f32.mrb[0].mxu0
        %1322 = vmatprep.mubr.bf16.mxu0 0
        %1323 = vmatmul.mubr.bf16.gmra.mrb[0].mxu0 %v1269
        %v1324 = vpop.f32.mrb[0].mxu0
        %v1325 = vadd.f32 0.0, %v1324
        %v1326 = vpop.f32.mrb[0].mxu0
        %v1327 = vpop.f32.mrb[0].mxu0
        %v1328 = vadd.f32 0.0, %v1327
        %v1329 = vpop.f32.mrb[0].mxu0
        %1330 = vmatprep.mubr.bf16.mxu0 0
        %1331 = vmatmul.mubr.bf16.gmra.mrb[0].mxu0 %v1272
        %v1332 = vpop.f32.mrb[0].mxu0
        %v1333 = vadd.f32 0.0, %v1332
        %v1334 = vpop.f32.mrb[0].mxu0
        %v1335 = vpop.f32.mrb[0].mxu0
        %v1336 = vadd.f32 0.0, %v1335
        %v1337 = vpop.f32.mrb[0].mxu0
        %1338 = vdwg.mxu0
        %v1339 = vrcp.pop %v1228
        %v1340 = vrcp.pop %v1231
        %v1341 = vrcp.pop %v1234
        %v1342 = vrcp.pop %v1237
        %v1343 = vrcp.pop %v1240
        %v1344 = vrcp.pop %v1243
        %v1345 = vrcp.pop %v1246
        %v1346 = vrcp.pop %v1249
        %v1347 = vmul.f32 %v1309, %v1339
        %v1348 = vmul.f32 %v1312, %v1340
        %v1349 = vmul.f32 %v1317, %v1341
        %v1350 = vmul.f32 %v1320, %v1342
        %v1351 = vmul.f32 %v1325, %v1343
        %v1352 = vmul.f32 %v1328, %v1344
        %v1353 = vmul.f32 %v1333, %v1345
        %v1354 = vmul.f32 %v1336, %v1346
        %v1355 = vpack.c.bf16 %v1348, %v1347
        %v1356 = vpack.c.bf16 %v1350, %v1349
        %v1357 = vpack.c.bf16 %v1352, %v1351
        %v1358 = vpack.c.bf16 %v1354, %v1353
        %1363 = vrot.lane.b32.xlu0 %v1355, 32
        %v1364 = vpop.permute.xlu0 %1363
        %1365 = vrot.lane.b32.xlu0 %v1356, 32
        %v1366 = vpop.permute.xlu0 %1365
        %1367 = vrot.lane.b32.xlu0 %v1357, 32
        %v1368 = vpop.permute.xlu0 %1367
        %1369 = vrot.lane.b32.xlu0 %v1358, 32
        %v1370 = vpop.permute.xlu0 %1369
        %vm1375 = vcmask 523520
        %1376 = vst.msk [vmem:[#allocation2] sm:$0xff] %vm1375, %v1364
        %1377 = vst.msk [vmem:[#allocation2 + $0x8] sm:$0xff] %vm1375, %v1366
        %1378 = vst.msk [vmem:[#allocation2 + $0x10] sm:$0xff] %vm1375, %v1368
        %1379 = vst.msk [vmem:[#allocation2 + $0x18] sm:$0xff] %vm1375, %v1370
        %1380 = vrot.lane.b32.xlu0 %v808, 64
        %v1381 = vpop.permute.xlu0 %1380
        %1382 = vrot.lane.b32.xlu0 %v809, 64
        %v1383 = vpop.permute.xlu0 %1382
        %1384 = vrot.lane.b32.xlu0 %v810, 64
        %v1385 = vpop.permute.xlu0 %1384
        %1386 = vrot.lane.b32.xlu0 %v811, 64
        %v1387 = vpop.permute.xlu0 %1386
        %1388 = vrot.lane.b32.xlu0 %v812, 64
        %v1389 = vpop.permute.xlu0 %1388
        %1390 = vrot.lane.b32.xlu0 %v813, 64
        %v1391 = vpop.permute.xlu0 %1390
        %v1393 = vsel %vm816, %v1381, 0
        %v1396 = vsel %vm816, %v1383, 0
        %v1399 = vsel %vm816, %v1385, 0
        %v1402 = vsel %vm816, %v1387, 0
        %v1405 = vsel %vm816, %v1389, 0
        %v1408 = vsel %vm816, %v1391, 0
        %1410 = vmatprep.subr.bf16.mxu0 0
        %1411 = vmatpush1.bf16.xpose.msra.mxu0 %v1405
        %1412 = vmatprep.subr.bf16.mxu0 0
        %1413 = vmatpush1.bf16.xpose.msra.mxu0 %v1408
        %1414 = vmatprep.subr.bf16.mxu0 0
        %1415 = vmatpush1.bf16.xpose.msra.mxu0 0
        %1416 = vmatprep.subr.bf16.mxu0 0
        %1417 = vmatpush1.bf16.xpose.msra.mxu0 0
        %1418 = vmatprep.subr.bf16.mxu0 0
        %1419 = vmatpush1.bf16.xpose.msra.mxu0 0
        %1420 = vmatprep.subr.bf16.mxu0 0
        %1421 = vmatpush1.bf16.xpose.msra.mxu0 0
        %1422 = vmatprep.subr.bf16.mxu0 0
        %1423 = vmatpush1.bf16.xpose.msra.mxu0 0
        %1424 = vmatprep.subr.bf16.mxu0 0
        %1425 = vmatpush1.bf16.xpose.msra.mxu0 0
        %1426 = vmatprep.subr.bf16.mxu0 0
        %1427 = vmatpush1.bf16.xpose.msra.mxu0 0
        %1428 = vmatprep.subr.bf16.mxu0 0
        %1429 = vmatpush1.bf16.xpose.msra.mxu0 0
        %1430 = vmatprep.subr.bf16.mxu0 0
        %1431 = vmatpush1.bf16.xpose.msra.mxu0 0
        %1432 = vmatprep.subr.bf16.mxu0 0
        %1433 = vmatpush1.bf16.xpose.msra.mxu0 0
        %1434 = vmatprep.subr.bf16.mxu0 0
        %1435 = vmatpush1.bf16.xpose.msra.mxu0 0
        %1436 = vmatprep.subr.bf16.mxu0 0
        %1437 = vmatpush1.bf16.xpose.msra.mxu0 0
        %1438 = vmatprep.subr.bf16.mxu0 0
        %1439 = vmatpush1.bf16.xpose.msra.mxu0 0
        %1440 = vmatprep.subr.bf16.mxu0 0
        %1441 = vmatpush1.bf16.xpose.msra.mxu0 0
        %1442 = vmatprep.mubr.bf16.mxu0 0
        %1443 = vmatmul.mubr.bf16.gmra.mrb[0].mxu0 %v1393
        %v1444 = vpop.f32.mrb[0].mxu0
        %v1445 = vadd.f32 0.0, %v1444
        %v1446 = vpop.f32.mrb[0].mxu0
        %v1447 = vpop.f32.mrb[0].mxu0
        %v1448 = vadd.f32 0.0, %v1447
        %v1449 = vpop.f32.mrb[0].mxu0
        %1450 = vmatprep.mubr.bf16.mxu0 0
        %1451 = vmatmul.mubr.bf16.gmra.mrb[0].mxu0 %v1396
        %v1452 = vpop.f32.mrb[0].mxu0
        %v1453 = vadd.f32 0.0, %v1452
        %v1454 = vpop.f32.mrb[0].mxu0
        %v1455 = vpop.f32.mrb[0].mxu0
        %v1456 = vadd.f32 0.0, %v1455
        %v1457 = vpop.f32.mrb[0].mxu0
        %1458 = vmatprep.mubr.bf16.mxu0 0
        %1459 = vmatmul.mubr.bf16.gmra.mrb[0].mxu0 %v1399
        %v1460 = vpop.f32.mrb[0].mxu0
        %v1461 = vadd.f32 0.0, %v1460
        %v1462 = vpop.f32.mrb[0].mxu0
        %v1463 = vpop.f32.mrb[0].mxu0
        %v1464 = vadd.f32 0.0, %v1463
        %v1465 = vpop.f32.mrb[0].mxu0
        %1466 = vmatprep.mubr.bf16.mxu0 0
        %1467 = vmatmul.mubr.bf16.gmra.mrb[0].mxu0 %v1402
        %v1468 = vpop.f32.mrb[0].mxu0
        %v1469 = vadd.f32 0.0, %v1468
        %v1470 = vpop.f32.mrb[0].mxu0
        %v1471 = vpop.f32.mrb[0].mxu0
        %v1472 = vadd.f32 0.0, %v1471
        %v1473 = vpop.f32.mrb[0].mxu0
        %1474 = vdwg.mxu0
        %v1475 = vsel %vm816, %v1445, -inf
        %1476 = vmax.xlane.f32.xlu0 %v1475
        %v1477 = vpop.xlane.xlu0 %1476
        %v1478 = vsel %vm816, %v1448, -inf
        %1479 = vmax.xlane.f32.xlu0 %v1478
        %v1480 = vpop.xlane.xlu0 %1479
        %v1481 = vsel %vm816, %v1453, -inf
        %1482 = vmax.xlane.f32.xlu0 %v1481
        %v1483 = vpop.xlane.xlu0 %1482
        %v1484 = vsel %vm816, %v1456, -inf
        %1485 = vmax.xlane.f32.xlu0 %v1484
        %v1486 = vpop.xlane.xlu0 %1485
        %v1487 = vsel %vm816, %v1461, -inf
        %1488 = vmax.xlane.f32.xlu0 %v1487
        %v1489 = vpop.xlane.xlu0 %1488
        %v1490 = vsel %vm816, %v1464, -inf
        %1491 = vmax.xlane.f32.xlu0 %v1490
        %v1492 = vpop.xlane.xlu0 %1491
        %v1493 = vsel %vm816, %v1469, -inf
        %1494 = vmax.xlane.f32.xlu0 %v1493
        %v1495 = vpop.xlane.xlu0 %1494
        %v1496 = vsel %vm816, %v1472, -inf
        %1497 = vmax.xlane.f32.xlu0 %v1496
        %v1498 = vpop.xlane.xlu0 %1497
        %v1499 = vsub.f32 %v1445, %v1477
        %v1500 = vsub.f32 %v1448, %v1480
        %v1501 = vsub.f32 %v1453, %v1483
        %v1502 = vsub.f32 %v1456, %v1486
        %v1503 = vsub.f32 %v1461, %v1489
        %v1504 = vsub.f32 %v1464, %v1492
        %v1505 = vsub.f32 %v1469, %v1495
        %v1506 = vsub.f32 %v1472, %v1498
        %v1507 = vmul.f32 %v1499, 1.442695
        %v1508 = vpow.pop %v1507
        %v1509 = vmul.f32 %v1500, 1.442695
        %v1510 = vpow.pop %v1509
        %v1511 = vmul.f32 %v1501, 1.442695
        %v1512 = vpow.pop %v1511
        %v1513 = vmul.f32 %v1502, 1.442695
        %v1514 = vpow.pop %v1513
        %v1515 = vmul.f32 %v1503, 1.442695
        %v1516 = vpow.pop %v1515
        %v1517 = vmul.f32 %v1504, 1.442695
        %v1518 = vpow.pop %v1517
        %v1519 = vmul.f32 %v1505, 1.442695
        %v1520 = vpow.pop %v1519
        %v1521 = vmul.f32 %v1506, 1.442695
        %v1522 = vpow.pop %v1521
        %v1523 = vsel %vm816, %v1508, 0.0
        %1524 = vadd.xlane.f32.xlu0 %v1523
        %v1525 = vpop.xlane.xlu0 %1524
        %v1526 = vsel %vm816, %v1510, 0.0
        %1527 = vadd.xlane.f32.xlu0 %v1526
        %v1528 = vpop.xlane.xlu0 %1527
        %v1529 = vsel %vm816, %v1512, 0.0
        %1530 = vadd.xlane.f32.xlu0 %v1529
        %v1531 = vpop.xlane.xlu0 %1530
        %v1532 = vsel %vm816, %v1514, 0.0
        %1533 = vadd.xlane.f32.xlu0 %v1532
        %v1534 = vpop.xlane.xlu0 %1533
        %v1535 = vsel %vm816, %v1516, 0.0
        %1536 = vadd.xlane.f32.xlu0 %v1535
        %v1537 = vpop.xlane.xlu0 %1536
        %v1538 = vsel %vm816, %v1518, 0.0
        %1539 = vadd.xlane.f32.xlu0 %v1538
        %v1540 = vpop.xlane.xlu0 %1539
        %v1541 = vsel %vm816, %v1520, 0.0
        %1542 = vadd.xlane.f32.xlu0 %v1541
        %v1543 = vpop.xlane.xlu0 %1542
        %v1544 = vsel %vm816, %v1522, 0.0
        %1545 = vadd.xlane.f32.xlu0 %v1544
        %v1546 = vpop.xlane.xlu0 %1545
        %v1547 = vpack.c.bf16 %v1510, %v1508
        %v1548 = vpack.c.bf16 %v1514, %v1512
        %v1549 = vpack.c.bf16 %v1518, %v1516
        %v1550 = vpack.c.bf16 %v1522, %v1520
        %1551 = vrot.lane.b32.xlu0 %v814, 64
        %v1552 = vpop.permute.xlu0 %1551
        %1553 = vrot.lane.b32.xlu0 %v815, 64
        %v1554 = vpop.permute.xlu0 %1553
        %v1558 = vsel %vm816, %v1547, 0
        %v1561 = vsel %vm816, %v1548, 0
        %v1564 = vsel %vm816, %v1549, 0
        %v1567 = vsel %vm816, %v1550, 0
        %1569 = vmatprep.subr.bf16.mxu0 0
        %1570 = vmatpush1.bf16.msra.mxu0 %v1552
        %1571 = vmatprep.subr.bf16.mxu0 0
        %1572 = vmatpush1.bf16.msra.mxu0 %v1554
        %1573 = vmatprep.subr.bf16.mxu0 0
        %1574 = vmatpush1.bf16.msra.mxu0 0
        %1575 = vmatprep.subr.bf16.mxu0 0
        %1576 = vmatpush1.bf16.msra.mxu0 0
        %1577 = vmatprep.subr.bf16.mxu0 0
        %1578 = vmatpush1.bf16.msra.mxu0 0
        %1579 = vmatprep.subr.bf16.mxu0 0
        %1580 = vmatpush1.bf16.msra.mxu0 0
        %1581 = vmatprep.subr.bf16.mxu0 0
        %1582 = vmatpush1.bf16.msra.mxu0 0
        %1583 = vmatprep.subr.bf16.mxu0 0
        %1584 = vmatpush1.bf16.msra.mxu0 0
        %1585 = vmatprep.subr.bf16.mxu0 0
        %1586 = vmatpush1.bf16.msra.mxu0 0
        %1587 = vmatprep.subr.bf16.mxu0 0
        %1588 = vmatpush1.bf16.msra.mxu0 0
        %1589 = vmatprep.subr.bf16.mxu0 0
        %1590 = vmatpush1.bf16.msra.mxu0 0
        %1591 = vmatprep.subr.bf16.mxu0 0
        %1592 = vmatpush1.bf16.msra.mxu0 0
        %1593 = vmatprep.subr.bf16.mxu0 0
        %1594 = vmatpush1.bf16.msra.mxu0 0
        %1595 = vmatprep.subr.bf16.mxu0 0
        %1596 = vmatpush1.bf16.msra.mxu0 0
        %1597 = vmatprep.subr.bf16.mxu0 0
        %1598 = vmatpush1.bf16.msra.mxu0 0
        %1599 = vmatprep.subr.bf16.mxu0 0
        %1600 = vmatpush1.bf16.msra.mxu0 0
        %1601 = vmatprep.mubr.bf16.mxu0 0
        %1602 = vmatmul.mubr.bf16.gmra.mrb[0].mxu0 %v1558
        %v1603 = vpop.f32.mrb[0].mxu0
        %v1604 = vadd.f32 0.0, %v1603
        %v1605 = vpop.f32.mrb[0].mxu0
        %v1606 = vpop.f32.mrb[0].mxu0
        %v1607 = vadd.f32 0.0, %v1606
        %v1608 = vpop.f32.mrb[0].mxu0
        %1609 = vmatprep.mubr.bf16.mxu0 0
        %1610 = vmatmul.mubr.bf16.gmra.mrb[0].mxu0 %v1561
        %v1611 = vpop.f32.mrb[0].mxu0
        %v1612 = vadd.f32 0.0, %v1611
        %v1613 = vpop.f32.mrb[0].mxu0
        %v1614 = vpop.f32.mrb[0].mxu0
        %v1615 = vadd.f32 0.0, %v1614
        %v1616 = vpop.f32.mrb[0].mxu0
        %1617 = vmatprep.mubr.bf16.mxu0 0
        %1618 = vmatmul.mubr.bf16.gmra.mrb[0].mxu0 %v1564
        %v1619 = vpop.f32.mrb[0].mxu0
        %v1620 = vadd.f32 0.0, %v1619
        %v1621 = vpop.f32.mrb[0].mxu0
        %v1622 = vpop.f32.mrb[0].mxu0
        %v1623 = vadd.f32 0.0, %v1622
        %v1624 = vpop.f32.mrb[0].mxu0
        %1625 = vmatprep.mubr.bf16.mxu0 0
        %1626 = vmatmul.mubr.bf16.gmra.mrb[0].mxu0 %v1567
        %v1627 = vpop.f32.mrb[0].mxu0
        %v1628 = vadd.f32 0.0, %v1627
        %v1629 = vpop.f32.mrb[0].mxu0
        %v1630 = vpop.f32.mrb[0].mxu0
        %v1631 = vadd.f32 0.0, %v1630
        %v1632 = vpop.f32.mrb[0].mxu0
        %1633 = vdwg.mxu0
        %v1634 = vrcp.pop %v1525
        %v1635 = vrcp.pop %v1528
        %v1636 = vrcp.pop %v1531
        %v1637 = vrcp.pop %v1534
        %v1638 = vrcp.pop %v1537
        %v1639 = vrcp.pop %v1540
        %v1640 = vrcp.pop %v1543
        %v1641 = vrcp.pop %v1546
        %v1642 = vmul.f32 %v1604, %v1634
        %v1643 = vmul.f32 %v1607, %v1635
        %v1644 = vmul.f32 %v1612, %v1636
        %v1645 = vmul.f32 %v1615, %v1637
        %v1646 = vmul.f32 %v1620, %v1638
        %v1647 = vmul.f32 %v1623, %v1639
        %v1648 = vmul.f32 %v1628, %v1640
        %v1649 = vmul.f32 %v1631, %v1641
        %v1650 = vpack.c.bf16 %v1643, %v1642
        %v1651 = vpack.c.bf16 %v1645, %v1644
        %v1652 = vpack.c.bf16 %v1647, %v1646
        %v1653 = vpack.c.bf16 %v1649, %v1648
        %1658 = vrot.lane.b32.xlu0 %v1650, 64
        %v1659 = vpop.permute.xlu0 %1658
        %1660 = vrot.lane.b32.xlu0 %v1651, 64
        %v1661 = vpop.permute.xlu0 %1660
        %1662 = vrot.lane.b32.xlu0 %v1652, 64
        %v1663 = vpop.permute.xlu0 %1662
        %1664 = vrot.lane.b32.xlu0 %v1653, 64
        %v1665 = vpop.permute.xlu0 %1664
        %vm1670 = vcmask 785920
        %1671 = vst.msk [vmem:[#allocation2] sm:$0xff] %vm1670, %v1659
        %1672 = vst.msk [vmem:[#allocation2 + $0x8] sm:$0xff] %vm1670, %v1661
        %1673 = vst.msk [vmem:[#allocation2 + $0x10] sm:$0xff] %vm1670, %v1663
        %1674 = vst.msk [vmem:[#allocation2 + $0x18] sm:$0xff] %vm1670, %v1665
        %1675 = vrot.lane.b32.xlu0 %v808, 32
        %v1676 = vpop.permute.xlu0 %1675
        %1677 = vrot.lane.b32.xlu0 %v809, 32
        %v1678 = vpop.permute.xlu0 %1677
        %1679 = vrot.lane.b32.xlu0 %v810, 32
        %v1680 = vpop.permute.xlu0 %1679
        %1681 = vrot.lane.b32.xlu0 %v811, 32
        %v1682 = vpop.permute.xlu0 %1681
        %1683 = vrot.lane.b32.xlu0 %v812, 32
        %v1684 = vpop.permute.xlu0 %1683
        %1685 = vrot.lane.b32.xlu0 %v813, 32
        %v1686 = vpop.permute.xlu0 %1685
        %v1688 = vsel %vm816, %v1676, 0
        %v1691 = vsel %vm816, %v1678, 0
        %v1694 = vsel %vm816, %v1680, 0
        %v1697 = vsel %vm816, %v1682, 0
        %v1700 = vsel %vm816, %v1684, 0
        %v1703 = vsel %vm816, %v1686, 0
        %1705 = vmatprep.subr.bf16.mxu0 0
        %1706 = vmatpush1.bf16.xpose.msra.mxu0 %v1700
        %1707 = vmatprep.subr.bf16.mxu0 0
        %1708 = vmatpush1.bf16.xpose.msra.mxu0 %v1703
        %1709 = vmatprep.subr.bf16.mxu0 0
        %1710 = vmatpush1.bf16.xpose.msra.mxu0 0
        %1711 = vmatprep.subr.bf16.mxu0 0
        %1712 = vmatpush1.bf16.xpose.msra.mxu0 0
        %1713 = vmatprep.subr.bf16.mxu0 0
        %1714 = vmatpush1.bf16.xpose.msra.mxu0 0
        %1715 = vmatprep.subr.bf16.mxu0 0
        %1716 = vmatpush1.bf16.xpose.msra.mxu0 0
        %1717 = vmatprep.subr.bf16.mxu0 0
        %1718 = vmatpush1.bf16.xpose.msra.mxu0 0
        %1719 = vmatprep.subr.bf16.mxu0 0
        %1720 = vmatpush1.bf16.xpose.msra.mxu0 0
        %1721 = vmatprep.subr.bf16.mxu0 0
        %1722 = vmatpush1.bf16.xpose.msra.mxu0 0
        %1723 = vmatprep.subr.bf16.mxu0 0
        %1724 = vmatpush1.bf16.xpose.msra.mxu0 0
        %1725 = vmatprep.subr.bf16.mxu0 0
        %1726 = vmatpush1.bf16.xpose.msra.mxu0 0
        %1727 = vmatprep.subr.bf16.mxu0 0
        %1728 = vmatpush1.bf16.xpose.msra.mxu0 0
        %1729 = vmatprep.subr.bf16.mxu0 0
        %1730 = vmatpush1.bf16.xpose.msra.mxu0 0
        %1731 = vmatprep.subr.bf16.mxu0 0
        %1732 = vmatpush1.bf16.xpose.msra.mxu0 0
        %1733 = vmatprep.subr.bf16.mxu0 0
        %1734 = vmatpush1.bf16.xpose.msra.mxu0 0
        %1735 = vmatprep.subr.bf16.mxu0 0
        %1736 = vmatpush1.bf16.xpose.msra.mxu0 0
        %1737 = vmatprep.mubr.bf16.mxu0 0
        %1738 = vmatmul.mubr.bf16.gmra.mrb[0].mxu0 %v1688
        %v1739 = vpop.f32.mrb[0].mxu0
        %v1740 = vadd.f32 0.0, %v1739
        %v1741 = vpop.f32.mrb[0].mxu0
        %v1742 = vpop.f32.mrb[0].mxu0
        %v1743 = vadd.f32 0.0, %v1742
        %v1744 = vpop.f32.mrb[0].mxu0
        %1745 = vmatprep.mubr.bf16.mxu0 0
        %1746 = vmatmul.mubr.bf16.gmra.mrb[0].mxu0 %v1691
        %v1747 = vpop.f32.mrb[0].mxu0
        %v1748 = vadd.f32 0.0, %v1747
        %v1749 = vpop.f32.mrb[0].mxu0
        %v1750 = vpop.f32.mrb[0].mxu0
        %v1751 = vadd.f32 0.0, %v1750
        %v1752 = vpop.f32.mrb[0].mxu0
        %1753 = vmatprep.mubr.bf16.mxu0 0
        %1754 = vmatmul.mubr.bf16.gmra.mrb[0].mxu0 %v1694
        %v1755 = vpop.f32.mrb[0].mxu0
        %v1756 = vadd.f32 0.0, %v1755
        %v1757 = vpop.f32.mrb[0].mxu0
        %v1758 = vpop.f32.mrb[0].mxu0
        %v1759 = vadd.f32 0.0, %v1758
        %v1760 = vpop.f32.mrb[0].mxu0
        %1761 = vmatprep.mubr.bf16.mxu0 0
        %1762 = vmatmul.mubr.bf16.gmra.mrb[0].mxu0 %v1697
        %v1763 = vpop.f32.mrb[0].mxu0
        %v1764 = vadd.f32 0.0, %v1763
        %v1765 = vpop.f32.mrb[0].mxu0
        %v1766 = vpop.f32.mrb[0].mxu0
        %v1767 = vadd.f32 0.0, %v1766
        %v1768 = vpop.f32.mrb[0].mxu0
        %1769 = vdwg.mxu0
        %v1770 = vsel %vm816, %v1740, -inf
        %1771 = vmax.xlane.f32.xlu0 %v1770
        %v1772 = vpop.xlane.xlu0 %1771
        %v1773 = vsel %vm816, %v1743, -inf
        %1774 = vmax.xlane.f32.xlu0 %v1773
        %v1775 = vpop.xlane.xlu0 %1774
        %v1776 = vsel %vm816, %v1748, -inf
        %1777 = vmax.xlane.f32.xlu0 %v1776
        %v1778 = vpop.xlane.xlu0 %1777
        %v1779 = vsel %vm816, %v1751, -inf
        %1780 = vmax.xlane.f32.xlu0 %v1779
        %v1781 = vpop.xlane.xlu0 %1780
        %v1782 = vsel %vm816, %v1756, -inf
        %1783 = vmax.xlane.f32.xlu0 %v1782
        %v1784 = vpop.xlane.xlu0 %1783
        %v1785 = vsel %vm816, %v1759, -inf
        %1786 = vmax.xlane.f32.xlu0 %v1785
        %v1787 = vpop.xlane.xlu0 %1786
        %v1788 = vsel %vm816, %v1764, -inf
        %1789 = vmax.xlane.f32.xlu0 %v1788
        %v1790 = vpop.xlane.xlu0 %1789
        %v1791 = vsel %vm816, %v1767, -inf
        %1792 = vmax.xlane.f32.xlu0 %v1791
        %v1793 = vpop.xlane.xlu0 %1792
        %v1794 = vsub.f32 %v1740, %v1772
        %v1795 = vsub.f32 %v1743, %v1775
        %v1796 = vsub.f32 %v1748, %v1778
        %v1797 = vsub.f32 %v1751, %v1781
        %v1798 = vsub.f32 %v1756, %v1784
        %v1799 = vsub.f32 %v1759, %v1787
        %v1800 = vsub.f32 %v1764, %v1790
        %v1801 = vsub.f32 %v1767, %v1793
        %v1802 = vmul.f32 %v1794, 1.442695
        %v1803 = vpow.pop %v1802
        %v1804 = vmul.f32 %v1795, 1.442695
        %v1805 = vpow.pop %v1804
        %v1806 = vmul.f32 %v1796, 1.442695
        %v1807 = vpow.pop %v1806
        %v1808 = vmul.f32 %v1797, 1.442695
        %v1809 = vpow.pop %v1808
        %v1810 = vmul.f32 %v1798, 1.442695
        %v1811 = vpow.pop %v1810
        %v1812 = vmul.f32 %v1799, 1.442695
        %v1813 = vpow.pop %v1812
        %v1814 = vmul.f32 %v1800, 1.442695
        %v1815 = vpow.pop %v1814
        %v1816 = vmul.f32 %v1801, 1.442695
        %v1817 = vpow.pop %v1816
        %v1818 = vsel %vm816, %v1803, 0.0
        %1819 = vadd.xlane.f32.xlu0 %v1818
        %v1820 = vpop.xlane.xlu0 %1819
        %v1821 = vsel %vm816, %v1805, 0.0
        %1822 = vadd.xlane.f32.xlu0 %v1821
        %v1823 = vpop.xlane.xlu0 %1822
        %v1824 = vsel %vm816, %v1807, 0.0
        %1825 = vadd.xlane.f32.xlu0 %v1824
        %v1826 = vpop.xlane.xlu0 %1825
        %v1827 = vsel %vm816, %v1809, 0.0
        %1828 = vadd.xlane.f32.xlu0 %v1827
        %v1829 = vpop.xlane.xlu0 %1828
        %v1830 = vsel %vm816, %v1811, 0.0
        %1831 = vadd.xlane.f32.xlu0 %v1830
        %v1832 = vpop.xlane.xlu0 %1831
        %v1833 = vsel %vm816, %v1813, 0.0
        %1834 = vadd.xlane.f32.xlu0 %v1833
        %v1835 = vpop.xlane.xlu0 %1834
        %v1836 = vsel %vm816, %v1815, 0.0
        %1837 = vadd.xlane.f32.xlu0 %v1836
        %v1838 = vpop.xlane.xlu0 %1837
        %v1839 = vsel %vm816, %v1817, 0.0
        %1840 = vadd.xlane.f32.xlu0 %v1839
        %v1841 = vpop.xlane.xlu0 %1840
        %v1842 = vpack.c.bf16 %v1805, %v1803
        %v1843 = vpack.c.bf16 %v1809, %v1807
        %v1844 = vpack.c.bf16 %v1813, %v1811
        %v1845 = vpack.c.bf16 %v1817, %v1815
        %1846 = vrot.lane.b32.xlu0 %v814, 32
        %v1847 = vpop.permute.xlu0 %1846
        %1848 = vrot.lane.b32.xlu0 %v815, 32
        %v1849 = vpop.permute.xlu0 %1848
        %v1853 = vsel %vm816, %v1842, 0
        %v1856 = vsel %vm816, %v1843, 0
        %v1859 = vsel %vm816, %v1844, 0
        %v1862 = vsel %vm816, %v1845, 0
        %1864 = vmatprep.subr.bf16.mxu0 0
        %1865 = vmatpush1.bf16.msra.mxu0 %v1847
        %1866 = vmatprep.subr.bf16.mxu0 0
        %1867 = vmatpush1.bf16.msra.mxu0 %v1849
        %1868 = vmatprep.subr.bf16.mxu0 0
        %1869 = vmatpush1.bf16.msra.mxu0 0
        %1870 = vmatprep.subr.bf16.mxu0 0
        %1871 = vmatpush1.bf16.msra.mxu0 0
        %1872 = vmatprep.subr.bf16.mxu0 0
        %1873 = vmatpush1.bf16.msra.mxu0 0
        %1874 = vmatprep.subr.bf16.mxu0 0
        %1875 = vmatpush1.bf16.msra.mxu0 0
        %1876 = vmatprep.subr.bf16.mxu0 0
        %1877 = vmatpush1.bf16.msra.mxu0 0
        %1878 = vmatprep.subr.bf16.mxu0 0
        %1879 = vmatpush1.bf16.msra.mxu0 0
        %1880 = vmatprep.subr.bf16.mxu0 0
        %1881 = vmatpush1.bf16.msra.mxu0 0
        %1882 = vmatprep.subr.bf16.mxu0 0
        %1883 = vmatpush1.bf16.msra.mxu0 0
        %1884 = vmatprep.subr.bf16.mxu0 0
        %1885 = vmatpush1.bf16.msra.mxu0 0
        %1886 = vmatprep.subr.bf16.mxu0 0
        %1887 = vmatpush1.bf16.msra.mxu0 0
        %1888 = vmatprep.subr.bf16.mxu0 0
        %1889 = vmatpush1.bf16.msra.mxu0 0
        %1890 = vmatprep.subr.bf16.mxu0 0
        %1891 = vmatpush1.bf16.msra.mxu0 0
        %1892 = vmatprep.subr.bf16.mxu0 0
        %1893 = vmatpush1.bf16.msra.mxu0 0
        %1894 = vmatprep.subr.bf16.mxu0 0
        %1895 = vmatpush1.bf16.msra.mxu0 0
        %1896 = vmatprep.mubr.bf16.mxu0 0
        %1897 = vmatmul.mubr.bf16.gmra.mrb[0].mxu0 %v1853
        %v1898 = vpop.f32.mrb[0].mxu0
        %v1899 = vadd.f32 0.0, %v1898
        %v1900 = vpop.f32.mrb[0].mxu0
        %v1901 = vpop.f32.mrb[0].mxu0
        %v1902 = vadd.f32 0.0, %v1901
        %v1903 = vpop.f32.mrb[0].mxu0
        %1904 = vmatprep.mubr.bf16.mxu0 0
        %1905 = vmatmul.mubr.bf16.gmra.mrb[0].mxu0 %v1856
        %v1906 = vpop.f32.mrb[0].mxu0
        %v1907 = vadd.f32 0.0, %v1906
        %v1908 = vpop.f32.mrb[0].mxu0
        %v1909 = vpop.f32.mrb[0].mxu0
        %v1910 = vadd.f32 0.0, %v1909
        %v1911 = vpop.f32.mrb[0].mxu0
        %1912 = vmatprep.mubr.bf16.mxu0 0
        %1913 = vmatmul.mubr.bf16.gmra.mrb[0].mxu0 %v1859
        %v1914 = vpop.f32.mrb[0].mxu0
        %v1915 = vadd.f32 0.0, %v1914
        %v1916 = vpop.f32.mrb[0].mxu0
        %v1917 = vpop.f32.mrb[0].mxu0
        %v1918 = vadd.f32 0.0, %v1917
        %v1919 = vpop.f32.mrb[0].mxu0
        %1920 = vmatprep.mubr.bf16.mxu0 0
        %1921 = vmatmul.mubr.bf16.gmra.mrb[0].mxu0 %v1862
        %v1922 = vpop.f32.mrb[0].mxu0
        %v1923 = vadd.f32 0.0, %v1922
        %v1924 = vpop.f32.mrb[0].mxu0
        %v1925 = vpop.f32.mrb[0].mxu0
        %v1926 = vadd.f32 0.0, %v1925
        %v1927 = vpop.f32.mrb[0].mxu0
        %1928 = vdwg.mxu0
        %v1929 = vrcp.pop %v1820
        %v1930 = vrcp.pop %v1823
        %v1931 = vrcp.pop %v1826
        %v1932 = vrcp.pop %v1829
        %v1933 = vrcp.pop %v1832
        %v1934 = vrcp.pop %v1835
        %v1935 = vrcp.pop %v1838
        %v1936 = vrcp.pop %v1841
        %v1937 = vmul.f32 %v1899, %v1929
        %v1938 = vmul.f32 %v1902, %v1930
        %v1939 = vmul.f32 %v1907, %v1931
        %v1940 = vmul.f32 %v1910, %v1932
        %v1941 = vmul.f32 %v1915, %v1933
        %v1942 = vmul.f32 %v1918, %v1934
        %v1943 = vmul.f32 %v1923, %v1935
        %v1944 = vmul.f32 %v1926, %v1936
        %v1945 = vpack.c.bf16 %v1938, %v1937
        %v1946 = vpack.c.bf16 %v1940, %v1939
        %v1947 = vpack.c.bf16 %v1942, %v1941
        %v1948 = vpack.c.bf16 %v1944, %v1943
        %1953 = vrot.lane.b32.xlu0 %v1945, 96
        %v1954 = vpop.permute.xlu0 %1953
        %1955 = vrot.lane.b32.xlu0 %v1946, 96
        %v1956 = vpop.permute.xlu0 %1955
        %1957 = vrot.lane.b32.xlu0 %v1947, 96
        %v1958 = vpop.permute.xlu0 %1957
        %1959 = vrot.lane.b32.xlu0 %v1948, 96
        %v1960 = vpop.permute.xlu0 %1959
        %vm1965 = vcmask 1048320
        %1966 = vst.msk [vmem:[#allocation2] sm:$0xff] %vm1965, %v1954
        %1967 = vst.msk [vmem:[#allocation2 + $0x8] sm:$0xff] %vm1965, %v1956
        %1968 = vst.msk [vmem:[#allocation2 + $0x10] sm:$0xff] %vm1965, %v1958
        %1969 = vst.msk [vmem:[#allocation2 + $0x18] sm:$0xff] %vm1965, %v1960
        %v1970 = vld [vmem:[#allocation2] sm:$0xff]
        %v1971 = vld [vmem:[#allocation2 + $0x8] sm:$0xff]
        %v1972 = vld [vmem:[#allocation2 + $0x10] sm:$0xff]
        %v1973 = vld [vmem:[#allocation2 + $0x18] sm:$0xff]
        %v1974 = vld [vmem:[%s7] sm:$0xf]
        %v1975 = vld [vmem:[%s7 + $0x4] sm:$0xf]
        %v1976 = vld [vmem:[%s7 + $0x8] sm:$0xf]
        %v1977 = vld [vmem:[%s7 + $0xc] sm:$0xf]
        %v1978 = vld [vmem:[%s7 + $0x10] sm:$0xf]
        %v1979 = vld [vmem:[%s7 + $0x14] sm:$0xf]
        %v1980 = vld [vmem:[%s7 + $0x18] sm:$0xf]
        %v1981 = vld [vmem:[%s7 + $0x1c] sm:$0xf]
        %v1982 = vld [vmem:[%s7 + $0x20] sm:$0xf]
        %v1983 = vld [vmem:[%s7 + $0x24] sm:$0xf]
        %v1984 = vld [vmem:[%s7 + $0x28] sm:$0xf]
        %v1985 = vld [vmem:[%s7 + $0x2c] sm:$0xf]
        %v1986 = vld [vmem:[%s7 + $0x30] sm:$0xf]
        %v1987 = vld [vmem:[%s7 + $0x34] sm:$0xf]
        %v1988 = vld [vmem:[%s7 + $0x38] sm:$0xf]
        %v1989 = vld [vmem:[%s7 + $0x3c] sm:$0xf]
        %v1990 = vld [vmem:[%s8] sm:$0x1]
        %v1992 = vlaneseq
        %v1993 = vshrl.u32 %v1992, 7
        %v1994 = vsub.s32 0, %v1993
        %v1995 = vrot.slane %v1990, %v1994
        %v2013 = vunpack.c.l.b16 %v1974
        %v2014 = vunpack.c.l.b16 %v1975
        %v2015 = vunpack.c.l.b16 %v1976
        %v2016 = vunpack.c.l.b16 %v1977
        %v2017 = vunpack.c.l.b16 %v1978
        %v2018 = vunpack.c.l.b16 %v1979
        %v2019 = vunpack.c.l.b16 %v1980
        %v2020 = vunpack.c.l.b16 %v1981
        %v2021 = vunpack.c.l.b16 %v1982
        %v2022 = vunpack.c.l.b16 %v1983
        %v2023 = vunpack.c.l.b16 %v1984
        %v2024 = vunpack.c.l.b16 %v1985
        %v2025 = vunpack.c.l.b16 %v1986
        %v2026 = vunpack.c.l.b16 %v1987
        %v2027 = vunpack.c.l.b16 %v1988
        %v2028 = vunpack.c.l.b16 %v1989
        %v2029 = vpack.c.b16 %v2014, %v2013
        %v2030 = vpack.c.b16 %v2016, %v2015
        %v2031 = vpack.c.b16 %v2018, %v2017
        %v2032 = vpack.c.b16 %v2020, %v2019
        %v2033 = vpack.c.b16 %v2022, %v2021
        %v2034 = vpack.c.b16 %v2024, %v2023
        %v2035 = vpack.c.b16 %v2026, %v2025
        %v2036 = vpack.c.b16 %v2028, %v2027
        %2045 = vmatprep.subr.bf16.mxu0 0
        %2046 = vmatpush1.bf16.msra.mxu0 %v2029
        %2047 = vmatprep.subr.bf16.mxu0 0
        %2048 = vmatpush1.bf16.msra.mxu0 %v2030
        %2049 = vmatprep.subr.bf16.mxu0 0
        %2050 = vmatpush1.bf16.msra.mxu0 %v2031
        %2051 = vmatprep.subr.bf16.mxu0 0
        %2052 = vmatpush1.bf16.msra.mxu0 %v2032
        %2053 = vmatprep.subr.bf16.mxu0 0
        %2054 = vmatpush1.bf16.msra.mxu0 %v2033
        %2055 = vmatprep.subr.bf16.mxu0 0
        %2056 = vmatpush1.bf16.msra.mxu0 %v2034
        %2057 = vmatprep.subr.bf16.mxu0 0
        %2058 = vmatpush1.bf16.msra.mxu0 %v2035
        %2059 = vmatprep.subr.bf16.mxu0 0
        %2060 = vmatpush1.bf16.msra.mxu0 %v2036
        %2061 = vmatprep.subr.bf16.mxu0 0
        %2062 = vmatpush1.bf16.msra.mxu0 0
        %2063 = vmatprep.subr.bf16.mxu0 0
        %2064 = vmatpush1.bf16.msra.mxu0 0
        %2065 = vmatprep.subr.bf16.mxu0 0
        %2066 = vmatpush1.bf16.msra.mxu0 0
        %2067 = vmatprep.subr.bf16.mxu0 0
        %2068 = vmatpush1.bf16.msra.mxu0 0
        %2069 = vmatprep.subr.bf16.mxu0 0
        %2070 = vmatpush1.bf16.msra.mxu0 0
        %2071 = vmatprep.subr.bf16.mxu0 0
        %2072 = vmatpush1.bf16.msra.mxu0 0
        %2073 = vmatprep.subr.bf16.mxu0 0
        %2074 = vmatpush1.bf16.msra.mxu0 0
        %2075 = vmatprep.subr.bf16.mxu0 0
        %2076 = vmatpush1.bf16.msra.mxu0 0
        %2077 = vmatprep.mubr.bf16.mxu0 0
        %2078 = vmatmul.mubr.bf16.gmra.mrb[0].mxu0 %v1970
        %v2079 = vpop.f32.mrb[0].mxu0
        %v2080 = vadd.f32 %v1995, %v2079
        %v2081 = vpop.f32.mrb[0].mxu0
        %v2082 = vpop.f32.mrb[0].mxu0
        %v2083 = vadd.f32 %v1995, %v2082
        %v2084 = vpop.f32.mrb[0].mxu0
        %2085 = vmatprep.mubr.bf16.mxu0 0
        %2086 = vmatmul.mubr.bf16.gmra.mrb[0].mxu0 %v1971
        %v2087 = vpop.f32.mrb[0].mxu0
        %v2088 = vadd.f32 %v1995, %v2087
        %v2089 = vpop.f32.mrb[0].mxu0
        %v2090 = vpop.f32.mrb[0].mxu0
        %v2091 = vadd.f32 %v1995, %v2090
        %v2092 = vpop.f32.mrb[0].mxu0
        %2093 = vmatprep.mubr.bf16.mxu0 0
        %2094 = vmatmul.mubr.bf16.gmra.mrb[0].mxu0 %v1972
        %v2095 = vpop.f32.mrb[0].mxu0
        %v2096 = vadd.f32 %v1995, %v2095
        %v2097 = vpop.f32.mrb[0].mxu0
        %v2098 = vpop.f32.mrb[0].mxu0
        %v2099 = vadd.f32 %v1995, %v2098
        %v2100 = vpop.f32.mrb[0].mxu0
        %2101 = vmatprep.mubr.bf16.mxu0 0
        %2102 = vmatmul.mubr.bf16.gmra.mrb[0].mxu0 %v1973
        %v2103 = vpop.f32.mrb[0].mxu0
        %v2104 = vadd.f32 %v1995, %v2103
        %v2105 = vpop.f32.mrb[0].mxu0
        %v2106 = vpop.f32.mrb[0].mxu0
        %v2107 = vadd.f32 %v1995, %v2106
        %v2108 = vpop.f32.mrb[0].mxu0
        %2109 = vdwg.mxu0
        %2110 = vst [vmem:[%s365] sm:$0xff] %v2080
        %2111 = vst [vmem:[%s365 + $0x8] sm:$0xff] %v2083
        %2112 = vst [vmem:[%s365 + $0x10] sm:$0xff] %v2088
        %2113 = vst [vmem:[%s365 + $0x18] sm:$0xff] %v2091
        %2114 = vst [vmem:[%s365 + $0x20] sm:$0xff] %v2096
        %2115 = vst [vmem:[%s365 + $0x28] sm:$0xff] %v2099
        %2116 = vst [vmem:[%s365 + $0x30] sm:$0xff] %v2104
        %2117 = vst [vmem:[%s365 + $0x38] sm:$0xff] %v2107
        %s2118 = sand.u32 %s246, 1
        %s2119 = scalar_lea.sflag [#allocation4], %s2118
        %s2120 = sand.u32 %s246, 1
        %s2121 = smul.addr %s2120, 64
        %s2122 = scalar_lea.vmem [#allocation3], %s2121
        // Predicated region
        $region57: #{duma_layer_forward.3} parent=55 // pred_check
          %p2123 = pneg %p256
        $region58: #{duma_layer_forward.3} parent=55 // pred_check_branch
          %2125 = sbr.rel (%p2123) target = $region60
        $region59: #{duma_layer_forward.3} parent=55 // pred_region
          %s2126 = smul.u32 8, %s28
          %s2128 = ssub.s32 1024, 1024
          %2129 = vsyncadd %s2119, %s2128
          %s2130 = smul.addr %s27, 8
          %s2131 = sadd.s32 %s2126, %s2130
          %s2132 = smul.addr %s2131, 128
          %s2133 = scalar_lea.hbm %s9, %s2132
          %s2134 = sshll.u32 %s2122, 4
          %s2135 = int_to_ptr.vmem [resolvable:$true] %s2134
          %2140 = dma.vmem_to_hbm [thread:$0]  %s2135, 1024, %s2133, %s2119, 128, 128, 8
        $region60: #{duma_layer_forward.3} parent=55 // pred_fallthru
          _
      $region56: #{duma_layer_forward.3} parent=5 // pred_fallthru
        _
      %p2141 = scmp.le.s32.totalorder 2, %s18
      // Predicated region
      $region61: #{duma_layer_forward.3} parent=5 // pred_check
        %p2142 = pneg %p2141
      $region62: #{duma_layer_forward.3} parent=5 // pred_check_branch
        %2144 = sbr.rel (%p2142) target = $region64
      $region63: #{duma_layer_forward.3} parent=5 // pred_region
        %s2145 = ssub.s32 %s18, 2
        // Predicated region
        $region65: #{duma_layer_forward.3} parent=63 // pred_check
          %p2146 = pneg %p262
        $region66: #{duma_layer_forward.3} parent=63 // pred_check_branch
          %2148 = sbr.rel (%p2146) target = $region68
        $region67: #{duma_layer_forward.3} parent=63 // pred_region
          %s2149 = sand.u32 %s247, 1
          %s2150 = scalar_lea.sflag [#allocation4], %s2149
          %s2151 = sand.u32 %s247, 1
          %s2152 = smul.addr %s2151, 64
          %s2153 = scalar_lea.vmem [#allocation3], %s2152
          %2154 = dma.done %s2150, 1024
        $region68: #{duma_layer_forward.3} parent=63 // pred_fallthru
          _
      $region64: #{duma_layer_forward.3} parent=5 // pred_fallthru
        _
    $region6: #{duma_layer_forward.3} parent=1 // loop_footer
      %s22 = sadd.s32 1, %s18
    $region7: #{duma_layer_forward.3} parent=1 // loop_footer_branch
      %17 = sbr.rel target = $region3
    $region8: #{duma_layer_forward.3} parent=1 // loop_exit
      _
    %2155 = vsyncpa [#allocation4], 1
    %s2156 = scalar_lea.sflag [#allocation4], 1
    %2157 = vsyncpa %s2156, 1

</llo_original>
